<compile_context>
chip_gen: v7x
topology: tpu7x:2x2x1
jax: 0.10.0
libtpu: 0.0.40
codegen_flags: <defaults>
</compile_context>

<pallas_src>
import numpy as np
import jax
import jax.numpy as jnp
from jax.experimental import pallas as pl
from jax.experimental.pallas import tpu as pltpu

# ----------------------------- configuration --------------------------------
B = 2                     # batch
L_IMG = 8                 # image tokens after dropping CLS ([:, 1:, :])
IMG_DIM = 48              # clip hidden size (image_dims)
TXT_DIM = 32              # t5 hidden size (text_dims == emb_size)
N_HEADS = 8               # WeightedMultiheadAttention num_heads
D_K = TXT_DIM // N_HEADS  # 4
DFF = 2048                # CustomTransformerLayer default dim_feedforward
L_CAP = 16                # caption sequence length (img_caps tokens)
L_PURE = L_CAP - (L_IMG + 1)   # pure caption tokens = 7
LN_EPS = 1e-5
COS_EPS = 1e-8            # torch cosine_similarity default eps

BI = B * L_IMG            # flattened image tokens (16)
BC = B * L_CAP            # flattened caption tokens (32)
HR = N_HEADS * BI         # head-stacked attention rows (128)


# ---------------------- compile-time structural masks ------------------------
def _build_struct_masks():
    trow = np.arange(BC)
    icol = np.arange(BI)
    # caption row r votes for image col c iff same batch AND r is a pure-caption token
    same_tb = (trow[:, None] // L_CAP) == (icol[None, :] // L_IMG)
    is_pure = (trow % L_CAP) >= (L_IMG + 1)
    cos_struct = (same_tb & is_pure[:, None]).astype(np.float32)              # (BC, BI)
    # image-token query q may attend image-token key k iff same batch
    same_img = ((icol[:, None] // L_IMG) ==
                (icol[None, :] // L_IMG)).astype(np.float32)                  # (BI, BI)
    # head-stacked row h*BI + r selects embedding columns of head h
    hrow = np.arange(HR)
    ecol = np.arange(TXT_DIM)
    head_sel = ((hrow[:, None] // BI) ==
                (ecol[None, :] // D_K)).astype(np.float32)                    # (HR, TXT_DIM)
    return cos_struct, same_img, head_sel


_COS_STRUCT, _SAME_IMG, _HEAD_SEL = _build_struct_masks()


# ------------------------------- fused kernel --------------------------------
def _fused_kernel(clip_ref, txt_ref, cosm_ref, same_ref, hsel_ref,
                  wp_ref, bp_ref,
                  wq_ref, bq_ref, wk_ref, bk_ref, wvl_ref, bvl_ref,
                  wo_ref, bo_ref, g_ref, be_ref,
                  w1_ref, b1_ref, w2_ref, b2_ref,
                  o_ref):
    # clip: (BI, IMG_DIM)  txt: (BC, E)  cosm: (BC, BI)  same: (BI, BI)
    # hsel: (HR, E).  Weight matrices are pre-transposed to (in, out); w1/w2 bf16.
    x_clip = clip_ref[...]
    txt = txt_ref[...]

    # ---- 1. projector Linear (CLIP hidden -> text dims) ----
    img = (jnp.dot(x_clip, wp_ref[...], preferred_element_type=jnp.float32)
           + bp_ref[...])                                        # (BI, E)

    # ---- 2. cosine-similarity -> per-image-token weights ----
    # 1/max(||x||, eps) == rsqrt(max(||x||^2, eps^2))  (EUP, no VPU divide)
    txt_inv = jax.lax.rsqrt(
        jnp.maximum(jnp.sum(txt * txt, axis=-1, keepdims=True), COS_EPS * COS_EPS))
    img_inv = jax.lax.rsqrt(
        jnp.maximum(jnp.sum(img * img, axis=-1, keepdims=True), COS_EPS * COS_EPS))
    cos = jnp.einsum("ce,ie->ci", txt * txt_inv, img * img_inv,
                     preferred_element_type=jnp.float32)         # (BC, BI)
    cos = (cos + 1.00001) * 0.5
    cos = cos * cosm_ref[...]          # keep only same-batch pure-caption rows
    key_w = 1.0 - jnp.max(cos, axis=0, keepdims=True)            # (1, BI)

    # ---- 3. WeightedMultiheadAttention (all heads in ONE softmax chain) ----
    q = jnp.dot(img, wq_ref[...], preferred_element_type=jnp.float32) + bq_ref[...]
    k = jnp.dot(img, wk_ref[...], preferred_element_type=jnp.float32) + bk_ref[...]
    v = jnp.dot(img, wvl_ref[...], preferred_element_type=jnp.float32) + bvl_ref[...]

    hsel = hsel_ref[...]                                          # (HR, E)
    # Stack heads on sublanes: row h*BI + r holds query r restricted to head h's
    # embedding columns, so one matmul against full k yields every head energy.
    q_stack = jnp.tile(q, (N_HEADS, 1)) * hsel                    # (HR, E)
    e = jnp.einsum("re,ke->rk", q_stack, k,
                   preferred_element_type=jnp.float32) * (D_K ** -0.5)   # (HR, BI)
    e = e * (key_w * key_w)                                       # energy * weights**2
    allowed = (jnp.tile(same_ref[...], (N_HEADS, 1))              # same-batch keys
               * (key_w >= 1e-5).astype(jnp.float32))             # masked_fill keys
    e = jnp.where(allowed > 0.5, e, -jnp.inf)
    # NOTE: if every key weight of a batch fell below 1e-5 the softmax is NaN,
    # identical to the PyTorch reference behaviour.
    m = jnp.max(e, axis=-1, keepdims=True)
    p = jnp.exp(e - m)
    p = p * pl.reciprocal(jnp.sum(p, axis=-1, keepdims=True), approx=True)
    out = jnp.dot(p, v, preferred_element_type=jnp.float32) * hsel        # (HR, E)
    attn = out[0:BI]
    for h in range(1, N_HEADS):                                   # recombine heads
        attn = attn + out[h * BI:(h + 1) * BI]                    # (BI, E)
    attn_out = (jnp.dot(attn, wo_ref[...], preferred_element_type=jnp.float32)
                + bo_ref[...])

    # ---- 4. residual + LayerNorm ----
    y = img + attn_out
    mean = jnp.mean(y, axis=-1, keepdims=True)
    var = jnp.mean((y - mean) ** 2, axis=-1, keepdims=True)
    z = (y - mean) * jax.lax.rsqrt(var + LN_EPS) * g_ref[...] + be_ref[...]

    # ---- 5. feed forward: bf16 x bf16 -> f32 on the MXU, elementwise in f32 ----
    hdn = (jnp.dot(z.astype(jnp.bfloat16), w1_ref[...],
                   preferred_element_type=jnp.float32) + b1_ref[...])     # (BI, DFF)
    hdn = jnp.where(hdn >= 0, hdn, 0.01 * hdn)                    # LeakyReLU(0.01)
    ff = (jnp.dot(hdn.astype(jnp.bfloat16), w2_ref[...],
                  preferred_element_type=jnp.float32) + b2_ref[...])
    img_out = z + ff                                              # (BI, E)

    # ---- 6. assemble merged (CLS | img | pure caption) sequence in-kernel ----
    pieces = []
    for b in range(B):
        pieces.append(txt[b * L_CAP:b * L_CAP + 1])               # CLS token
        pieces.append(img_out[b * L_IMG:(b + 1) * L_IMG])         # image tokens
        pieces.append(txt[b * L_CAP + 1 + L_IMG:(b + 1) * L_CAP]) # pure caption
    o_ref[...] = jnp.concatenate(pieces, axis=0)                  # (BC, E)


# --------------------------- full forward (Pallas) ----------------------------
def multimodal_forward(clip_hidden, text_embs, attn_mask, params):
    """get_images_with_caption_inputs_embeds with only_img=False.

    clip_hidden: (B, L_IMG, IMG_DIM)  -- CLIP hidden_states[select_layer][:, 1:, :]
    text_embs  : (B, L_CAP, TXT_DIM)  -- T5 input embeddings of the caption
    attn_mask  : (B, L_CAP)           -- caption attention mask (float 0/1)
    params["w1"], params["w2"] must already be bf16 (converted once, outside jit).
    """
    bb = clip_hidden.shape[0]
    assert bb == B and clip_hidden.shape[1] == L_IMG

    clip_flat = clip_hidden.reshape(BI, IMG_DIM)                  # free reshape
    text_flat = text_embs.reshape(BC, TXT_DIM)                    # free reshape
    cos_mask = jnp.asarray(_COS_STRUCT) * attn_mask.reshape(BC, 1)

    inputs = [
        clip_flat, text_flat, cos_mask,
        jnp.asarray(_SAME_IMG), jnp.asarray(_HEAD_SEL),
        params["wp"], params["bp"],
        params["wq"], params["bq"], params["wk"], params["bk"],
        params["wv"], params["bv"], params["wo"], params["bo"],
        params["ln_g"], params["ln_b"],
        params["w1"], params["b1"], params["w2"], params["b2"],
    ]
    # single grid step, every block = full array (2-D everywhere)
    in_specs = [pl.BlockSpec(a.shape, lambda i: (0, 0)) for a in inputs]

    merged_flat = pl.pallas_call(
        _fused_kernel,
        out_shape=jax.ShapeDtypeStruct((BC, TXT_DIM), jnp.float32),
        grid=(1,),
        in_specs=in_specs,
        out_specs=pl.BlockSpec((BC, TXT_DIM), lambda i: (0, 0)),
        compiler_params=pltpu.CompilerParams(
            dimension_semantics=("arbitrary",)),
    )(*inputs)

    merge_embs = merged_flat.reshape(bb, L_CAP, TXT_DIM)
    # merge mask == attn_mask with the image-token positions forced to 1
    merge_mask = attn_mask.at[:, 1:1 + L_IMG].set(1.0)
    # TODO(synk): self.t5_model(...) / get_rep (pretrained LM) is not translatable.
    return merge_embs, merge_mask


# ------------------------------ pure-JAX reference ----------------------------
def reference_forward(clip_hidden, text_embs, attn_mask, p):
    hp = jax.lax.Precision.HIGHEST
    img = jnp.einsum("bld,de->ble", clip_hidden, p["wp"], precision=hp) + p["bp"]
    pure_cap = text_embs[:, L_IMG + 1:, :]
    pure_mask = attn_mask[:, L_IMG + 1:]

    cap_n = jnp.linalg.norm(pure_cap, axis=-1, keepdims=True)
    img_n = jnp.linalg.norm(img, axis=-1, keepdims=True)
    cap_u = pure_cap / jnp.maximum(cap_n, COS_EPS)
    img_u = img / jnp.maximum(img_n, COS_EPS)
    cos = jnp.einsum("bce,bie->bci", cap_u, img_u, precision=hp)
    cos = (cos + 1.00001) / 2.0
    cos = cos * pure_mask[..., None]
    values = jnp.max(cos, axis=-2)
    w = 1.0 - values                                              # (B, L_IMG)

    def lin(x, wm, bv):
        return jnp.einsum("bld,de->ble", x, wm, precision=hp) + bv

    q = lin(img, p["wq"], p["bq"]).reshape(B, L_IMG, N_HEADS, D_K).transpose(0, 2, 1, 3)
    k = lin(img, p["wk"], p["bk"]).reshape(B, L_IMG, N_HEADS, D_K).transpose(0, 2, 1, 3)
    v = lin(img, p["wv"], p["bv"]).reshape(B, L_IMG, N_HEADS, D_K).transpose(0, 2, 1, 3)
    energy = jnp.einsum("bhqd,bhkd->bhqk", q, k, precision=hp) * (D_K ** -0.5)
    wb = w[:, None, None, :]
    energy = energy * wb ** 2
    energy = jnp.where(wb < 1e-5, -jnp.inf, energy)
    attn = jax.nn.softmax(energy, axis=-1)
    out = jnp.einsum("bhqk,bhkd->bhqd", attn, v, precision=hp)
    out = out.transpose(0, 2, 1, 3).reshape(B, L_IMG, TXT_DIM)
    out = lin(out, p["wo"], p["bo"])

    y = img + out
    mean = jnp.mean(y, axis=-1, keepdims=True)
    var = jnp.mean((y - mean) ** 2, axis=-1, keepdims=True)
    z = (y - mean) / jnp.sqrt(var + LN_EPS) * p["ln_g"] + p["ln_b"]
    hdn = lin(z, p["w1"], p["b1"])
    hdn = jnp.where(hdn >= 0, hdn, 0.01 * hdn)
    ff = lin(hdn, p["w2"], p["b2"])
    img_out = z + ff

    merge_embs = jnp.concatenate([text_embs[:, 0:1, :], img_out, pure_cap], axis=1)
    merge_mask = jnp.concatenate(
        [attn_mask[:, 0:1], jnp.ones((B, L_IMG), jnp.float32), pure_mask], axis=1)
    return merge_embs, merge_mask


# -------------------------------- parameters ----------------------------------
def init_params(key):
    ks = jax.random.split(key, 8)

    def lin_init(kk, fan_in, fan_out):
        s = 1.0 / jnp.sqrt(fan_in)
        w = jax.random.uniform(kk, (fan_in, fan_out), jnp.float32, -s, s)
        b = jax.random.uniform(jax.random.fold_in(kk, 1), (1, fan_out),
                               jnp.float32, -s, s)
        return w, b

    p = {}
    p["wp"], p["bp"] = lin_init(ks[0], IMG_DIM, TXT_DIM)          # projector
    p["wq"], p["bq"] = lin_init(ks[1], TXT_DIM, TXT_DIM)
    p["wk"], p["bk"] = lin_init(ks[2], TXT_DIM, TXT_DIM)
    p["wv"], p["bv"] = lin_init(ks[3], TXT_DIM, TXT_DIM)
    p["wo"], p["bo"] = lin_init(ks[4], TXT_DIM, TXT_DIM)
    p["w1"], p["b1"] = lin_init(ks[5], TXT_DIM, DFF)
    p["w2"], p["b2"] = lin_init(ks[6], DFF, TXT_DIM)
    p["ln_g"] = jnp.ones((1, TXT_DIM), jnp.float32)               # nn.LayerNorm defaults
    p["ln_b"] = jnp.zeros((1, TXT_DIM), jnp.float32)
    return p


# ----------------------------------- main --------------------------------------
if __name__ == "__main__":
    key = jax.random.PRNGKey(0)
    k0, k1, kp = jax.random.split(key, 3)

    # synthetic stand-ins for the pretrained encoders (see TODO above)
    clip_hidden = jax.random.normal(k0, (B, L_IMG, IMG_DIM), jnp.float32)
    text_embs = jax.random.normal(k1, (B, L_CAP, TXT_DIM), jnp.float32)
    attn_mask = jnp.ones((B, L_CAP), jnp.float32).at[1, -2:].set(0.0)

    params = init_params(kp)
    # bf16 copies of the big FFN weights made ONCE, outside the jit -> no per-call convert
    kernel_params = dict(params)
    kernel_params["w1"] = params["w1"].astype(jnp.bfloat16)
    kernel_params["w2"] = params["w2"].astype(jnp.bfloat16)

    fwd = jax.jit(multimodal_forward)
    merge_embs, merge_mask = fwd(clip_hidden, text_embs, attn_mask, kernel_params)
    merge_embs = jax.block_until_ready(merge_embs)
    merge_mask = jax.block_until_ready(merge_mask)

    ref_embs, ref_mask = reference_forward(clip_hidden, text_embs, attn_mask, params)

    assert merge_embs.shape == (B, L_CAP, TXT_DIM)
    assert merge_mask.shape == (B, L_CAP)
    assert jnp.allclose(merge_mask, ref_mask)
    assert jnp.allclose(merge_embs, ref_embs, atol=2e-2, rtol=2e-2), (
        float(jnp.max(jnp.abs(merge_embs - ref_embs))))

    print("KERNEL_OK")
</pallas_src>

<mosaic_0001>
module attributes {stable_mosaic.version = 11 : i64} {
  func.func @_fused_kernel(%arg0: i32, %arg1: memref<16x48xf32, #tpu.memory_space<vmem>>, %arg2: memref<32x32xf32, #tpu.memory_space<vmem>>, %arg3: memref<32x16xf32, #tpu.memory_space<vmem>>, %arg4: memref<16x16xf32, #tpu.memory_space<vmem>>, %arg5: memref<128x32xf32, #tpu.memory_space<vmem>>, %arg6: memref<48x32xf32, #tpu.memory_space<vmem>>, %arg7: memref<1x32xf32, #tpu.memory_space<vmem>>, %arg8: memref<32x32xf32, #tpu.memory_space<vmem>>, %arg9: memref<1x32xf32, #tpu.memory_space<vmem>>, %arg10: memref<32x32xf32, #tpu.memory_space<vmem>>, %arg11: memref<1x32xf32, #tpu.memory_space<vmem>>, %arg12: memref<32x32xf32, #tpu.memory_space<vmem>>, %arg13: memref<1x32xf32, #tpu.memory_space<vmem>>, %arg14: memref<32x32xf32, #tpu.memory_space<vmem>>, %arg15: memref<1x32xf32, #tpu.memory_space<vmem>>, %arg16: memref<1x32xf32, #tpu.memory_space<vmem>>, %arg17: memref<1x32xf32, #tpu.memory_space<vmem>>, %arg18: memref<32x2048xbf16, #tpu.memory_space<vmem>>, %arg19: memref<1x2048xf32, #tpu.memory_space<vmem>>, %arg20: memref<2048x32xbf16, #tpu.memory_space<vmem>>, %arg21: memref<1x32xf32, #tpu.memory_space<vmem>>, %arg22: memref<32x32xf32, #tpu.memory_space<vmem>>) attributes {dimension_semantics = [#tpu.dimension_semantics<arbitrary>], iteration_bounds = array<i64: 1>, scalar_prefetch = 0 : i64, scratch_operands = 0 : i64, tpu.core_type = #tpu.core_type<tc>, window_params = [{pipeline_mode = #tpu.pipeline_mode<synchronous>, transform_indices = @transform_0, window_bounds = array<i64: 16, 48>}, {pipeline_mode = #tpu.pipeline_mode<synchronous>, transform_indices = @transform_1, window_bounds = array<i64: 32, 32>}, {pipeline_mode = #tpu.pipeline_mode<synchronous>, transform_indices = @transform_2, window_bounds = array<i64: 32, 16>}, {pipeline_mode = #tpu.pipeline_mode<synchronous>, transform_indices = @transform_3, window_bounds = array<i64: 16, 16>}, {pipeline_mode = #tpu.pipeline_mode<synchronous>, transform_indices = @transform_4, window_bounds = array<i64: 128, 32>}, {pipeline_mode = #tpu.pipeline_mode<synchronous>, transform_indices = @transform_5, window_bounds = array<i64: 48, 32>}, {pipeline_mode = #tpu.pipeline_mode<synchronous>, transform_indices = @transform_6, window_bounds = array<i64: 1, 32>}, {pipeline_mode = #tpu.pipeline_mode<synchronous>, transform_indices = @transform_7, window_bounds = array<i64: 32, 32>}, {pipeline_mode = #tpu.pipeline_mode<synchronous>, transform_indices = @transform_8, window_bounds = array<i64: 1, 32>}, {pipeline_mode = #tpu.pipeline_mode<synchronous>, transform_indices = @transform_9, window_bounds = array<i64: 32, 32>}, {pipeline_mode = #tpu.pipeline_mode<synchronous>, transform_indices = @transform_10, window_bounds = array<i64: 1, 32>}, {pipeline_mode = #tpu.pipeline_mode<synchronous>, transform_indices = @transform_11, window_bounds = array<i64: 32, 32>}, {pipeline_mode = #tpu.pipeline_mode<synchronous>, transform_indices = @transform_12, window_bounds = array<i64: 1, 32>}, {pipeline_mode = #tpu.pipeline_mode<synchronous>, transform_indices = @transform_13, window_bounds = array<i64: 32, 32>}, {pipeline_mode = #tpu.pipeline_mode<synchronous>, transform_indices = @transform_14, window_bounds = array<i64: 1, 32>}, {pipeline_mode = #tpu.pipeline_mode<synchronous>, transform_indices = @transform_15, window_bounds = array<i64: 1, 32>}, {pipeline_mode = #tpu.pipeline_mode<synchronous>, transform_indices = @transform_16, window_bounds = array<i64: 1, 32>}, {pipeline_mode = #tpu.pipeline_mode<synchronous>, transform_indices = @transform_17, window_bounds = array<i64: 32, 2048>}, {pipeline_mode = #tpu.pipeline_mode<synchronous>, transform_indices = @transform_18, window_bounds = array<i64: 1, 2048>}, {pipeline_mode = #tpu.pipeline_mode<synchronous>, transform_indices = @transform_19, window_bounds = array<i64: 2048, 32>}, {pipeline_mode = #tpu.pipeline_mode<synchronous>, transform_indices = @transform_20, window_bounds = array<i64: 1, 32>}, {pipeline_mode = #tpu.pipeline_mode<synchronous>, transform_indices = @transform_21, window_bounds = array<i64: 32, 32>}]} {
    %c0 = arith.constant 0 : index
    %c0_0 = arith.constant 0 : index
    %0 = vector.load %arg1[%c0, %c0_0] : memref<16x48xf32, #tpu.memory_space<vmem>>, vector<16x48xf32>
    %c0_1 = arith.constant 0 : index
    %c0_2 = arith.constant 0 : index
    %1 = vector.load %arg2[%c0_1, %c0_2] : memref<32x32xf32, #tpu.memory_space<vmem>>, vector<32x32xf32>
    %c0_3 = arith.constant 0 : index
    %c0_4 = arith.constant 0 : index
    %2 = vector.load %arg6[%c0_3, %c0_4] : memref<48x32xf32, #tpu.memory_space<vmem>>, vector<48x32xf32>
    %cst = arith.constant dense<0.000000e+00> : vector<16x32xf32>
    %3 = tpu.matmul %0, %2, %cst {dimension_numbers = #tpu.dot_dimension_numbers<[1], [0], [0], [1], [0, 0, 1, 1], [], []>} : vector<16x48xf32>, vector<48x32xf32>, vector<16x32xf32> -> vector<16x32xf32>
    %c0_5 = arith.constant 0 : index
    %c0_6 = arith.constant 0 : index
    %4 = vector.load %arg7[%c0_5, %c0_6] : memref<1x32xf32, #tpu.memory_space<vmem>>, vector<1x32xf32>
    %5 = vector.broadcast %4 : vector<1x32xf32> to vector<16x32xf32>
    %6 = arith.addf %3, %5 : vector<16x32xf32>
    %7 = arith.mulf %1, %1 : vector<32x32xf32>
    %cst_7 = arith.constant dense<0.000000e+00> : vector<32xf32>
    %8 = vector.multi_reduction <add>, %7, %cst_7 [1] : vector<32x32xf32> to vector<32xf32>
    %9 = vector.shape_cast %8 : vector<32xf32> to vector<32x1xf32>
    %cst_8 = arith.constant 1.000000e-16 : f32
    %10 = vector.broadcast %cst_8 : f32 to vector<32x1xf32>
    %11 = arith.maximumf %9, %10 : vector<32x1xf32>
    %12 = math.rsqrt %11 : vector<32x1xf32>
    %13 = arith.mulf %6, %6 : vector<16x32xf32>
    %cst_9 = arith.constant dense<0.000000e+00> : vector<16xf32>
    %14 = vector.multi_reduction <add>, %13, %cst_9 [1] : vector<16x32xf32> to vector<16xf32>
    %15 = vector.shape_cast %14 : vector<16xf32> to vector<16x1xf32>
    %cst_10 = arith.constant 1.000000e-16 : f32
    %16 = vector.broadcast %cst_10 : f32 to vector<16x1xf32>
    %17 = arith.maximumf %15, %16 : vector<16x1xf32>
    %18 = math.rsqrt %17 : vector<16x1xf32>
    %19 = vector.broadcast %12 : vector<32x1xf32> to vector<32x32xf32>
    %20 = arith.mulf %1, %19 : vector<32x32xf32>
    %21 = vector.broadcast %18 : vector<16x1xf32> to vector<16x32xf32>
    %22 = arith.mulf %6, %21 : vector<16x32xf32>
    "tpu.trace_start"() <{level = 10 : i32, message = "ce,ie->ci"}> : () -> ()
    %cst_11 = arith.constant dense<0.000000e+00> : vector<32x16xf32>
    %23 = tpu.matmul %20, %22, %cst_11 {dimension_numbers = #tpu.dot_dimension_numbers<[1], [1], [0], [0], [0, 0, 1, 0], [], []>} : vector<32x32xf32>, vector<16x32xf32>, vector<32x16xf32> -> vector<32x16xf32>
    "tpu.trace_stop"() : () -> ()
    %cst_12 = arith.constant 1.000010e+00 : f32
    %24 = vector.broadcast %cst_12 : f32 to vector<32x16xf32>
    %25 = arith.addf %23, %24 : vector<32x16xf32>
    %cst_13 = arith.constant 5.000000e-01 : f32
    %26 = vector.broadcast %cst_13 : f32 to vector<32x16xf32>
    %27 = arith.mulf %25, %26 : vector<32x16xf32>
    %c0_14 = arith.constant 0 : index
    %c0_15 = arith.constant 0 : index
    %28 = vector.load %arg3[%c0_14, %c0_15] : memref<32x16xf32, #tpu.memory_space<vmem>>, vector<32x16xf32>
    %29 = arith.mulf %27, %28 : vector<32x16xf32>
    %cst_16 = arith.constant dense<0xFF800000> : vector<16xf32>
    %30 = vector.multi_reduction <maximumf>, %29, %cst_16 [0] : vector<32x16xf32> to vector<16xf32>
    %31 = vector.shape_cast %30 : vector<16xf32> to vector<1x16xf32>
    %cst_17 = arith.constant 1.000000e+00 : f32
    %32 = vector.broadcast %cst_17 : f32 to vector<1x16xf32>
    %33 = arith.subf %32, %31 : vector<1x16xf32>
    %c0_18 = arith.constant 0 : index
    %c0_19 = arith.constant 0 : index
    %34 = vector.load %arg8[%c0_18, %c0_19] : memref<32x32xf32, #tpu.memory_space<vmem>>, vector<32x32xf32>
    %cst_20 = arith.constant dense<0.000000e+00> : vector<16x32xf32>
    %35 = tpu.matmul %6, %34, %cst_20 {dimension_numbers = #tpu.dot_dimension_numbers<[1], [0], [0], [1], [0, 0, 1, 1], [], []>} : vector<16x32xf32>, vector<32x32xf32>, vector<16x32xf32> -> vector<16x32xf32>
    %c0_21 = arith.constant 0 : index
    %c0_22 = arith.constant 0 : index
    %36 = vector.load %arg9[%c0_21, %c0_22] : memref<1x32xf32, #tpu.memory_space<vmem>>, vector<1x32xf32>
    %37 = vector.broadcast %36 : vector<1x32xf32> to vector<16x32xf32>
    %38 = arith.addf %35, %37 : vector<16x32xf32>
    %c0_23 = arith.constant 0 : index
    %c0_24 = arith.constant 0 : index
    %39 = vector.load %arg10[%c0_23, %c0_24] : memref<32x32xf32, #tpu.memory_space<vmem>>, vector<32x32xf32>
    %cst_25 = arith.constant dense<0.000000e+00> : vector<16x32xf32>
    %40 = tpu.matmul %6, %39, %cst_25 {dimension_numbers = #tpu.dot_dimension_numbers<[1], [0], [0], [1], [0, 0, 1, 1], [], []>} : vector<16x32xf32>, vector<32x32xf32>, vector<16x32xf32> -> vector<16x32xf32>
    %c0_26 = arith.constant 0 : index
    %c0_27 = arith.constant 0 : index
    %41 = vector.load %arg11[%c0_26, %c0_27] : memref<1x32xf32, #tpu.memory_space<vmem>>, vector<1x32xf32>
    %42 = vector.broadcast %41 : vector<1x32xf32> to vector<16x32xf32>
    %43 = arith.addf %40, %42 : vector<16x32xf32>
    %c0_28 = arith.constant 0 : index
    %c0_29 = arith.constant 0 : index
    %44 = vector.load %arg12[%c0_28, %c0_29] : memref<32x32xf32, #tpu.memory_space<vmem>>, vector<32x32xf32>
    %cst_30 = arith.constant dense<0.000000e+00> : vector<16x32xf32>
    %45 = tpu.matmul %6, %44, %cst_30 {dimension_numbers = #tpu.dot_dimension_numbers<[1], [0], [0], [1], [0, 0, 1, 1], [], []>} : vector<16x32xf32>, vector<32x32xf32>, vector<16x32xf32> -> vector<16x32xf32>
    %c0_31 = arith.constant 0 : index
    %c0_32 = arith.constant 0 : index
    %46 = vector.load %arg13[%c0_31, %c0_32] : memref<1x32xf32, #tpu.memory_space<vmem>>, vector<1x32xf32>
    %47 = vector.broadcast %46 : vector<1x32xf32> to vector<16x32xf32>
    %48 = arith.addf %45, %47 : vector<16x32xf32>
    %c0_33 = arith.constant 0 : index
    %c0_34 = arith.constant 0 : index
    %49 = vector.load %arg5[%c0_33, %c0_34] : memref<128x32xf32, #tpu.memory_space<vmem>>, vector<128x32xf32>
    %50 = tpu.concatenate %38, %38, %38, %38, %38, %38, %38, %38 in 0 : vector<16x32xf32>, vector<16x32xf32>, vector<16x32xf32>, vector<16x32xf32>, vector<16x32xf32>, vector<16x32xf32>, vector<16x32xf32>, vector<16x32xf32> -> vector<128x32xf32>
    %51 = arith.mulf %50, %49 : vector<128x32xf32>
    "tpu.trace_start"() <{level = 10 : i32, message = "re,ke->rk"}> : () -> ()
    %cst_35 = arith.constant dense<0.000000e+00> : vector<128x16xf32>
    %52 = tpu.matmul %51, %43, %cst_35 {dimension_numbers = #tpu.dot_dimension_numbers<[1], [1], [0], [0], [0, 0, 1, 0], [], []>} : vector<128x32xf32>, vector<16x32xf32>, vector<128x16xf32> -> vector<128x16xf32>
    "tpu.trace_stop"() : () -> ()
    %cst_36 = arith.constant 5.000000e-01 : f32
    %53 = vector.broadcast %cst_36 : f32 to vector<128x16xf32>
    %54 = arith.mulf %52, %53 : vector<128x16xf32>
    %55 = arith.mulf %33, %33 : vector<1x16xf32>
    %56 = vector.broadcast %55 : vector<1x16xf32> to vector<128x16xf32>
    %57 = arith.mulf %54, %56 : vector<128x16xf32>
    %c0_37 = arith.constant 0 : index
    %c0_38 = arith.constant 0 : index
    %58 = vector.load %arg4[%c0_37, %c0_38] : memref<16x16xf32, #tpu.memory_space<vmem>>, vector<16x16xf32>
    %59 = tpu.concatenate %58, %58, %58, %58, %58, %58, %58, %58 in 0 : vector<16x16xf32>, vector<16x16xf32>, vector<16x16xf32>, vector<16x16xf32>, vector<16x16xf32>, vector<16x16xf32>, vector<16x16xf32>, vector<16x16xf32> -> vector<128x16xf32>
    %cst_39 = arith.constant 9.99999974E-6 : f32
    %60 = vector.broadcast %cst_39 : f32 to vector<1x16xf32>
    %61 = arith.cmpf oge, %33, %60 : vector<1x16xf32>
    %62 = arith.extui %61 : vector<1x16xi1> to vector<1x16xi32>
    %63 = arith.sitofp %62 : vector<1x16xi32> to vector<1x16xf32>
    %64 = vector.broadcast %63 : vector<1x16xf32> to vector<128x16xf32>
    %65 = arith.mulf %59, %64 : vector<128x16xf32>
    %cst_40 = arith.constant 5.000000e-01 : f32
    %66 = vector.broadcast %cst_40 : f32 to vector<128x16xf32>
    %67 = arith.cmpf ogt, %65, %66 : vector<128x16xf32>
    %cst_41 = arith.constant 0xFF800000 : f32
    %68 = vector.broadcast %cst_41 : f32 to vector<128x16xf32>
    %69 = arith.select %67, %57, %68 : vector<128x16xi1>, vector<128x16xf32>
    %cst_42 = arith.constant dense<0xFF800000> : vector<128xf32>
    %70 = vector.multi_reduction <maximumf>, %69, %cst_42 [1] : vector<128x16xf32> to vector<128xf32>
    %71 = vector.shape_cast %70 : vector<128xf32> to vector<128x1xf32>
    %72 = vector.broadcast %71 : vector<128x1xf32> to vector<128x16xf32>
    %73 = arith.subf %69, %72 : vector<128x16xf32>
    %74 = math.exp %73 : vector<128x16xf32>
    %cst_43 = arith.constant dense<0.000000e+00> : vector<128xf32>
    %75 = vector.multi_reduction <add>, %74, %cst_43 [1] : vector<128x16xf32> to vector<128xf32>
    %76 = vector.shape_cast %75 : vector<128xf32> to vector<128x1xf32>
    %77 = tpu.reciprocal %76 {approx = true} : vector<128x1xf32> -> vector<128x1xf32>
    %78 = vector.broadcast %77 : vector<128x1xf32> to vector<128x16xf32>
    %79 = arith.mulf %74, %78 : vector<128x16xf32>
    %cst_44 = arith.constant dense<0.000000e+00> : vector<128x32xf32>
    %80 = tpu.matmul %79, %48, %cst_44 {dimension_numbers = #tpu.dot_dimension_numbers<[1], [0], [0], [1], [0, 0, 1, 1], [], []>} : vector<128x16xf32>, vector<16x32xf32>, vector<128x32xf32> -> vector<128x32xf32>
    %81 = arith.mulf %80, %49 : vector<128x32xf32>
    %82 = vector.extract_strided_slice %81 {offsets = [0, 0], sizes = [16, 32], strides = [1, 1]} : vector<128x32xf32> to vector<16x32xf32>
    %83 = vector.extract_strided_slice %81 {offsets = [16, 0], sizes = [16, 32], strides = [1, 1]} : vector<128x32xf32> to vector<16x32xf32>
    %84 = arith.addf %82, %83 : vector<16x32xf32>
    %85 = vector.extract_strided_slice %81 {offsets = [32, 0], sizes = [16, 32], strides = [1, 1]} : vector<128x32xf32> to vector<16x32xf32>
    %86 = arith.addf %84, %85 : vector<16x32xf32>
    %87 = vector.extract_strided_slice %81 {offsets = [48, 0], sizes = [16, 32], strides = [1, 1]} : vector<128x32xf32> to vector<16x32xf32>
    %88 = arith.addf %86, %87 : vector<16x32xf32>
    %89 = vector.extract_strided_slice %81 {offsets = [64, 0], sizes = [16, 32], strides = [1, 1]} : vector<128x32xf32> to vector<16x32xf32>
    %90 = arith.addf %88, %89 : vector<16x32xf32>
    %91 = vector.extract_strided_slice %81 {offsets = [80, 0], sizes = [16, 32], strides = [1, 1]} : vector<128x32xf32> to vector<16x32xf32>
    %92 = arith.addf %90, %91 : vector<16x32xf32>
    %93 = vector.extract_strided_slice %81 {offsets = [96, 0], sizes = [16, 32], strides = [1, 1]} : vector<128x32xf32> to vector<16x32xf32>
    %94 = arith.addf %92, %93 : vector<16x32xf32>
    %95 = vector.extract_strided_slice %81 {offsets = [112, 0], sizes = [16, 32], strides = [1, 1]} : vector<128x32xf32> to vector<16x32xf32>
    %96 = arith.addf %94, %95 : vector<16x32xf32>
    %c0_45 = arith.constant 0 : index
    %c0_46 = arith.constant 0 : index
    %97 = vector.load %arg14[%c0_45, %c0_46] : memref<32x32xf32, #tpu.memory_space<vmem>>, vector<32x32xf32>
    %cst_47 = arith.constant dense<0.000000e+00> : vector<16x32xf32>
    %98 = tpu.matmul %96, %97, %cst_47 {dimension_numbers = #tpu.dot_dimension_numbers<[1], [0], [0], [1], [0, 0, 1, 1], [], []>} : vector<16x32xf32>, vector<32x32xf32>, vector<16x32xf32> -> vector<16x32xf32>
    %c0_48 = arith.constant 0 : index
    %c0_49 = arith.constant 0 : index
    %99 = vector.load %arg15[%c0_48, %c0_49] : memref<1x32xf32, #tpu.memory_space<vmem>>, vector<1x32xf32>
    %100 = vector.broadcast %99 : vector<1x32xf32> to vector<16x32xf32>
    %101 = arith.addf %98, %100 : vector<16x32xf32>
    %102 = arith.addf %6, %101 : vector<16x32xf32>
    %cst_50 = arith.constant dense<0.000000e+00> : vector<16xf32>
    %103 = vector.multi_reduction <add>, %102, %cst_50 [1] : vector<16x32xf32> to vector<16xf32>
    %104 = vector.shape_cast %103 : vector<16xf32> to vector<16x1xf32>
    %cst_51 = arith.constant 3.200000e+01 : f32
    %105 = vector.broadcast %cst_51 : f32 to vector<16x1xf32>
    %106 = arith.divf %104, %105 : vector<16x1xf32>
    %107 = vector.broadcast %106 : vector<16x1xf32> to vector<16x32xf32>
    %108 = arith.subf %102, %107 : vector<16x32xf32>
    %109 = arith.mulf %108, %108 : vector<16x32xf32>
    %cst_52 = arith.constant dense<0.000000e+00> : vector<16xf32>
    %110 = vector.multi_reduction <add>, %109, %cst_52 [1] : vector<16x32xf32> to vector<16xf32>
    %111 = vector.shape_cast %110 : vector<16xf32> to vector<16x1xf32>
    %cst_53 = arith.constant 3.200000e+01 : f32
    %112 = vector.broadcast %cst_53 : f32 to vector<16x1xf32>
    %113 = arith.divf %111, %112 : vector<16x1xf32>
    %114 = vector.broadcast %106 : vector<16x1xf32> to vector<16x32xf32>
    %115 = arith.subf %102, %114 : vector<16x32xf32>
    %cst_54 = arith.constant 9.99999974E-6 : f32
    %116 = vector.broadcast %cst_54 : f32 to vector<16x1xf32>
    %117 = arith.addf %113, %116 : vector<16x1xf32>
    %118 = math.rsqrt %117 : vector<16x1xf32>
    %119 = vector.broadcast %118 : vector<16x1xf32> to vector<16x32xf32>
    %120 = arith.mulf %115, %119 : vector<16x32xf32>
    %c0_55 = arith.constant 0 : index
    %c0_56 = arith.constant 0 : index
    %121 = vector.load %arg16[%c0_55, %c0_56] : memref<1x32xf32, #tpu.memory_space<vmem>>, vector<1x32xf32>
    %122 = vector.broadcast %121 : vector<1x32xf32> to vector<16x32xf32>
    %123 = arith.mulf %120, %122 : vector<16x32xf32>
    %c0_57 = arith.constant 0 : index
    %c0_58 = arith.constant 0 : index
    %124 = vector.load %arg17[%c0_57, %c0_58] : memref<1x32xf32, #tpu.memory_space<vmem>>, vector<1x32xf32>
    %125 = vector.broadcast %124 : vector<1x32xf32> to vector<16x32xf32>
    %126 = arith.addf %123, %125 : vector<16x32xf32>
    %127 = arith.truncf %126 : vector<16x32xf32> to vector<16x32xbf16>
    %c0_59 = arith.constant 0 : index
    %c0_60 = arith.constant 0 : index
    %128 = vector.load %arg18[%c0_59, %c0_60] : memref<32x2048xbf16, #tpu.memory_space<vmem>>, vector<32x2048xbf16>
    %cst_61 = arith.constant dense<0.000000e+00> : vector<16x2048xf32>
    %129 = tpu.matmul %127, %128, %cst_61 {dimension_numbers = #tpu.dot_dimension_numbers<[1], [0], [0], [1], [0, 0, 1, 1], [], []>} : vector<16x32xbf16>, vector<32x2048xbf16>, vector<16x2048xf32> -> vector<16x2048xf32>
    %c0_62 = arith.constant 0 : index
    %c0_63 = arith.constant 0 : index
    %130 = vector.load %arg19[%c0_62, %c0_63] : memref<1x2048xf32, #tpu.memory_space<vmem>>, vector<1x2048xf32>
    %131 = vector.broadcast %130 : vector<1x2048xf32> to vector<16x2048xf32>
    %132 = arith.addf %129, %131 : vector<16x2048xf32>
    %cst_64 = arith.constant 0.000000e+00 : f32
    %133 = vector.broadcast %cst_64 : f32 to vector<16x2048xf32>
    %134 = arith.cmpf oge, %132, %133 : vector<16x2048xf32>
    %cst_65 = arith.constant 0.00999999977 : f32
    %135 = vector.broadcast %cst_65 : f32 to vector<16x2048xf32>
    %136 = arith.mulf %135, %132 : vector<16x2048xf32>
    %137 = arith.select %134, %132, %136 : vector<16x2048xi1>, vector<16x2048xf32>
    %138 = arith.truncf %137 : vector<16x2048xf32> to vector<16x2048xbf16>
    %c0_66 = arith.constant 0 : index
    %c0_67 = arith.constant 0 : index
    %139 = vector.load %arg20[%c0_66, %c0_67] : memref<2048x32xbf16, #tpu.memory_space<vmem>>, vector<2048x32xbf16>
    %cst_68 = arith.constant dense<0.000000e+00> : vector<16x32xf32>
    %140 = tpu.matmul %138, %139, %cst_68 {dimension_numbers = #tpu.dot_dimension_numbers<[1], [0], [0], [1], [0, 0, 1, 1], [], []>} : vector<16x2048xbf16>, vector<2048x32xbf16>, vector<16x32xf32> -> vector<16x32xf32>
    %c0_69 = arith.constant 0 : index
    %c0_70 = arith.constant 0 : index
    %141 = vector.load %arg21[%c0_69, %c0_70] : memref<1x32xf32, #tpu.memory_space<vmem>>, vector<1x32xf32>
    %142 = vector.broadcast %141 : vector<1x32xf32> to vector<16x32xf32>
    %143 = arith.addf %140, %142 : vector<16x32xf32>
    %144 = arith.addf %126, %143 : vector<16x32xf32>
    %145 = vector.extract_strided_slice %1 {offsets = [0, 0], sizes = [1, 32], strides = [1, 1]} : vector<32x32xf32> to vector<1x32xf32>
    %146 = vector.extract_strided_slice %144 {offsets = [0, 0], sizes = [8, 32], strides = [1, 1]} : vector<16x32xf32> to vector<8x32xf32>
    %147 = vector.extract_strided_slice %1 {offsets = [9, 0], sizes = [7, 32], strides = [1, 1]} : vector<32x32xf32> to vector<7x32xf32>
    %148 = vector.extract_strided_slice %1 {offsets = [16, 0], sizes = [1, 32], strides = [1, 1]} : vector<32x32xf32> to vector<1x32xf32>
    %149 = vector.extract_strided_slice %144 {offsets = [8, 0], sizes = [8, 32], strides = [1, 1]} : vector<16x32xf32> to vector<8x32xf32>
    %150 = vector.extract_strided_slice %1 {offsets = [25, 0], sizes = [7, 32], strides = [1, 1]} : vector<32x32xf32> to vector<7x32xf32>
    %151 = tpu.concatenate %145, %146, %147, %148, %149, %150 in 0 : vector<1x32xf32>, vector<8x32xf32>, vector<7x32xf32>, vector<1x32xf32>, vector<8x32xf32>, vector<7x32xf32> -> vector<32x32xf32>
    %c0_71 = arith.constant 0 : index
    %c0_72 = arith.constant 0 : index
    %152 = vector.load %arg22[%c0_71, %c0_72] : memref<32x32xf32, #tpu.memory_space<vmem>>, vector<32x32xf32>
    tpu.vector_store %arg22[%c0_71, %c0_72], %151 {strides = array<i32>} : memref<32x32xf32, #tpu.memory_space<vmem>>, vector<32x32xf32>,
    return
  }
  func.func @transform_0(%arg0: i32) -> (i32, i32) {
    %c0_i32 = arith.constant 0 : i32
    %c0_i32_0 = arith.constant 0 : i32
    %c0_i32_1 = arith.constant 0 : i32
    return %c0_i32, %c0_i32_0 : i32, i32
  }
  func.func @transform_1(%arg0: i32) -> (i32, i32) {
    %c0_i32 = arith.constant 0 : i32
    %c0_i32_0 = arith.constant 0 : i32
    %c0_i32_1 = arith.constant 0 : i32
    return %c0_i32, %c0_i32_0 : i32, i32
  }
  func.func @transform_2(%arg0: i32) -> (i32, i32) {
    %c0_i32 = arith.constant 0 : i32
    %c0_i32_0 = arith.constant 0 : i32
    %c0_i32_1 = arith.constant 0 : i32
    return %c0_i32, %c0_i32_0 : i32, i32
  }
  func.func @transform_3(%arg0: i32) -> (i32, i32) {
    %c0_i32 = arith.constant 0 : i32
    %c0_i32_0 = arith.constant 0 : i32
    %c0_i32_1 = arith.constant 0 : i32
    return %c0_i32, %c0_i32_0 : i32, i32
  }
  func.func @transform_4(%arg0: i32) -> (i32, i32) {
    %c0_i32 = arith.constant 0 : i32
    %c0_i32_0 = arith.constant 0 : i32
    %c0_i32_1 = arith.constant 0 : i32
    return %c0_i32, %c0_i32_0 : i32, i32
  }
  func.func @transform_5(%arg0: i32) -> (i32, i32) {
    %c0_i32 = arith.constant 0 : i32
    %c0_i32_0 = arith.constant 0 : i32
    %c0_i32_1 = arith.constant 0 : i32
    return %c0_i32, %c0_i32_0 : i32, i32
  }
  func.func @transform_6(%arg0: i32) -> (i32, i32) {
    %c0_i32 = arith.constant 0 : i32
    %c0_i32_0 = arith.constant 0 : i32
    %c0_i32_1 = arith.constant 0 : i32
    return %c0_i32, %c0_i32_0 : i32, i32
  }
  func.func @transform_7(%arg0: i32) -> (i32, i32) {
    %c0_i32 = arith.constant 0 : i32
    %c0_i32_0 = arith.constant 0 : i32
    %c0_i32_1 = arith.constant 0 : i32
    return %c0_i32, %c0_i32_0 : i32, i32
  }
  func.func @transform_8(%arg0: i32) -> (i32, i32) {
    %c0_i32 = arith.constant 0 : i32
    %c0_i32_0 = arith.constant 0 : i32
    %c0_i32_1 = arith.constant 0 : i32
    return %c0_i32, %c0_i32_0 : i32, i32
  }
  func.func @transform_9(%arg0: i32) -> (i32, i32) {
    %c0_i32 = arith.constant 0 : i32
    %c0_i32_0 = arith.constant 0 : i32
    %c0_i32_1 = arith.constant 0 : i32
    return %c0_i32, %c0_i32_0 : i32, i32
  }
  func.func @transform_10(%arg0: i32) -> (i32, i32) {
    %c0_i32 = arith.constant 0 : i32
    %c0_i32_0 = arith.constant 0 : i32
    %c0_i32_1 = arith.constant 0 : i32
    return %c0_i32, %c0_i32_0 : i32, i32
  }
  func.func @transform_11(%arg0: i32) -> (i32, i32) {
    %c0_i32 = arith.constant 0 : i32
    %c0_i32_0 = arith.constant 0 : i32
    %c0_i32_1 = arith.constant 0 : i32
    return %c0_i32, %c0_i32_0 : i32, i32
  }
  func.func @transform_12(%arg0: i32) -> (i32, i32) {
    %c0_i32 = arith.constant 0 : i32
    %c0_i32_0 = arith.constant 0 : i32
    %c0_i32_1 = arith.constant 0 : i32
    return %c0_i32, %c0_i32_0 : i32, i32
  }
  func.func @transform_13(%arg0: i32) -> (i32, i32) {
    %c0_i32 = arith.constant 0 : i32
    %c0_i32_0 = arith.constant 0 : i32
    %c0_i32_1 = arith.constant 0 : i32
    return %c0_i32, %c0_i32_0 : i32, i32
  }
  func.func @transform_14(%arg0: i32) -> (i32, i32) {
    %c0_i32 = arith.constant 0 : i32
    %c0_i32_0 = arith.constant 0 : i32
    %c0_i32_1 = arith.constant 0 : i32
    return %c0_i32, %c0_i32_0 : i32, i32
  }
  func.func @transform_15(%arg0: i32) -> (i32, i32) {
    %c0_i32 = arith.constant 0 : i32
    %c0_i32_0 = arith.constant 0 : i32
    %c0_i32_1 = arith.constant 0 : i32
    return %c0_i32, %c0_i32_0 : i32, i32
  }
  func.func @transform_16(%arg0: i32) -> (i32, i32) {
    %c0_i32 = arith.constant 0 : i32
    %c0_i32_0 = arith.constant 0 : i32
    %c0_i32_1 = arith.constant 0 : i32
    return %c0_i32, %c0_i32_0 : i32, i32
  }
  func.func @transform_17(%arg0: i32) -> (i32, i32) {
    %c0_i32 = arith.constant 0 : i32
    %c0_i32_0 = arith.constant 0 : i32
    %c0_i32_1 = arith.constant 0 : i32
    return %c0_i32, %c0_i32_0 : i32, i32
  }
  func.func @transform_18(%arg0: i32) -> (i32, i32) {
    %c0_i32 = arith.constant 0 : i32
    %c0_i32_0 = arith.constant 0 : i32
    %c0_i32_1 = arith.constant 0 : i32
    return %c0_i32, %c0_i32_0 : i32, i32
  }
  func.func @transform_19(%arg0: i32) -> (i32, i32) {
    %c0_i32 = arith.constant 0 : i32
    %c0_i32_0 = arith.constant 0 : i32
    %c0_i32_1 = arith.constant 0 : i32
    return %c0_i32, %c0_i32_0 : i32, i32
  }
  func.func @transform_20(%arg0: i32) -> (i32, i32) {
    %c0_i32 = arith.constant 0 : i32
    %c0_i32_0 = arith.constant 0 : i32
    %c0_i32_1 = arith.constant 0 : i32
    return %c0_i32, %c0_i32_0 : i32, i32
  }
  func.func @transform_21(%arg0: i32) -> (i32, i32) {
    %c0_i32 = arith.constant 0 : i32
    %c0_i32_0 = arith.constant 0 : i32
    %c0_i32_1 = arith.constant 0 : i32
    return %c0_i32, %c0_i32_0 : i32, i32
  }
}

</mosaic_0001>

<llo_original>
// kernel: mul.5
$region0: #{mul.5}
  %s0 = inlined_call_operand.vmem [shape: f32[2,16], index: 0, kind: input, shape index: {}]
  %s1 = inlined_call_operand.vmem [shape: f32[32], index: 1, kind: output, shape index: {}]
  $region1: #{mul.5} parent=0
    #allocation0 [shape = 'u8[4096]{0}', space=vmem, size = 0x1000, scoped, tag = 'scoped mem for output reshape']
    #allocation1 [shape = 'u8[4096]{0}', space=vmem, size = 0x1000, scoped, tag = 'scoped mem for input reshape']
    %s3 = sshllo.u32 0, 2
    %v4 = vld [vmem:[%s0] sm:%s3]
    %5 = vst [vmem:[#allocation1] sm:%s3] %v4
    %v6 = vld [vmem:[#allocation1] sm:$0x1]
    %vm7 = vcmask 130048
    %8 = vst.msk [vmem:[#allocation0] sm:$0x1] %vm7, %v6
    %s9 = scalar_lea.vmem [#allocation1], 1
    %v10 = vld [vmem:[%s9] sm:$0x1]
    %11 = vrot.lane.b32.xlu0 %v10, 16
    %v12 = vpop.permute.xlu0 %11
    %vm13 = vcmask 261248
    %14 = vst.msk [vmem:[#allocation0] sm:$0x1] %vm13, %v12
    %s16 = sshllo.u32 0, 1
    %v18 = vld [vmem:[#allocation0] sm:%s16]
    %s19 = sshllo.u32 0, 1
    %20 = vst [vmem:[%s1] sm:%s19] %v18

// kernel: multimodal_forward.1
$region0: #{multimodal_forward.1}
  #allocation0 [shape = 'u32[]', space=smem, size = 0x4, offset = 0x4, fixed_abs, tag = 'smem constant byte address 0x4 - core index']
  #allocation1 [shape = 'u32[144,128]{1,0:T(1,128)}', space=vmem, size = 0x12000, scoped, tag = 'internal scratch']
  %s0 = inlined_call_operand.vmem [shape: f32[16,48], index: 0, kind: input, shape index: {}]
  %s1 = inlined_call_operand.vmem [shape: f32[32,32], index: 1, kind: input, shape index: {}]
  %s2 = inlined_call_operand.vmem [shape: f32[32,16], index: 2, kind: input, shape index: {}]
  %s3 = inlined_call_operand.vmem [shape: f32[16,16], index: 3, kind: input, shape index: {}]
  %s4 = inlined_call_operand.vmem [shape: f32[128,32], index: 4, kind: input, shape index: {}]
  %s5 = inlined_call_operand.vmem [shape: f32[48,32], index: 5, kind: input, shape index: {}]
  %s6 = inlined_call_operand.vmem [shape: f32[1,32], index: 6, kind: input, shape index: {}]
  %s7 = inlined_call_operand.vmem [shape: f32[32,32], index: 7, kind: input, shape index: {}]
  %s8 = inlined_call_operand.vmem [shape: f32[1,32], index: 8, kind: input, shape index: {}]
  %s9 = inlined_call_operand.vmem [shape: f32[32,32], index: 9, kind: input, shape index: {}]
  %s10 = inlined_call_operand.vmem [shape: f32[1,32], index: 10, kind: input, shape index: {}]
  %s11 = inlined_call_operand.vmem [shape: f32[32,32], index: 11, kind: input, shape index: {}]
  %s12 = inlined_call_operand.vmem [shape: f32[1,32], index: 12, kind: input, shape index: {}]
  %s13 = inlined_call_operand.vmem [shape: f32[32,32], index: 13, kind: input, shape index: {}]
  %s14 = inlined_call_operand.vmem [shape: f32[1,32], index: 14, kind: input, shape index: {}]
  %s15 = inlined_call_operand.vmem [shape: f32[1,32], index: 15, kind: input, shape index: {}]
  %s16 = inlined_call_operand.vmem [shape: f32[1,32], index: 16, kind: input, shape index: {}]
  %s17 = inlined_call_operand.vmem [shape: bf16[32,2048], index: 17, kind: input, shape index: {}]
  %s18 = inlined_call_operand.vmem [shape: f32[1,2048], index: 18, kind: input, shape index: {}]
  %s19 = inlined_call_operand.vmem [shape: bf16[2048,32], index: 19, kind: input, shape index: {}]
  %s20 = inlined_call_operand.vmem [shape: f32[1,32], index: 20, kind: input, shape index: {}]
  %s21 = inlined_call_operand.hbm [shape: f32[32,32], index: 21, kind: output, shape index: {}]
  %s22 = sld [smem:[#allocation0]]
  $region94: #{multimodal_forward.1} parent=0
    _
  %s24 = ssub.s32 1, %s22
  %s25 = scalar_select 0, %s24, %s22
  $region1: #{multimodal_forward.1} parent=0
    #allocation2 [shape = 'u8[16384]{0}', space=vmem, size = 0x4000, scoped, tag = 'output window, operand 0, single buffered']
    #allocation3 [shape = 's32[1]{0}', space=sflag, size = 0x4, scoped, tag = 'scoped memory for multimodal_forward.1']
    %26 = vsyncpa [#allocation3], 0
    // Predicated region
    $region2: #{multimodal_forward.1} parent=1 // pred_check
      _
    $region3: #{multimodal_forward.1} parent=1 // pred_check_branch
      %28 = sbr.rel (0) target = $region5
    $region4: #{multimodal_forward.1} parent=1 // pred_region
      _
    $region5: #{multimodal_forward.1} parent=1 // pred_fallthru
      _
    // Predicated region
    $region6: #{multimodal_forward.1} parent=1 // pred_check
      _
    $region7: #{multimodal_forward.1} parent=1 // pred_check_branch
      %30 = sbr.rel (0) target = $region9
    $region8: #{multimodal_forward.1} parent=1 // pred_region
      _
    $region9: #{multimodal_forward.1} parent=1 // pred_fallthru
      _
    // Predicated region
    $region10: #{multimodal_forward.1} parent=1 // pred_check
      _
    $region11: #{multimodal_forward.1} parent=1 // pred_check_branch
      %32 = sbr.rel (0) target = $region13
    $region12: #{multimodal_forward.1} parent=1 // pred_region
      _
    $region13: #{multimodal_forward.1} parent=1 // pred_fallthru
      _
    // Predicated region
    $region14: #{multimodal_forward.1} parent=1 // pred_check
      _
    $region15: #{multimodal_forward.1} parent=1 // pred_check_branch
      %34 = sbr.rel (0) target = $region17
    $region16: #{multimodal_forward.1} parent=1 // pred_region
      _
    $region17: #{multimodal_forward.1} parent=1 // pred_fallthru
      _
    // Predicated region
    $region18: #{multimodal_forward.1} parent=1 // pred_check
      _
    $region19: #{multimodal_forward.1} parent=1 // pred_check_branch
      %36 = sbr.rel (0) target = $region21
    $region20: #{multimodal_forward.1} parent=1 // pred_region
      _
    $region21: #{multimodal_forward.1} parent=1 // pred_fallthru
      _
    // Predicated region
    $region22: #{multimodal_forward.1} parent=1 // pred_check
      _
    $region23: #{multimodal_forward.1} parent=1 // pred_check_branch
      %38 = sbr.rel (0) target = $region25
    $region24: #{multimodal_forward.1} parent=1 // pred_region
      _
    $region25: #{multimodal_forward.1} parent=1 // pred_fallthru
      _
    // Predicated region
    $region26: #{multimodal_forward.1} parent=1 // pred_check
      _
    $region27: #{multimodal_forward.1} parent=1 // pred_check_branch
      %40 = sbr.rel (0) target = $region29
    $region28: #{multimodal_forward.1} parent=1 // pred_region
      _
    $region29: #{multimodal_forward.1} parent=1 // pred_fallthru
      _
    // Predicated region
    $region30: #{multimodal_forward.1} parent=1 // pred_check
      _
    $region31: #{multimodal_forward.1} parent=1 // pred_check_branch
      %42 = sbr.rel (0) target = $region33
    $region32: #{multimodal_forward.1} parent=1 // pred_region
      _
    $region33: #{multimodal_forward.1} parent=1 // pred_fallthru
      _
    // Predicated region
    $region34: #{multimodal_forward.1} parent=1 // pred_check
      _
    $region35: #{multimodal_forward.1} parent=1 // pred_check_branch
      %44 = sbr.rel (0) target = $region37
    $region36: #{multimodal_forward.1} parent=1 // pred_region
      _
    $region37: #{multimodal_forward.1} parent=1 // pred_fallthru
      _
    // Predicated region
    $region38: #{multimodal_forward.1} parent=1 // pred_check
      _
    $region39: #{multimodal_forward.1} parent=1 // pred_check_branch
      %46 = sbr.rel (0) target = $region41
    $region40: #{multimodal_forward.1} parent=1 // pred_region
      _
    $region41: #{multimodal_forward.1} parent=1 // pred_fallthru
      _
    // Predicated region
    $region42: #{multimodal_forward.1} parent=1 // pred_check
      _
    $region43: #{multimodal_forward.1} parent=1 // pred_check_branch
      %48 = sbr.rel (0) target = $region45
    $region44: #{multimodal_forward.1} parent=1 // pred_region
      _
    $region45: #{multimodal_forward.1} parent=1 // pred_fallthru
      _
    // Predicated region
    $region46: #{multimodal_forward.1} parent=1 // pred_check
      _
    $region47: #{multimodal_forward.1} parent=1 // pred_check_branch
      %50 = sbr.rel (0) target = $region49
    $region48: #{multimodal_forward.1} parent=1 // pred_region
      _
    $region49: #{multimodal_forward.1} parent=1 // pred_fallthru
      _
    // Predicated region
    $region50: #{multimodal_forward.1} parent=1 // pred_check
      _
    $region51: #{multimodal_forward.1} parent=1 // pred_check_branch
      %52 = sbr.rel (0) target = $region53
    $region52: #{multimodal_forward.1} parent=1 // pred_region
      _
    $region53: #{multimodal_forward.1} parent=1 // pred_fallthru
      _
    // Predicated region
    $region54: #{multimodal_forward.1} parent=1 // pred_check
      _
    $region55: #{multimodal_forward.1} parent=1 // pred_check_branch
      %54 = sbr.rel (0) target = $region57
    $region56: #{multimodal_forward.1} parent=1 // pred_region
      _
    $region57: #{multimodal_forward.1} parent=1 // pred_fallthru
      _
    // Predicated region
    $region58: #{multimodal_forward.1} parent=1 // pred_check
      _
    $region59: #{multimodal_forward.1} parent=1 // pred_check_branch
      %56 = sbr.rel (0) target = $region61
    $region60: #{multimodal_forward.1} parent=1 // pred_region
      _
    $region61: #{multimodal_forward.1} parent=1 // pred_fallthru
      _
    // Predicated region
    $region62: #{multimodal_forward.1} parent=1 // pred_check
      _
    $region63: #{multimodal_forward.1} parent=1 // pred_check_branch
      %58 = sbr.rel (0) target = $region65
    $region64: #{multimodal_forward.1} parent=1 // pred_region
      _
    $region65: #{multimodal_forward.1} parent=1 // pred_fallthru
      _
    // Predicated region
    $region66: #{multimodal_forward.1} parent=1 // pred_check
      _
    $region67: #{multimodal_forward.1} parent=1 // pred_check_branch
      %60 = sbr.rel (0) target = $region69
    $region68: #{multimodal_forward.1} parent=1 // pred_region
      _
    $region69: #{multimodal_forward.1} parent=1 // pred_fallthru
      _
    // Predicated region
    $region70: #{multimodal_forward.1} parent=1 // pred_check
      _
    $region71: #{multimodal_forward.1} parent=1 // pred_check_branch
      %62 = sbr.rel (0) target = $region73
    $region72: #{multimodal_forward.1} parent=1 // pred_region
      _
    $region73: #{multimodal_forward.1} parent=1 // pred_fallthru
      _
    // Predicated region
    $region74: #{multimodal_forward.1} parent=1 // pred_check
      _
    $region75: #{multimodal_forward.1} parent=1 // pred_check_branch
      %64 = sbr.rel (0) target = $region77
    $region76: #{multimodal_forward.1} parent=1 // pred_region
      _
    $region77: #{multimodal_forward.1} parent=1 // pred_fallthru
      _
    // Predicated region
    $region78: #{multimodal_forward.1} parent=1 // pred_check
      _
    $region79: #{multimodal_forward.1} parent=1 // pred_check_branch
      %66 = sbr.rel (0) target = $region81
    $region80: #{multimodal_forward.1} parent=1 // pred_region
      _
    $region81: #{multimodal_forward.1} parent=1 // pred_fallthru
      _
    // Predicated region
    $region82: #{multimodal_forward.1} parent=1 // pred_check
      _
    $region83: #{multimodal_forward.1} parent=1 // pred_check_branch
      %68 = sbr.rel (0) target = $region85
    $region84: #{multimodal_forward.1} parent=1 // pred_region
      _
    $region85: #{multimodal_forward.1} parent=1 // pred_fallthru
      _
    %v70 = vld [vmem:[%s0] sm:$0xff]
    %v71 = vld [vmem:[%s0 + $0x8] sm:$0xff]
    %v72 = vld [vmem:[%s1] sm:$0xff]
    %v73 = vld [vmem:[%s1 + $0x8] sm:$0xff]
    %v74 = vld [vmem:[%s1 + $0x10] sm:$0xff]
    %v75 = vld [vmem:[%s1 + $0x18] sm:$0xff]
    %v76 = vld [vmem:[%s5] sm:$0xff]
    %v77 = vld [vmem:[%s5 + $0x8] sm:$0xff]
    %v78 = vld [vmem:[%s5 + $0x10] sm:$0xff]
    %v79 = vld [vmem:[%s5 + $0x18] sm:$0xff]
    %v80 = vld [vmem:[%s5 + $0x20] sm:$0xff]
    %v81 = vld [vmem:[%s5 + $0x28] sm:$0xff]
    %v82 = vld [vmem:[%s6] sm:$0x1]
    %v84 = vlaneseq
    %v85 = vshrl.u32 %v84, 7
    %v86 = vsub.s32 0, %v85
    %v87 = vrot.slane %v82, %v86
    %vm89 = vcmask 392192
    %v91 = vsel %vm89, %v70, 0
    %v94 = vsel %vm89, %v71, 0
    %96 = vmatprep.subr.mxu0 0.0
    %97 = vmatpush1.msra.mxu0 %v76
    %98 = vmatprep.subr.mxu0 0.0
    %99 = vmatpush1.msra.mxu0 %v77
    %100 = vmatprep.subr.mxu0 0.0
    %101 = vmatpush1.msra.mxu0 %v78
    %102 = vmatprep.subr.mxu0 0.0
    %103 = vmatpush1.msra.mxu0 %v79
    %104 = vmatprep.subr.mxu0 0.0
    %105 = vmatpush1.msra.mxu0 %v80
    %106 = vmatprep.subr.mxu0 0.0
    %107 = vmatpush1.msra.mxu0 %v81
    %108 = vmatprep.subr.mxu0 0.0
    %109 = vmatpush1.msra.mxu0 0.0
    %110 = vmatprep.subr.mxu0 0.0
    %111 = vmatpush1.msra.mxu0 0.0
    %112 = vmatprep.subr.mxu0 0.0
    %113 = vmatpush1.msra.mxu0 0.0
    %114 = vmatprep.subr.mxu0 0.0
    %115 = vmatpush1.msra.mxu0 0.0
    %116 = vmatprep.subr.mxu0 0.0
    %117 = vmatpush1.msra.mxu0 0.0
    %118 = vmatprep.subr.mxu0 0.0
    %119 = vmatpush1.msra.mxu0 0.0
    %120 = vmatprep.subr.mxu0 0.0
    %121 = vmatpush1.msra.mxu0 0.0
    %122 = vmatprep.subr.mxu0 0.0
    %123 = vmatpush1.msra.mxu0 0.0
    %124 = vmatprep.subr.mxu0 0.0
    %125 = vmatpush1.msra.mxu0 0.0
    %126 = vmatprep.subr.mxu0 0.0
    %127 = vmatpush1.msra.mxu0 0.0
    %128 = vmatprep.subr.mxu0 0.0
    %129 = vmatpush1.msra.mxu0 0.0
    %130 = vmatprep.subr.mxu0 0.0
    %131 = vmatpush1.msra.mxu0 0.0
    %132 = vmatprep.subr.mxu0 0.0
    %133 = vmatpush1.msra.mxu0 0.0
    %134 = vmatprep.subr.mxu0 0.0
    %135 = vmatpush1.msra.mxu0 0.0
    %136 = vmatprep.subr.mxu0 0.0
    %137 = vmatpush1.msra.mxu0 0.0
    %138 = vmatprep.subr.mxu0 0.0
    %139 = vmatpush1.msra.mxu0 0.0
    %140 = vmatprep.subr.mxu0 0.0
    %141 = vmatpush1.msra.mxu0 0.0
    %142 = vmatprep.subr.mxu0 0.0
    %143 = vmatpush1.msra.mxu0 0.0
    %144 = vmatprep.subr.mxu0 0.0
    %145 = vmatpush1.msra.mxu0 0.0
    %146 = vmatprep.subr.mxu0 0.0
    %147 = vmatpush1.msra.mxu0 0.0
    %148 = vmatprep.subr.mxu0 0.0
    %149 = vmatpush1.msra.mxu0 0.0
    %150 = vmatprep.subr.mxu0 0.0
    %151 = vmatpush1.msra.mxu0 0.0
    %152 = vmatprep.subr.mxu0 0.0
    %153 = vmatpush1.msra.mxu0 0.0
    %154 = vmatprep.subr.mxu0 0.0
    %155 = vmatpush1.msra.mxu0 0.0
    %156 = vmatprep.subr.mxu0 0.0
    %157 = vmatpush1.msra.mxu0 0.0
    %158 = vmatprep.subr.mxu0 0.0
    %159 = vmatpush1.msra.mxu0 0.0
    %160 = vmatprep.mubr.f32.mxu0 0.0
    %161 = vmatmul.mubr.f32.gmra.mrb[0].mxu0 %v91
    %v162 = vpop.f32.mrb[0].mxu0
    %v163 = vadd.f32 %v87, %v162
    %v164 = vpop.f32.mrb[0].mxu0
    %165 = vmatprep.mubr.f32.mxu0 0.0
    %166 = vmatmul.mubr.f32.gmra.mrb[0].mxu0 %v94
    %v167 = vpop.f32.mrb[0].mxu0
    %v168 = vadd.f32 %v87, %v167
    %v169 = vpop.f32.mrb[0].mxu0
    %170 = vdwg.mxu0
    %v171 = vmul.f32 %v72, %v72
    %v172 = vmul.f32 %v73, %v73
    %v173 = vmul.f32 %v74, %v74
    %v174 = vmul.f32 %v75, %v75
    %vm175 = vcmask 261120
    %v176 = vsel %vm175, %v171, 0.0
    %177 = vadd.xlane.f32.xlu0 %v176
    %v178 = vpop.xlane.xlu0 %177
    %v179 = vsel %vm175, %v172, 0.0
    %180 = vadd.xlane.f32.xlu0 %v179
    %v181 = vpop.xlane.xlu0 %180
    %v182 = vsel %vm175, %v173, 0.0
    %183 = vadd.xlane.f32.xlu0 %v182
    %v184 = vpop.xlane.xlu0 %183
    %v185 = vsel %vm175, %v174, 0.0
    %186 = vadd.xlane.f32.xlu0 %v185
    %v187 = vpop.xlane.xlu0 %186
    %v188 = vmax.f32 %v178, 1e-16
    %v189 = vmax.f32 %v181, 1e-16
    %v190 = vmax.f32 %v184, 1e-16
    %v191 = vmax.f32 %v187, 1e-16
    %v192 = vrsqrt.pop %v188
    %v193 = vrsqrt.pop %v189
    %v194 = vrsqrt.pop %v190
    %v195 = vrsqrt.pop %v191
    %v196 = vmul.f32 %v163, %v163
    %v197 = vmul.f32 %v168, %v168
    %v198 = vsel %vm175, %v196, 0.0
    %199 = vadd.xlane.f32.xlu0 %v198
    %v200 = vpop.xlane.xlu0 %199
    %v201 = vsel %vm175, %v197, 0.0
    %202 = vadd.xlane.f32.xlu0 %v201
    %v203 = vpop.xlane.xlu0 %202
    %v204 = vmax.f32 %v200, 1e-16
    %v205 = vmax.f32 %v203, 1e-16
    %v206 = vrsqrt.pop %v204
    %v207 = vrsqrt.pop %v205
    %v208 = vmul.f32 %v72, %v192
    %v209 = vmul.f32 %v73, %v193
    %v210 = vmul.f32 %v74, %v194
    %v211 = vmul.f32 %v75, %v195
    %v212 = vmul.f32 %v163, %v206
    %v213 = vmul.f32 %v168, %v207
    %v215 = vsel %vm175, %v208, 0
    %v218 = vsel %vm175, %v209, 0
    %v221 = vsel %vm175, %v210, 0
    %v224 = vsel %vm175, %v211, 0
    %v227 = vsel %vm175, %v212, 0
    %v230 = vsel %vm175, %v213, 0
    %232 = vmatprep.subr.mxu0 0.0
    %233 = vmatpush1.xpose.msra.mxu0 %v227
    %234 = vmatprep.subr.mxu0 0.0
    %235 = vmatpush1.xpose.msra.mxu0 %v230
    %236 = vmatprep.subr.mxu0 0.0
    %237 = vmatpush1.xpose.msra.mxu0 0.0
    %238 = vmatprep.subr.mxu0 0.0
    %239 = vmatpush1.xpose.msra.mxu0 0.0
    %240 = vmatprep.subr.mxu0 0.0
    %241 = vmatpush1.xpose.msra.mxu0 0.0
    %242 = vmatprep.subr.mxu0 0.0
    %243 = vmatpush1.xpose.msra.mxu0 0.0
    %244 = vmatprep.subr.mxu0 0.0
    %245 = vmatpush1.xpose.msra.mxu0 0.0
    %246 = vmatprep.subr.mxu0 0.0
    %247 = vmatpush1.xpose.msra.mxu0 0.0
    %248 = vmatprep.subr.mxu0 0.0
    %249 = vmatpush1.xpose.msra.mxu0 0.0
    %250 = vmatprep.subr.mxu0 0.0
    %251 = vmatpush1.xpose.msra.mxu0 0.0
    %252 = vmatprep.subr.mxu0 0.0
    %253 = vmatpush1.xpose.msra.mxu0 0.0
    %254 = vmatprep.subr.mxu0 0.0
    %255 = vmatpush1.xpose.msra.mxu0 0.0
    %256 = vmatprep.subr.mxu0 0.0
    %257 = vmatpush1.xpose.msra.mxu0 0.0
    %258 = vmatprep.subr.mxu0 0.0
    %259 = vmatpush1.xpose.msra.mxu0 0.0
    %260 = vmatprep.subr.mxu0 0.0
    %261 = vmatpush1.xpose.msra.mxu0 0.0
    %262 = vmatprep.subr.mxu0 0.0
    %263 = vmatpush1.xpose.msra.mxu0 0.0
    %264 = vmatprep.subr.mxu0 0.0
    %265 = vmatpush1.xpose.msra.mxu0 0.0
    %266 = vmatprep.subr.mxu0 0.0
    %267 = vmatpush1.xpose.msra.mxu0 0.0
    %268 = vmatprep.subr.mxu0 0.0
    %269 = vmatpush1.xpose.msra.mxu0 0.0
    %270 = vmatprep.subr.mxu0 0.0
    %271 = vmatpush1.xpose.msra.mxu0 0.0
    %272 = vmatprep.subr.mxu0 0.0
    %273 = vmatpush1.xpose.msra.mxu0 0.0
    %274 = vmatprep.subr.mxu0 0.0
    %275 = vmatpush1.xpose.msra.mxu0 0.0
    %276 = vmatprep.subr.mxu0 0.0
    %277 = vmatpush1.xpose.msra.mxu0 0.0
    %278 = vmatprep.subr.mxu0 0.0
    %279 = vmatpush1.xpose.msra.mxu0 0.0
    %280 = vmatprep.subr.mxu0 0.0
    %281 = vmatpush1.xpose.msra.mxu0 0.0
    %282 = vmatprep.subr.mxu0 0.0
    %283 = vmatpush1.xpose.msra.mxu0 0.0
    %284 = vmatprep.subr.mxu0 0.0
    %285 = vmatpush1.xpose.msra.mxu0 0.0
    %286 = vmatprep.subr.mxu0 0.0
    %287 = vmatpush1.xpose.msra.mxu0 0.0
    %288 = vmatprep.subr.mxu0 0.0
    %289 = vmatpush1.xpose.msra.mxu0 0.0
    %290 = vmatprep.subr.mxu0 0.0
    %291 = vmatpush1.xpose.msra.mxu0 0.0
    %292 = vmatprep.subr.mxu0 0.0
    %293 = vmatpush1.xpose.msra.mxu0 0.0
    %294 = vmatprep.subr.mxu0 0.0
    %295 = vmatpush1.xpose.msra.mxu0 0.0
    %296 = vmatprep.mubr.f32.mxu0 0.0
    %297 = vmatmul.mubr.f32.gmra.mrb[0].mxu0 %v215
    %v298 = vpop.f32.mrb[0].mxu0
    %v299 = vadd.f32 1.00001, %v298
    %v300 = vpop.f32.mrb[0].mxu0
    %301 = vmatprep.mubr.f32.mxu0 0.0
    %302 = vmatmul.mubr.f32.gmra.mrb[0].mxu0 %v218
    %v303 = vpop.f32.mrb[0].mxu0
    %v304 = vadd.f32 1.00001, %v303
    %v305 = vpop.f32.mrb[0].mxu0
    %306 = vmatprep.mubr.f32.mxu0 0.0
    %307 = vmatmul.mubr.f32.gmra.mrb[0].mxu0 %v221
    %v308 = vpop.f32.mrb[0].mxu0
    %v309 = vadd.f32 1.00001, %v308
    %v310 = vpop.f32.mrb[0].mxu0
    %311 = vmatprep.mubr.f32.mxu0 0.0
    %312 = vmatmul.mubr.f32.gmra.mrb[0].mxu0 %v224
    %v313 = vpop.f32.mrb[0].mxu0
    %v314 = vadd.f32 1.00001, %v313
    %v315 = vpop.f32.mrb[0].mxu0
    %316 = vdwg.mxu0
    %v317 = vmul.f32 %v299, 0.5
    %v318 = vmul.f32 %v304, 0.5
    %v319 = vmul.f32 %v309, 0.5
    %v320 = vmul.f32 %v314, 0.5
    %v321 = vld [vmem:[%s2] sm:$0xff]
    %v322 = vld [vmem:[%s2 + $0x8] sm:$0xff]
    %v323 = vld [vmem:[%s2 + $0x10] sm:$0xff]
    %v324 = vld [vmem:[%s2 + $0x18] sm:$0xff]
    %v325 = vmul.f32 %v317, %v321
    %v326 = vmul.f32 %v318, %v322
    %v327 = vmul.f32 %v319, %v323
    %v328 = vmul.f32 %v320, %v324
    %vm329 = vcmask 130048
    %v330 = vsel %vm329, %v325, -inf
    %v331 = vsel %vm329, %v326, -inf
    %v332 = vsel %vm329, %v327, -inf
    %v333 = vsel %vm329, %v328, -inf
    %v334 = vmax.f32 %v330, %v331
    %v335 = vmax.f32 %v332, %v333
    %v336 = vmax.f32 %v334, %v335
    %v337 = vrot.slane %v336, 4
    %v338 = vmax.f32 %v336, %v337
    %v339 = vrot.slane %v338, 2
    %v340 = vmax.f32 %v338, %v339
    %v341 = vrot.slane %v340, 1
    %v342 = vmax.f32 %v340, %v341
    %v343 = vsub.f32 1.0, %v342
    %v344 = vld [vmem:[%s7] sm:$0xff]
    %v345 = vld [vmem:[%s7 + $0x8] sm:$0xff]
    %v346 = vld [vmem:[%s7 + $0x10] sm:$0xff]
    %v347 = vld [vmem:[%s7 + $0x18] sm:$0xff]
    %v348 = vld [vmem:[%s8] sm:$0x1]
    %v350 = vlaneseq
    %v351 = vshrl.u32 %v350, 7
    %v352 = vsub.s32 0, %v351
    %v353 = vrot.slane %v348, %v352
    %v356 = vsel %vm175, %v163, 0
    %v359 = vsel %vm175, %v168, 0
    %361 = vmatprep.subr.mxu0 0.0
    %362 = vmatpush1.msra.mxu0 %v344
    %363 = vmatprep.subr.mxu0 0.0
    %364 = vmatpush1.msra.mxu0 %v345
    %365 = vmatprep.subr.mxu0 0.0
    %366 = vmatpush1.msra.mxu0 %v346
    %367 = vmatprep.subr.mxu0 0.0
    %368 = vmatpush1.msra.mxu0 %v347
    %369 = vmatprep.subr.mxu0 0.0
    %370 = vmatpush1.msra.mxu0 0.0
    %371 = vmatprep.subr.mxu0 0.0
    %372 = vmatpush1.msra.mxu0 0.0
    %373 = vmatprep.subr.mxu0 0.0
    %374 = vmatpush1.msra.mxu0 0.0
    %375 = vmatprep.subr.mxu0 0.0
    %376 = vmatpush1.msra.mxu0 0.0
    %377 = vmatprep.subr.mxu0 0.0
    %378 = vmatpush1.msra.mxu0 0.0
    %379 = vmatprep.subr.mxu0 0.0
    %380 = vmatpush1.msra.mxu0 0.0
    %381 = vmatprep.subr.mxu0 0.0
    %382 = vmatpush1.msra.mxu0 0.0
    %383 = vmatprep.subr.mxu0 0.0
    %384 = vmatpush1.msra.mxu0 0.0
    %385 = vmatprep.subr.mxu0 0.0
    %386 = vmatpush1.msra.mxu0 0.0
    %387 = vmatprep.subr.mxu0 0.0
    %388 = vmatpush1.msra.mxu0 0.0
    %389 = vmatprep.subr.mxu0 0.0
    %390 = vmatpush1.msra.mxu0 0.0
    %391 = vmatprep.subr.mxu0 0.0
    %392 = vmatpush1.msra.mxu0 0.0
    %393 = vmatprep.subr.mxu0 0.0
    %394 = vmatpush1.msra.mxu0 0.0
    %395 = vmatprep.subr.mxu0 0.0
    %396 = vmatpush1.msra.mxu0 0.0
    %397 = vmatprep.subr.mxu0 0.0
    %398 = vmatpush1.msra.mxu0 0.0
    %399 = vmatprep.subr.mxu0 0.0
    %400 = vmatpush1.msra.mxu0 0.0
    %401 = vmatprep.subr.mxu0 0.0
    %402 = vmatpush1.msra.mxu0 0.0
    %403 = vmatprep.subr.mxu0 0.0
    %404 = vmatpush1.msra.mxu0 0.0
    %405 = vmatprep.subr.mxu0 0.0
    %406 = vmatpush1.msra.mxu0 0.0
    %407 = vmatprep.subr.mxu0 0.0
    %408 = vmatpush1.msra.mxu0 0.0
    %409 = vmatprep.subr.mxu0 0.0
    %410 = vmatpush1.msra.mxu0 0.0
    %411 = vmatprep.subr.mxu0 0.0
    %412 = vmatpush1.msra.mxu0 0.0
    %413 = vmatprep.subr.mxu0 0.0
    %414 = vmatpush1.msra.mxu0 0.0
    %415 = vmatprep.subr.mxu0 0.0
    %416 = vmatpush1.msra.mxu0 0.0
    %417 = vmatprep.subr.mxu0 0.0
    %418 = vmatpush1.msra.mxu0 0.0
    %419 = vmatprep.subr.mxu0 0.0
    %420 = vmatpush1.msra.mxu0 0.0
    %421 = vmatprep.subr.mxu0 0.0
    %422 = vmatpush1.msra.mxu0 0.0
    %423 = vmatprep.subr.mxu0 0.0
    %424 = vmatpush1.msra.mxu0 0.0
    %425 = vmatprep.mubr.f32.mxu0 0.0
    %426 = vmatmul.mubr.f32.gmra.mrb[0].mxu0 %v356
    %v427 = vpop.f32.mrb[0].mxu0
    %v428 = vadd.f32 %v353, %v427
    %v429 = vpop.f32.mrb[0].mxu0
    %430 = vmatprep.mubr.f32.mxu0 0.0
    %431 = vmatmul.mubr.f32.gmra.mrb[0].mxu0 %v359
    %v432 = vpop.f32.mrb[0].mxu0
    %v433 = vadd.f32 %v353, %v432
    %v434 = vpop.f32.mrb[0].mxu0
    %435 = vdwg.mxu0
    %v436 = vld [vmem:[%s9] sm:$0xff]
    %v437 = vld [vmem:[%s9 + $0x8] sm:$0xff]
    %v438 = vld [vmem:[%s9 + $0x10] sm:$0xff]
    %v439 = vld [vmem:[%s9 + $0x18] sm:$0xff]
    %v440 = vld [vmem:[%s10] sm:$0x1]
    %v442 = vlaneseq
    %v443 = vshrl.u32 %v442, 7
    %v444 = vsub.s32 0, %v443
    %v445 = vrot.slane %v440, %v444
    %447 = vmatprep.subr.mxu0 0.0
    %448 = vmatpush1.msra.mxu0 %v436
    %449 = vmatprep.subr.mxu0 0.0
    %450 = vmatpush1.msra.mxu0 %v437
    %451 = vmatprep.subr.mxu0 0.0
    %452 = vmatpush1.msra.mxu0 %v438
    %453 = vmatprep.subr.mxu0 0.0
    %454 = vmatpush1.msra.mxu0 %v439
    %455 = vmatprep.subr.mxu0 0.0
    %456 = vmatpush1.msra.mxu0 0.0
    %457 = vmatprep.subr.mxu0 0.0
    %458 = vmatpush1.msra.mxu0 0.0
    %459 = vmatprep.subr.mxu0 0.0
    %460 = vmatpush1.msra.mxu0 0.0
    %461 = vmatprep.subr.mxu0 0.0
    %462 = vmatpush1.msra.mxu0 0.0
    %463 = vmatprep.subr.mxu0 0.0
    %464 = vmatpush1.msra.mxu0 0.0
    %465 = vmatprep.subr.mxu0 0.0
    %466 = vmatpush1.msra.mxu0 0.0
    %467 = vmatprep.subr.mxu0 0.0
    %468 = vmatpush1.msra.mxu0 0.0
    %469 = vmatprep.subr.mxu0 0.0
    %470 = vmatpush1.msra.mxu0 0.0
    %471 = vmatprep.subr.mxu0 0.0
    %472 = vmatpush1.msra.mxu0 0.0
    %473 = vmatprep.subr.mxu0 0.0
    %474 = vmatpush1.msra.mxu0 0.0
    %475 = vmatprep.subr.mxu0 0.0
    %476 = vmatpush1.msra.mxu0 0.0
    %477 = vmatprep.subr.mxu0 0.0
    %478 = vmatpush1.msra.mxu0 0.0
    %479 = vmatprep.subr.mxu0 0.0
    %480 = vmatpush1.msra.mxu0 0.0
    %481 = vmatprep.subr.mxu0 0.0
    %482 = vmatpush1.msra.mxu0 0.0
    %483 = vmatprep.subr.mxu0 0.0
    %484 = vmatpush1.msra.mxu0 0.0
    %485 = vmatprep.subr.mxu0 0.0
    %486 = vmatpush1.msra.mxu0 0.0
    %487 = vmatprep.subr.mxu0 0.0
    %488 = vmatpush1.msra.mxu0 0.0
    %489 = vmatprep.subr.mxu0 0.0
    %490 = vmatpush1.msra.mxu0 0.0
    %491 = vmatprep.subr.mxu0 0.0
    %492 = vmatpush1.msra.mxu0 0.0
    %493 = vmatprep.subr.mxu0 0.0
    %494 = vmatpush1.msra.mxu0 0.0
    %495 = vmatprep.subr.mxu0 0.0
    %496 = vmatpush1.msra.mxu0 0.0
    %497 = vmatprep.subr.mxu0 0.0
    %498 = vmatpush1.msra.mxu0 0.0
    %499 = vmatprep.subr.mxu0 0.0
    %500 = vmatpush1.msra.mxu0 0.0
    %501 = vmatprep.subr.mxu0 0.0
    %502 = vmatpush1.msra.mxu0 0.0
    %503 = vmatprep.subr.mxu0 0.0
    %504 = vmatpush1.msra.mxu0 0.0
    %505 = vmatprep.subr.mxu0 0.0
    %506 = vmatpush1.msra.mxu0 0.0
    %507 = vmatprep.subr.mxu0 0.0
    %508 = vmatpush1.msra.mxu0 0.0
    %509 = vmatprep.subr.mxu0 0.0
    %510 = vmatpush1.msra.mxu0 0.0
    %511 = vmatprep.mubr.f32.mxu0 0.0
    %512 = vmatmul.mubr.f32.gmra.mrb[0].mxu0 %v356
    %v513 = vpop.f32.mrb[0].mxu0
    %v514 = vadd.f32 %v445, %v513
    %v515 = vpop.f32.mrb[0].mxu0
    %516 = vmatprep.mubr.f32.mxu0 0.0
    %517 = vmatmul.mubr.f32.gmra.mrb[0].mxu0 %v359
    %v518 = vpop.f32.mrb[0].mxu0
    %v519 = vadd.f32 %v445, %v518
    %v520 = vpop.f32.mrb[0].mxu0
    %521 = vdwg.mxu0
    %v522 = vld [vmem:[%s11] sm:$0xff]
    %v523 = vld [vmem:[%s11 + $0x8] sm:$0xff]
    %v524 = vld [vmem:[%s11 + $0x10] sm:$0xff]
    %v525 = vld [vmem:[%s11 + $0x18] sm:$0xff]
    %v526 = vld [vmem:[%s12] sm:$0x1]
    %v528 = vlaneseq
    %v529 = vshrl.u32 %v528, 7
    %v530 = vsub.s32 0, %v529
    %v531 = vrot.slane %v526, %v530
    %533 = vmatprep.subr.mxu0 0.0
    %534 = vmatpush1.msra.mxu0 %v522
    %535 = vmatprep.subr.mxu0 0.0
    %536 = vmatpush1.msra.mxu0 %v523
    %537 = vmatprep.subr.mxu0 0.0
    %538 = vmatpush1.msra.mxu0 %v524
    %539 = vmatprep.subr.mxu0 0.0
    %540 = vmatpush1.msra.mxu0 %v525
    %541 = vmatprep.subr.mxu0 0.0
    %542 = vmatpush1.msra.mxu0 0.0
    %543 = vmatprep.subr.mxu0 0.0
    %544 = vmatpush1.msra.mxu0 0.0
    %545 = vmatprep.subr.mxu0 0.0
    %546 = vmatpush1.msra.mxu0 0.0
    %547 = vmatprep.subr.mxu0 0.0
    %548 = vmatpush1.msra.mxu0 0.0
    %549 = vmatprep.subr.mxu0 0.0
    %550 = vmatpush1.msra.mxu0 0.0
    %551 = vmatprep.subr.mxu0 0.0
    %552 = vmatpush1.msra.mxu0 0.0
    %553 = vmatprep.subr.mxu0 0.0
    %554 = vmatpush1.msra.mxu0 0.0
    %555 = vmatprep.subr.mxu0 0.0
    %556 = vmatpush1.msra.mxu0 0.0
    %557 = vmatprep.subr.mxu0 0.0
    %558 = vmatpush1.msra.mxu0 0.0
    %559 = vmatprep.subr.mxu0 0.0
    %560 = vmatpush1.msra.mxu0 0.0
    %561 = vmatprep.subr.mxu0 0.0
    %562 = vmatpush1.msra.mxu0 0.0
    %563 = vmatprep.subr.mxu0 0.0
    %564 = vmatpush1.msra.mxu0 0.0
    %565 = vmatprep.subr.mxu0 0.0
    %566 = vmatpush1.msra.mxu0 0.0
    %567 = vmatprep.subr.mxu0 0.0
    %568 = vmatpush1.msra.mxu0 0.0
    %569 = vmatprep.subr.mxu0 0.0
    %570 = vmatpush1.msra.mxu0 0.0
    %571 = vmatprep.subr.mxu0 0.0
    %572 = vmatpush1.msra.mxu0 0.0
    %573 = vmatprep.subr.mxu0 0.0
    %574 = vmatpush1.msra.mxu0 0.0
    %575 = vmatprep.subr.mxu0 0.0
    %576 = vmatpush1.msra.mxu0 0.0
    %577 = vmatprep.subr.mxu0 0.0
    %578 = vmatpush1.msra.mxu0 0.0
    %579 = vmatprep.subr.mxu0 0.0
    %580 = vmatpush1.msra.mxu0 0.0
    %581 = vmatprep.subr.mxu0 0.0
    %582 = vmatpush1.msra.mxu0 0.0
    %583 = vmatprep.subr.mxu0 0.0
    %584 = vmatpush1.msra.mxu0 0.0
    %585 = vmatprep.subr.mxu0 0.0
    %586 = vmatpush1.msra.mxu0 0.0
    %587 = vmatprep.subr.mxu0 0.0
    %588 = vmatpush1.msra.mxu0 0.0
    %589 = vmatprep.subr.mxu0 0.0
    %590 = vmatpush1.msra.mxu0 0.0
    %591 = vmatprep.subr.mxu0 0.0
    %592 = vmatpush1.msra.mxu0 0.0
    %593 = vmatprep.subr.mxu0 0.0
    %594 = vmatpush1.msra.mxu0 0.0
    %595 = vmatprep.subr.mxu0 0.0
    %596 = vmatpush1.msra.mxu0 0.0
    %597 = vmatprep.mubr.f32.mxu0 0.0
    %598 = vmatmul.mubr.f32.gmra.mrb[0].mxu0 %v356
    %v599 = vpop.f32.mrb[0].mxu0
    %v600 = vadd.f32 %v531, %v599
    %v601 = vpop.f32.mrb[0].mxu0
    %602 = vmatprep.mubr.f32.mxu0 0.0
    %603 = vmatmul.mubr.f32.gmra.mrb[0].mxu0 %v359
    %v604 = vpop.f32.mrb[0].mxu0
    %v605 = vadd.f32 %v531, %v604
    %v606 = vpop.f32.mrb[0].mxu0
    %607 = vdwg.mxu0
    %v608 = vld [vmem:[%s4] sm:$0xff]
    %v609 = vld [vmem:[%s4 + $0x8] sm:$0xff]
    %v610 = vld [vmem:[%s4 + $0x10] sm:$0xff]
    %v611 = vld [vmem:[%s4 + $0x18] sm:$0xff]
    %v612 = vld [vmem:[%s4 + $0x20] sm:$0xff]
    %v613 = vld [vmem:[%s4 + $0x28] sm:$0xff]
    %v614 = vld [vmem:[%s4 + $0x30] sm:$0xff]
    %v615 = vld [vmem:[%s4 + $0x38] sm:$0xff]
    %v616 = vld [vmem:[%s4 + $0x40] sm:$0xff]
    %v617 = vld [vmem:[%s4 + $0x48] sm:$0xff]
    %v618 = vld [vmem:[%s4 + $0x50] sm:$0xff]
    %v619 = vld [vmem:[%s4 + $0x58] sm:$0xff]
    %v620 = vld [vmem:[%s4 + $0x60] sm:$0xff]
    %v621 = vld [vmem:[%s4 + $0x68] sm:$0xff]
    %v622 = vld [vmem:[%s4 + $0x70] sm:$0xff]
    %v623 = vld [vmem:[%s4 + $0x78] sm:$0xff]
    %v624 = vmul.f32 %v428, %v608
    %v625 = vmul.f32 %v433, %v609
    %v626 = vmul.f32 %v428, %v610
    %v627 = vmul.f32 %v433, %v611
    %v628 = vmul.f32 %v428, %v612
    %v629 = vmul.f32 %v433, %v613
    %v630 = vmul.f32 %v428, %v614
    %v631 = vmul.f32 %v433, %v615
    %v632 = vmul.f32 %v428, %v616
    %v633 = vmul.f32 %v433, %v617
    %v634 = vmul.f32 %v428, %v618
    %v635 = vmul.f32 %v433, %v619
    %v636 = vmul.f32 %v428, %v620
    %v637 = vmul.f32 %v433, %v621
    %v638 = vmul.f32 %v428, %v622
    %v639 = vmul.f32 %v433, %v623
    %v641 = vsel %vm175, %v624, 0
    %v644 = vsel %vm175, %v625, 0
    %v647 = vsel %vm175, %v626, 0
    %v650 = vsel %vm175, %v627, 0
    %v653 = vsel %vm175, %v628, 0
    %v656 = vsel %vm175, %v629, 0
    %v659 = vsel %vm175, %v630, 0
    %v662 = vsel %vm175, %v631, 0
    %v665 = vsel %vm175, %v632, 0
    %v668 = vsel %vm175, %v633, 0
    %v671 = vsel %vm175, %v634, 0
    %v674 = vsel %vm175, %v635, 0
    %v677 = vsel %vm175, %v636, 0
    %v680 = vsel %vm175, %v637, 0
    %v683 = vsel %vm175, %v638, 0
    %v686 = vsel %vm175, %v639, 0
    %v689 = vsel %vm175, %v514, 0
    %v692 = vsel %vm175, %v519, 0
    %694 = vmatprep.subr.mxu0 0.0
    %695 = vmatpush1.xpose.msra.mxu0 %v689
    %696 = vmatprep.subr.mxu0 0.0
    %697 = vmatpush1.xpose.msra.mxu0 %v692
    %698 = vmatprep.subr.mxu0 0.0
    %699 = vmatpush1.xpose.msra.mxu0 0.0
    %700 = vmatprep.subr.mxu0 0.0
    %701 = vmatpush1.xpose.msra.mxu0 0.0
    %702 = vmatprep.subr.mxu0 0.0
    %703 = vmatpush1.xpose.msra.mxu0 0.0
    %704 = vmatprep.subr.mxu0 0.0
    %705 = vmatpush1.xpose.msra.mxu0 0.0
    %706 = vmatprep.subr.mxu0 0.0
    %707 = vmatpush1.xpose.msra.mxu0 0.0
    %708 = vmatprep.subr.mxu0 0.0
    %709 = vmatpush1.xpose.msra.mxu0 0.0
    %710 = vmatprep.subr.mxu0 0.0
    %711 = vmatpush1.xpose.msra.mxu0 0.0
    %712 = vmatprep.subr.mxu0 0.0
    %713 = vmatpush1.xpose.msra.mxu0 0.0
    %714 = vmatprep.subr.mxu0 0.0
    %715 = vmatpush1.xpose.msra.mxu0 0.0
    %716 = vmatprep.subr.mxu0 0.0
    %717 = vmatpush1.xpose.msra.mxu0 0.0
    %718 = vmatprep.subr.mxu0 0.0
    %719 = vmatpush1.xpose.msra.mxu0 0.0
    %720 = vmatprep.subr.mxu0 0.0
    %721 = vmatpush1.xpose.msra.mxu0 0.0
    %722 = vmatprep.subr.mxu0 0.0
    %723 = vmatpush1.xpose.msra.mxu0 0.0
    %724 = vmatprep.subr.mxu0 0.0
    %725 = vmatpush1.xpose.msra.mxu0 0.0
    %726 = vmatprep.subr.mxu0 0.0
    %727 = vmatpush1.xpose.msra.mxu0 0.0
    %728 = vmatprep.subr.mxu0 0.0
    %729 = vmatpush1.xpose.msra.mxu0 0.0
    %730 = vmatprep.subr.mxu0 0.0
    %731 = vmatpush1.xpose.msra.mxu0 0.0
    %732 = vmatprep.subr.mxu0 0.0
    %733 = vmatpush1.xpose.msra.mxu0 0.0
    %734 = vmatprep.subr.mxu0 0.0
    %735 = vmatpush1.xpose.msra.mxu0 0.0
    %736 = vmatprep.subr.mxu0 0.0
    %737 = vmatpush1.xpose.msra.mxu0 0.0
    %738 = vmatprep.subr.mxu0 0.0
    %739 = vmatpush1.xpose.msra.mxu0 0.0
    %740 = vmatprep.subr.mxu0 0.0
    %741 = vmatpush1.xpose.msra.mxu0 0.0
    %742 = vmatprep.subr.mxu0 0.0
    %743 = vmatpush1.xpose.msra.mxu0 0.0
    %744 = vmatprep.subr.mxu0 0.0
    %745 = vmatpush1.xpose.msra.mxu0 0.0
    %746 = vmatprep.subr.mxu0 0.0
    %747 = vmatpush1.xpose.msra.mxu0 0.0
    %748 = vmatprep.subr.mxu0 0.0
    %749 = vmatpush1.xpose.msra.mxu0 0.0
    %750 = vmatprep.subr.mxu0 0.0
    %751 = vmatpush1.xpose.msra.mxu0 0.0
    %752 = vmatprep.subr.mxu0 0.0
    %753 = vmatpush1.xpose.msra.mxu0 0.0
    %754 = vmatprep.subr.mxu0 0.0
    %755 = vmatpush1.xpose.msra.mxu0 0.0
    %756 = vmatprep.subr.mxu0 0.0
    %757 = vmatpush1.xpose.msra.mxu0 0.0
    %758 = vmatprep.mubr.f32.mxu0 0.0
    %759 = vmatmul.mubr.f32.gmra.mrb[0].mxu0 %v641
    %v760 = vpop.f32.mrb[0].mxu0
    %v761 = vadd.f32 0.0, %v760
    %v762 = vpop.f32.mrb[0].mxu0
    %763 = vmatprep.mubr.f32.mxu0 0.0
    %764 = vmatmul.mubr.f32.gmra.mrb[0].mxu0 %v644
    %v765 = vpop.f32.mrb[0].mxu0
    %v766 = vadd.f32 0.0, %v765
    %v767 = vpop.f32.mrb[0].mxu0
    %768 = vmatprep.mubr.f32.mxu0 0.0
    %769 = vmatmul.mubr.f32.gmra.mrb[0].mxu0 %v647
    %v770 = vpop.f32.mrb[0].mxu0
    %v771 = vadd.f32 0.0, %v770
    %v772 = vpop.f32.mrb[0].mxu0
    %773 = vmatprep.mubr.f32.mxu0 0.0
    %774 = vmatmul.mubr.f32.gmra.mrb[0].mxu0 %v650
    %v775 = vpop.f32.mrb[0].mxu0
    %v776 = vadd.f32 0.0, %v775
    %v777 = vpop.f32.mrb[0].mxu0
    %778 = vmatprep.mubr.f32.mxu0 0.0
    %779 = vmatmul.mubr.f32.gmra.mrb[0].mxu0 %v653
    %v780 = vpop.f32.mrb[0].mxu0
    %v781 = vadd.f32 0.0, %v780
    %v782 = vpop.f32.mrb[0].mxu0
    %783 = vmatprep.mubr.f32.mxu0 0.0
    %784 = vmatmul.mubr.f32.gmra.mrb[0].mxu0 %v656
    %v785 = vpop.f32.mrb[0].mxu0
    %v786 = vadd.f32 0.0, %v785
    %v787 = vpop.f32.mrb[0].mxu0
    %788 = vmatprep.mubr.f32.mxu0 0.0
    %789 = vmatmul.mubr.f32.gmra.mrb[0].mxu0 %v659
    %v790 = vpop.f32.mrb[0].mxu0
    %v791 = vadd.f32 0.0, %v790
    %v792 = vpop.f32.mrb[0].mxu0
    %793 = vmatprep.mubr.f32.mxu0 0.0
    %794 = vmatmul.mubr.f32.gmra.mrb[0].mxu0 %v662
    %v795 = vpop.f32.mrb[0].mxu0
    %v796 = vadd.f32 0.0, %v795
    %v797 = vpop.f32.mrb[0].mxu0
    %798 = vmatprep.mubr.f32.mxu0 0.0
    %799 = vmatmul.mubr.f32.gmra.mrb[0].mxu0 %v665
    %v800 = vpop.f32.mrb[0].mxu0
    %v801 = vadd.f32 0.0, %v800
    %v802 = vpop.f32.mrb[0].mxu0
    %803 = vmatprep.mubr.f32.mxu0 0.0
    %804 = vmatmul.mubr.f32.gmra.mrb[0].mxu0 %v668
    %v805 = vpop.f32.mrb[0].mxu0
    %v806 = vadd.f32 0.0, %v805
    %v807 = vpop.f32.mrb[0].mxu0
    %808 = vmatprep.mubr.f32.mxu0 0.0
    %809 = vmatmul.mubr.f32.gmra.mrb[0].mxu0 %v671
    %v810 = vpop.f32.mrb[0].mxu0
    %v811 = vadd.f32 0.0, %v810
    %v812 = vpop.f32.mrb[0].mxu0
    %813 = vmatprep.mubr.f32.mxu0 0.0
    %814 = vmatmul.mubr.f32.gmra.mrb[0].mxu0 %v674
    %v815 = vpop.f32.mrb[0].mxu0
    %v816 = vadd.f32 0.0, %v815
    %v817 = vpop.f32.mrb[0].mxu0
    %818 = vmatprep.mubr.f32.mxu0 0.0
    %819 = vmatmul.mubr.f32.gmra.mrb[0].mxu0 %v677
    %v820 = vpop.f32.mrb[0].mxu0
    %v821 = vadd.f32 0.0, %v820
    %v822 = vpop.f32.mrb[0].mxu0
    %823 = vmatprep.mubr.f32.mxu0 0.0
    %824 = vmatmul.mubr.f32.gmra.mrb[0].mxu0 %v680
    %v825 = vpop.f32.mrb[0].mxu0
    %v826 = vadd.f32 0.0, %v825
    %v827 = vpop.f32.mrb[0].mxu0
    %828 = vmatprep.mubr.f32.mxu0 0.0
    %829 = vmatmul.mubr.f32.gmra.mrb[0].mxu0 %v683
    %v830 = vpop.f32.mrb[0].mxu0
    %v831 = vadd.f32 0.0, %v830
    %v832 = vpop.f32.mrb[0].mxu0
    %833 = vmatprep.mubr.f32.mxu0 0.0
    %834 = vmatmul.mubr.f32.gmra.mrb[0].mxu0 %v686
    %v835 = vpop.f32.mrb[0].mxu0
    %v836 = vadd.f32 0.0, %v835
    %v837 = vpop.f32.mrb[0].mxu0
    %838 = vdwg.mxu0
    %v839 = vmul.f32 %v761, 0.5
    %v840 = vmul.f32 %v766, 0.5
    %v841 = vmul.f32 %v771, 0.5
    %v842 = vmul.f32 %v776, 0.5
    %v843 = vmul.f32 %v781, 0.5
    %v844 = vmul.f32 %v786, 0.5
    %v845 = vmul.f32 %v791, 0.5
    %v846 = vmul.f32 %v796, 0.5
    %v847 = vmul.f32 %v801, 0.5
    %v848 = vmul.f32 %v806, 0.5
    %v849 = vmul.f32 %v811, 0.5
    %v850 = vmul.f32 %v816, 0.5
    %v851 = vmul.f32 %v821, 0.5
    %v852 = vmul.f32 %v826, 0.5
    %v853 = vmul.f32 %v831, 0.5
    %v854 = vmul.f32 %v836, 0.5
    %v855 = vmul.f32 %v343, %v343
    %v856 = vmul.f32 %v839, %v855
    %v857 = vmul.f32 %v840, %v855
    %v858 = vmul.f32 %v841, %v855
    %v859 = vmul.f32 %v842, %v855
    %v860 = vmul.f32 %v843, %v855
    %v861 = vmul.f32 %v844, %v855
    %v862 = vmul.f32 %v845, %v855
    %v863 = vmul.f32 %v846, %v855
    %v864 = vmul.f32 %v847, %v855
    %v865 = vmul.f32 %v848, %v855
    %v866 = vmul.f32 %v849, %v855
    %v867 = vmul.f32 %v850, %v855
    %v868 = vmul.f32 %v851, %v855
    %v869 = vmul.f32 %v852, %v855
    %v870 = vmul.f32 %v853, %v855
    %v871 = vmul.f32 %v854, %v855
    %v872 = vld [vmem:[%s3] sm:$0xff]
    %v873 = vld [vmem:[%s3 + $0x8] sm:$0xff]
    %vm874 = vcmp.ge.f32.partialorder %v343, 1e-05
    %v875 = vsel %vm874, 1, 0
    %v876 = vcvt.s32.f32 %v875
    %v877 = vmul.f32 %v872, %v876
    %v878 = vmul.f32 %v873, %v876
    %vm879 = vcmp.gt.f32.partialorder %v877, 0.5
    %vm880 = vcmp.gt.f32.partialorder %v878, 0.5
    %v881 = vsel %vm879, %v856, -inf
    %v882 = vsel %vm880, %v857, -inf
    %v883 = vsel %vm879, %v858, -inf
    %v884 = vsel %vm880, %v859, -inf
    %v885 = vsel %vm879, %v860, -inf
    %v886 = vsel %vm880, %v861, -inf
    %v887 = vsel %vm879, %v862, -inf
    %v888 = vsel %vm880, %v863, -inf
    %v889 = vsel %vm879, %v864, -inf
    %v890 = vsel %vm880, %v865, -inf
    %v891 = vsel %vm879, %v866, -inf
    %v892 = vsel %vm880, %v867, -inf
    %v893 = vsel %vm879, %v868, -inf
    %v894 = vsel %vm880, %v869, -inf
    %v895 = vsel %vm879, %v870, -inf
    %v896 = vsel %vm880, %v871, -inf
    %v897 = vsel %vm329, %v881, -inf
    %898 = vmax.xlane.f32.xlu0 %v897
    %v899 = vpop.xlane.xlu0 %898
    %v900 = vsel %vm329, %v882, -inf
    %901 = vmax.xlane.f32.xlu0 %v900
    %v902 = vpop.xlane.xlu0 %901
    %v903 = vsel %vm329, %v883, -inf
    %904 = vmax.xlane.f32.xlu0 %v903
    %v905 = vpop.xlane.xlu0 %904
    %v906 = vsel %vm329, %v884, -inf
    %907 = vmax.xlane.f32.xlu0 %v906
    %v908 = vpop.xlane.xlu0 %907
    %v909 = vsel %vm329, %v885, -inf
    %910 = vmax.xlane.f32.xlu0 %v909
    %v911 = vpop.xlane.xlu0 %910
    %v912 = vsel %vm329, %v886, -inf
    %913 = vmax.xlane.f32.xlu0 %v912
    %v914 = vpop.xlane.xlu0 %913
    %v915 = vsel %vm329, %v887, -inf
    %916 = vmax.xlane.f32.xlu0 %v915
    %v917 = vpop.xlane.xlu0 %916
    %v918 = vsel %vm329, %v888, -inf
    %919 = vmax.xlane.f32.xlu0 %v918
    %v920 = vpop.xlane.xlu0 %919
    %v921 = vsel %vm329, %v889, -inf
    %922 = vmax.xlane.f32.xlu0 %v921
    %v923 = vpop.xlane.xlu0 %922
    %v924 = vsel %vm329, %v890, -inf
    %925 = vmax.xlane.f32.xlu0 %v924
    %v926 = vpop.xlane.xlu0 %925
    %v927 = vsel %vm329, %v891, -inf
    %928 = vmax.xlane.f32.xlu0 %v927
    %v929 = vpop.xlane.xlu0 %928
    %v930 = vsel %vm329, %v892, -inf
    %931 = vmax.xlane.f32.xlu0 %v930
    %v932 = vpop.xlane.xlu0 %931
    %v933 = vsel %vm329, %v893, -inf
    %934 = vmax.xlane.f32.xlu0 %v933
    %v935 = vpop.xlane.xlu0 %934
    %v936 = vsel %vm329, %v894, -inf
    %937 = vmax.xlane.f32.xlu0 %v936
    %v938 = vpop.xlane.xlu0 %937
    %v939 = vsel %vm329, %v895, -inf
    %940 = vmax.xlane.f32.xlu0 %v939
    %v941 = vpop.xlane.xlu0 %940
    %v942 = vsel %vm329, %v896, -inf
    %943 = vmax.xlane.f32.xlu0 %v942
    %v944 = vpop.xlane.xlu0 %943
    %v945 = vsub.f32 %v881, %v899
    %v946 = vsub.f32 %v882, %v902
    %v947 = vsub.f32 %v883, %v905
    %v948 = vsub.f32 %v884, %v908
    %v949 = vsub.f32 %v885, %v911
    %v950 = vsub.f32 %v886, %v914
    %v951 = vsub.f32 %v887, %v917
    %v952 = vsub.f32 %v888, %v920
    %v953 = vsub.f32 %v889, %v923
    %v954 = vsub.f32 %v890, %v926
    %v955 = vsub.f32 %v891, %v929
    %v956 = vsub.f32 %v892, %v932
    %v957 = vsub.f32 %v893, %v935
    %v958 = vsub.f32 %v894, %v938
    %v959 = vsub.f32 %v895, %v941
    %v960 = vsub.f32 %v896, %v944
    %v961 = vmul.f32 %v945, 1.442695
    %v962 = vpow.pop %v961
    %v963 = vmul.f32 %v946, 1.442695
    %v964 = vpow.pop %v963
    %v965 = vmul.f32 %v947, 1.442695
    %v966 = vpow.pop %v965
    %v967 = vmul.f32 %v948, 1.442695
    %v968 = vpow.pop %v967
    %v969 = vmul.f32 %v949, 1.442695
    %v970 = vpow.pop %v969
    %v971 = vmul.f32 %v950, 1.442695
    %v972 = vpow.pop %v971
    %v973 = vmul.f32 %v951, 1.442695
    %v974 = vpow.pop %v973
    %v975 = vmul.f32 %v952, 1.442695
    %v976 = vpow.pop %v975
    %v977 = vmul.f32 %v953, 1.442695
    %v978 = vpow.pop %v977
    %v979 = vmul.f32 %v954, 1.442695
    %v980 = vpow.pop %v979
    %v981 = vmul.f32 %v955, 1.442695
    %v982 = vpow.pop %v981
    %v983 = vmul.f32 %v956, 1.442695
    %v984 = vpow.pop %v983
    %v985 = vmul.f32 %v957, 1.442695
    %v986 = vpow.pop %v985
    %v987 = vmul.f32 %v958, 1.442695
    %v988 = vpow.pop %v987
    %v989 = vmul.f32 %v959, 1.442695
    %v990 = vpow.pop %v989
    %v991 = vmul.f32 %v960, 1.442695
    %v992 = vpow.pop %v991
    %v993 = vsel %vm329, %v962, 0.0
    %994 = vadd.xlane.f32.xlu0 %v993
    %v995 = vpop.xlane.xlu0 %994
    %v996 = vsel %vm329, %v964, 0.0
    %997 = vadd.xlane.f32.xlu0 %v996
    %v998 = vpop.xlane.xlu0 %997
    %v999 = vsel %vm329, %v966, 0.0
    %1000 = vadd.xlane.f32.xlu0 %v999
    %v1001 = vpop.xlane.xlu0 %1000
    %v1002 = vsel %vm329, %v968, 0.0
    %1003 = vadd.xlane.f32.xlu0 %v1002
    %v1004 = vpop.xlane.xlu0 %1003
    %v1005 = vsel %vm329, %v970, 0.0
    %1006 = vadd.xlane.f32.xlu0 %v1005
    %v1007 = vpop.xlane.xlu0 %1006
    %v1008 = vsel %vm329, %v972, 0.0
    %1009 = vadd.xlane.f32.xlu0 %v1008
    %v1010 = vpop.xlane.xlu0 %1009
    %v1011 = vsel %vm329, %v974, 0.0
    %1012 = vadd.xlane.f32.xlu0 %v1011
    %v1013 = vpop.xlane.xlu0 %1012
    %v1014 = vsel %vm329, %v976, 0.0
    %1015 = vadd.xlane.f32.xlu0 %v1014
    %v1016 = vpop.xlane.xlu0 %1015
    %v1017 = vsel %vm329, %v978, 0.0
    %1018 = vadd.xlane.f32.xlu0 %v1017
    %v1019 = vpop.xlane.xlu0 %1018
    %v1020 = vsel %vm329, %v980, 0.0
    %1021 = vadd.xlane.f32.xlu0 %v1020
    %v1022 = vpop.xlane.xlu0 %1021
    %v1023 = vsel %vm329, %v982, 0.0
    %1024 = vadd.xlane.f32.xlu0 %v1023
    %v1025 = vpop.xlane.xlu0 %1024
    %v1026 = vsel %vm329, %v984, 0.0
    %1027 = vadd.xlane.f32.xlu0 %v1026
    %v1028 = vpop.xlane.xlu0 %1027
    %v1029 = vsel %vm329, %v986, 0.0
    %1030 = vadd.xlane.f32.xlu0 %v1029
    %v1031 = vpop.xlane.xlu0 %1030
    %v1032 = vsel %vm329, %v988, 0.0
    %1033 = vadd.xlane.f32.xlu0 %v1032
    %v1034 = vpop.xlane.xlu0 %1033
    %v1035 = vsel %vm329, %v990, 0.0
    %1036 = vadd.xlane.f32.xlu0 %v1035
    %v1037 = vpop.xlane.xlu0 %1036
    %v1038 = vsel %vm329, %v992, 0.0
    %1039 = vadd.xlane.f32.xlu0 %v1038
    %v1040 = vpop.xlane.xlu0 %1039
    %v1041 = vrcp.pop %v995
    %v1042 = vrcp.pop %v998
    %v1043 = vrcp.pop %v1001
    %v1044 = vrcp.pop %v1004
    %v1045 = vrcp.pop %v1007
    %v1046 = vrcp.pop %v1010
    %v1047 = vrcp.pop %v1013
    %v1048 = vrcp.pop %v1016
    %v1049 = vrcp.pop %v1019
    %v1050 = vrcp.pop %v1022
    %v1051 = vrcp.pop %v1025
    %v1052 = vrcp.pop %v1028
    %v1053 = vrcp.pop %v1031
    %v1054 = vrcp.pop %v1034
    %v1055 = vrcp.pop %v1037
    %v1056 = vrcp.pop %v1040
    %v1057 = vmul.f32 %v962, %v1041
    %v1058 = vmul.f32 %v964, %v1042
    %v1059 = vmul.f32 %v966, %v1043
    %v1060 = vmul.f32 %v968, %v1044
    %v1061 = vmul.f32 %v970, %v1045
    %v1062 = vmul.f32 %v972, %v1046
    %v1063 = vmul.f32 %v974, %v1047
    %v1064 = vmul.f32 %v976, %v1048
    %v1065 = vmul.f32 %v978, %v1049
    %v1066 = vmul.f32 %v980, %v1050
    %v1067 = vmul.f32 %v982, %v1051
    %v1068 = vmul.f32 %v984, %v1052
    %v1069 = vmul.f32 %v986, %v1053
    %v1070 = vmul.f32 %v988, %v1054
    %v1071 = vmul.f32 %v990, %v1055
    %v1072 = vmul.f32 %v992, %v1056
    %v1074 = vsel %vm329, %v1057, 0
    %v1077 = vsel %vm329, %v1058, 0
    %v1080 = vsel %vm329, %v1059, 0
    %v1083 = vsel %vm329, %v1060, 0
    %v1086 = vsel %vm329, %v1061, 0
    %v1089 = vsel %vm329, %v1062, 0
    %v1092 = vsel %vm329, %v1063, 0
    %v1095 = vsel %vm329, %v1064, 0
    %v1098 = vsel %vm329, %v1065, 0
    %v1101 = vsel %vm329, %v1066, 0
    %v1104 = vsel %vm329, %v1067, 0
    %v1107 = vsel %vm329, %v1068, 0
    %v1110 = vsel %vm329, %v1069, 0
    %v1113 = vsel %vm329, %v1070, 0
    %v1116 = vsel %vm329, %v1071, 0
    %v1119 = vsel %vm329, %v1072, 0
    %1121 = vmatprep.subr.mxu0 0.0
    %1122 = vmatpush1.msra.mxu0 %v600
    %1123 = vmatprep.subr.mxu0 0.0
    %1124 = vmatpush1.msra.mxu0 %v605
    %1125 = vmatprep.subr.mxu0 0.0
    %1126 = vmatpush1.msra.mxu0 0.0
    %1127 = vmatprep.subr.mxu0 0.0
    %1128 = vmatpush1.msra.mxu0 0.0
    %1129 = vmatprep.subr.mxu0 0.0
    %1130 = vmatpush1.msra.mxu0 0.0
    %1131 = vmatprep.subr.mxu0 0.0
    %1132 = vmatpush1.msra.mxu0 0.0
    %1133 = vmatprep.subr.mxu0 0.0
    %1134 = vmatpush1.msra.mxu0 0.0
    %1135 = vmatprep.subr.mxu0 0.0
    %1136 = vmatpush1.msra.mxu0 0.0
    %1137 = vmatprep.subr.mxu0 0.0
    %1138 = vmatpush1.msra.mxu0 0.0
    %1139 = vmatprep.subr.mxu0 0.0
    %1140 = vmatpush1.msra.mxu0 0.0
    %1141 = vmatprep.subr.mxu0 0.0
    %1142 = vmatpush1.msra.mxu0 0.0
    %1143 = vmatprep.subr.mxu0 0.0
    %1144 = vmatpush1.msra.mxu0 0.0
    %1145 = vmatprep.subr.mxu0 0.0
    %1146 = vmatpush1.msra.mxu0 0.0
    %1147 = vmatprep.subr.mxu0 0.0
    %1148 = vmatpush1.msra.mxu0 0.0
    %1149 = vmatprep.subr.mxu0 0.0
    %1150 = vmatpush1.msra.mxu0 0.0
    %1151 = vmatprep.subr.mxu0 0.0
    %1152 = vmatpush1.msra.mxu0 0.0
    %1153 = vmatprep.subr.mxu0 0.0
    %1154 = vmatpush1.msra.mxu0 0.0
    %1155 = vmatprep.subr.mxu0 0.0
    %1156 = vmatpush1.msra.mxu0 0.0
    %1157 = vmatprep.subr.mxu0 0.0
    %1158 = vmatpush1.msra.mxu0 0.0
    %1159 = vmatprep.subr.mxu0 0.0
    %1160 = vmatpush1.msra.mxu0 0.0
    %1161 = vmatprep.subr.mxu0 0.0
    %1162 = vmatpush1.msra.mxu0 0.0
    %1163 = vmatprep.subr.mxu0 0.0
    %1164 = vmatpush1.msra.mxu0 0.0
    %1165 = vmatprep.subr.mxu0 0.0
    %1166 = vmatpush1.msra.mxu0 0.0
    %1167 = vmatprep.subr.mxu0 0.0
    %1168 = vmatpush1.msra.mxu0 0.0
    %1169 = vmatprep.subr.mxu0 0.0
    %1170 = vmatpush1.msra.mxu0 0.0
    %1171 = vmatprep.subr.mxu0 0.0
    %1172 = vmatpush1.msra.mxu0 0.0
    %1173 = vmatprep.subr.mxu0 0.0
    %1174 = vmatpush1.msra.mxu0 0.0
    %1175 = vmatprep.subr.mxu0 0.0
    %1176 = vmatpush1.msra.mxu0 0.0
    %1177 = vmatprep.subr.mxu0 0.0
    %1178 = vmatpush1.msra.mxu0 0.0
    %1179 = vmatprep.subr.mxu0 0.0
    %1180 = vmatpush1.msra.mxu0 0.0
    %1181 = vmatprep.subr.mxu0 0.0
    %1182 = vmatpush1.msra.mxu0 0.0
    %1183 = vmatprep.subr.mxu0 0.0
    %1184 = vmatpush1.msra.mxu0 0.0
    %1185 = vmatprep.mubr.f32.mxu0 0.0
    %1186 = vmatmul.mubr.f32.gmra.mrb[0].mxu0 %v1074
    %v1187 = vpop.f32.mrb[0].mxu0
    %v1188 = vadd.f32 0.0, %v1187
    %v1189 = vpop.f32.mrb[0].mxu0
    %1190 = vmatprep.mubr.f32.mxu0 0.0
    %1191 = vmatmul.mubr.f32.gmra.mrb[0].mxu0 %v1077
    %v1192 = vpop.f32.mrb[0].mxu0
    %v1193 = vadd.f32 0.0, %v1192
    %v1194 = vpop.f32.mrb[0].mxu0
    %1195 = vmatprep.mubr.f32.mxu0 0.0
    %1196 = vmatmul.mubr.f32.gmra.mrb[0].mxu0 %v1080
    %v1197 = vpop.f32.mrb[0].mxu0
    %v1198 = vadd.f32 0.0, %v1197
    %v1199 = vpop.f32.mrb[0].mxu0
    %1200 = vmatprep.mubr.f32.mxu0 0.0
    %1201 = vmatmul.mubr.f32.gmra.mrb[0].mxu0 %v1083
    %v1202 = vpop.f32.mrb[0].mxu0
    %v1203 = vadd.f32 0.0, %v1202
    %v1204 = vpop.f32.mrb[0].mxu0
    %1205 = vmatprep.mubr.f32.mxu0 0.0
    %1206 = vmatmul.mubr.f32.gmra.mrb[0].mxu0 %v1086
    %v1207 = vpop.f32.mrb[0].mxu0
    %v1208 = vadd.f32 0.0, %v1207
    %v1209 = vpop.f32.mrb[0].mxu0
    %1210 = vmatprep.mubr.f32.mxu0 0.0
    %1211 = vmatmul.mubr.f32.gmra.mrb[0].mxu0 %v1089
    %v1212 = vpop.f32.mrb[0].mxu0
    %v1213 = vadd.f32 0.0, %v1212
    %v1214 = vpop.f32.mrb[0].mxu0
    %1215 = vmatprep.mubr.f32.mxu0 0.0
    %1216 = vmatmul.mubr.f32.gmra.mrb[0].mxu0 %v1092
    %v1217 = vpop.f32.mrb[0].mxu0
    %v1218 = vadd.f32 0.0, %v1217
    %v1219 = vpop.f32.mrb[0].mxu0
    %1220 = vmatprep.mubr.f32.mxu0 0.0
    %1221 = vmatmul.mubr.f32.gmra.mrb[0].mxu0 %v1095
    %v1222 = vpop.f32.mrb[0].mxu0
    %v1223 = vadd.f32 0.0, %v1222
    %v1224 = vpop.f32.mrb[0].mxu0
    %1225 = vmatprep.mubr.f32.mxu0 0.0
    %1226 = vmatmul.mubr.f32.gmra.mrb[0].mxu0 %v1098
    %v1227 = vpop.f32.mrb[0].mxu0
    %v1228 = vadd.f32 0.0, %v1227
    %v1229 = vpop.f32.mrb[0].mxu0
    %1230 = vmatprep.mubr.f32.mxu0 0.0
    %1231 = vmatmul.mubr.f32.gmra.mrb[0].mxu0 %v1101
    %v1232 = vpop.f32.mrb[0].mxu0
    %v1233 = vadd.f32 0.0, %v1232
    %v1234 = vpop.f32.mrb[0].mxu0
    %1235 = vmatprep.mubr.f32.mxu0 0.0
    %1236 = vmatmul.mubr.f32.gmra.mrb[0].mxu0 %v1104
    %v1237 = vpop.f32.mrb[0].mxu0
    %v1238 = vadd.f32 0.0, %v1237
    %v1239 = vpop.f32.mrb[0].mxu0
    %1240 = vmatprep.mubr.f32.mxu0 0.0
    %1241 = vmatmul.mubr.f32.gmra.mrb[0].mxu0 %v1107
    %v1242 = vpop.f32.mrb[0].mxu0
    %v1243 = vadd.f32 0.0, %v1242
    %v1244 = vpop.f32.mrb[0].mxu0
    %1245 = vmatprep.mubr.f32.mxu0 0.0
    %1246 = vmatmul.mubr.f32.gmra.mrb[0].mxu0 %v1110
    %v1247 = vpop.f32.mrb[0].mxu0
    %v1248 = vadd.f32 0.0, %v1247
    %v1249 = vpop.f32.mrb[0].mxu0
    %1250 = vmatprep.mubr.f32.mxu0 0.0
    %1251 = vmatmul.mubr.f32.gmra.mrb[0].mxu0 %v1113
    %v1252 = vpop.f32.mrb[0].mxu0
    %v1253 = vadd.f32 0.0, %v1252
    %v1254 = vpop.f32.mrb[0].mxu0
    %1255 = vmatprep.mubr.f32.mxu0 0.0
    %1256 = vmatmul.mubr.f32.gmra.mrb[0].mxu0 %v1116
    %v1257 = vpop.f32.mrb[0].mxu0
    %v1258 = vadd.f32 0.0, %v1257
    %v1259 = vpop.f32.mrb[0].mxu0
    %1260 = vmatprep.mubr.f32.mxu0 0.0
    %1261 = vmatmul.mubr.f32.gmra.mrb[0].mxu0 %v1119
    %v1262 = vpop.f32.mrb[0].mxu0
    %v1263 = vadd.f32 0.0, %v1262
    %v1264 = vpop.f32.mrb[0].mxu0
    %1265 = vdwg.mxu0
    %v1266 = vmul.f32 %v1188, %v608
    %v1267 = vmul.f32 %v1193, %v609
    %v1268 = vmul.f32 %v1198, %v610
    %v1269 = vmul.f32 %v1203, %v611
    %v1270 = vmul.f32 %v1208, %v612
    %v1271 = vmul.f32 %v1213, %v613
    %v1272 = vmul.f32 %v1218, %v614
    %v1273 = vmul.f32 %v1223, %v615
    %v1274 = vmul.f32 %v1228, %v616
    %v1275 = vmul.f32 %v1233, %v617
    %v1276 = vmul.f32 %v1238, %v618
    %v1277 = vmul.f32 %v1243, %v619
    %v1278 = vmul.f32 %v1248, %v620
    %v1279 = vmul.f32 %v1253, %v621
    %v1280 = vmul.f32 %v1258, %v622
    %v1281 = vmul.f32 %v1263, %v623
    %v1282 = vadd.f32 %v1266, %v1268
    %v1283 = vadd.f32 %v1267, %v1269
    %v1284 = vadd.f32 %v1282, %v1270
    %v1285 = vadd.f32 %v1283, %v1271
    %v1286 = vadd.f32 %v1284, %v1272
    %v1287 = vadd.f32 %v1285, %v1273
    %v1288 = vadd.f32 %v1286, %v1274
    %v1289 = vadd.f32 %v1287, %v1275
    %v1290 = vadd.f32 %v1288, %v1276
    %v1291 = vadd.f32 %v1289, %v1277
    %v1292 = vadd.f32 %v1290, %v1278
    %v1293 = vadd.f32 %v1291, %v1279
    %v1294 = vadd.f32 %v1292, %v1280
    %v1295 = vadd.f32 %v1293, %v1281
    %v1296 = vld [vmem:[%s13] sm:$0xff]
    %v1297 = vld [vmem:[%s13 + $0x8] sm:$0xff]
    %v1298 = vld [vmem:[%s13 + $0x10] sm:$0xff]
    %v1299 = vld [vmem:[%s13 + $0x18] sm:$0xff]
    %v1300 = vld [vmem:[%s14] sm:$0x1]
    %v1302 = vlaneseq
    %v1303 = vshrl.u32 %v1302, 7
    %v1304 = vsub.s32 0, %v1303
    %v1305 = vrot.slane %v1300, %v1304
    %v1308 = vsel %vm175, %v1294, 0
    %v1311 = vsel %vm175, %v1295, 0
    %1313 = vmatprep.subr.mxu0 0.0
    %1314 = vmatpush1.msra.mxu0 %v1296
    %1315 = vmatprep.subr.mxu0 0.0
    %1316 = vmatpush1.msra.mxu0 %v1297
    %1317 = vmatprep.subr.mxu0 0.0
    %1318 = vmatpush1.msra.mxu0 %v1298
    %1319 = vmatprep.subr.mxu0 0.0
    %1320 = vmatpush1.msra.mxu0 %v1299
    %1321 = vmatprep.subr.mxu0 0.0
    %1322 = vmatpush1.msra.mxu0 0.0
    %1323 = vmatprep.subr.mxu0 0.0
    %1324 = vmatpush1.msra.mxu0 0.0
    %1325 = vmatprep.subr.mxu0 0.0
    %1326 = vmatpush1.msra.mxu0 0.0
    %1327 = vmatprep.subr.mxu0 0.0
    %1328 = vmatpush1.msra.mxu0 0.0
    %1329 = vmatprep.subr.mxu0 0.0
    %1330 = vmatpush1.msra.mxu0 0.0
    %1331 = vmatprep.subr.mxu0 0.0
    %1332 = vmatpush1.msra.mxu0 0.0
    %1333 = vmatprep.subr.mxu0 0.0
    %1334 = vmatpush1.msra.mxu0 0.0
    %1335 = vmatprep.subr.mxu0 0.0
    %1336 = vmatpush1.msra.mxu0 0.0
    %1337 = vmatprep.subr.mxu0 0.0
    %1338 = vmatpush1.msra.mxu0 0.0
    %1339 = vmatprep.subr.mxu0 0.0
    %1340 = vmatpush1.msra.mxu0 0.0
    %1341 = vmatprep.subr.mxu0 0.0
    %1342 = vmatpush1.msra.mxu0 0.0
    %1343 = vmatprep.subr.mxu0 0.0
    %1344 = vmatpush1.msra.mxu0 0.0
    %1345 = vmatprep.subr.mxu0 0.0
    %1346 = vmatpush1.msra.mxu0 0.0
    %1347 = vmatprep.subr.mxu0 0.0
    %1348 = vmatpush1.msra.mxu0 0.0
    %1349 = vmatprep.subr.mxu0 0.0
    %1350 = vmatpush1.msra.mxu0 0.0
    %1351 = vmatprep.subr.mxu0 0.0
    %1352 = vmatpush1.msra.mxu0 0.0
    %1353 = vmatprep.subr.mxu0 0.0
    %1354 = vmatpush1.msra.mxu0 0.0
    %1355 = vmatprep.subr.mxu0 0.0
    %1356 = vmatpush1.msra.mxu0 0.0
    %1357 = vmatprep.subr.mxu0 0.0
    %1358 = vmatpush1.msra.mxu0 0.0
    %1359 = vmatprep.subr.mxu0 0.0
    %1360 = vmatpush1.msra.mxu0 0.0
    %1361 = vmatprep.subr.mxu0 0.0
    %1362 = vmatpush1.msra.mxu0 0.0
    %1363 = vmatprep.subr.mxu0 0.0
    %1364 = vmatpush1.msra.mxu0 0.0
    %1365 = vmatprep.subr.mxu0 0.0
    %1366 = vmatpush1.msra.mxu0 0.0
    %1367 = vmatprep.subr.mxu0 0.0
    %1368 = vmatpush1.msra.mxu0 0.0
    %1369 = vmatprep.subr.mxu0 0.0
    %1370 = vmatpush1.msra.mxu0 0.0
    %1371 = vmatprep.subr.mxu0 0.0
    %1372 = vmatpush1.msra.mxu0 0.0
    %1373 = vmatprep.subr.mxu0 0.0
    %1374 = vmatpush1.msra.mxu0 0.0
    %1375 = vmatprep.subr.mxu0 0.0
    %1376 = vmatpush1.msra.mxu0 0.0
    %1377 = vmatprep.mubr.f32.mxu0 0.0
    %1378 = vmatmul.mubr.f32.gmra.mrb[0].mxu0 %v1308
    %v1379 = vpop.f32.mrb[0].mxu0
    %v1380 = vadd.f32 %v1305, %v1379
    %v1381 = vpop.f32.mrb[0].mxu0
    %1382 = vmatprep.mubr.f32.mxu0 0.0
    %1383 = vmatmul.mubr.f32.gmra.mrb[0].mxu0 %v1311
    %v1384 = vpop.f32.mrb[0].mxu0
    %v1385 = vadd.f32 %v1305, %v1384
    %v1386 = vpop.f32.mrb[0].mxu0
    %1387 = vdwg.mxu0
    %v1388 = vadd.f32 %v163, %v1380
    %v1389 = vadd.f32 %v168, %v1385
    %v1390 = vsel %vm175, %v1388, 0.0
    %1391 = vadd.xlane.f32.xlu0 %v1390
    %v1392 = vpop.xlane.xlu0 %1391
    %v1393 = vsel %vm175, %v1389, 0.0
    %1394 = vadd.xlane.f32.xlu0 %v1393
    %v1395 = vpop.xlane.xlu0 %1394
    %v1396 = vrcp.pop 32.0
    %v1397 = vmul.f32 %v1392, %v1396
    %v1398 = vmul.f32 %v1395, %v1396
    %v1399 = vsub.f32 %v1388, %v1397
    %v1400 = vsub.f32 %v1389, %v1398
    %v1401 = vmul.f32 %v1399, %v1399
    %v1402 = vmul.f32 %v1400, %v1400
    %v1403 = vsel %vm175, %v1401, 0.0
    %1404 = vadd.xlane.f32.xlu0 %v1403
    %v1405 = vpop.xlane.xlu0 %1404
    %v1406 = vsel %vm175, %v1402, 0.0
    %1407 = vadd.xlane.f32.xlu0 %v1406
    %v1408 = vpop.xlane.xlu0 %1407
    %v1409 = vmul.f32 %v1405, %v1396
    %v1410 = vmul.f32 %v1408, %v1396
    %v1411 = vadd.f32 %v1409, 1e-05
    %v1412 = vadd.f32 %v1410, 1e-05
    %v1413 = vrsqrt.pop %v1411
    %v1414 = vrsqrt.pop %v1412
    %v1415 = vmul.f32 %v1399, %v1413
    %v1416 = vmul.f32 %v1400, %v1414
    %v1417 = vld [vmem:[%s15] sm:$0x1]
    %v1419 = vlaneseq
    %v1420 = vshrl.u32 %v1419, 7
    %v1421 = vsub.s32 0, %v1420
    %v1422 = vrot.slane %v1417, %v1421
    %v1424 = vmul.f32 %v1415, %v1422
    %v1425 = vmul.f32 %v1416, %v1422
    %v1426 = vld [vmem:[%s16] sm:$0x1]
    %v1428 = vlaneseq
    %v1429 = vshrl.u32 %v1428, 7
    %v1430 = vsub.s32 0, %v1429
    %v1431 = vrot.slane %v1426, %v1430
    %v1433 = vadd.f32 %v1424, %v1431
    %v1434 = vadd.f32 %v1425, %v1431
    %v1435 = vpack.c.bf16 %v1434, %v1433
    %v1436 = vld [vmem:[%s17] sm:$0xff]
    %v1437 = vld [vmem:[%s17 + $0x8] sm:$0xff]
    %v1438 = vld [vmem:[%s17 + $0x10] sm:$0xff]
    %v1439 = vld [vmem:[%s17 + $0x18] sm:$0xff]
    %v1440 = vld [vmem:[%s17 + $0x20] sm:$0xff]
    %v1441 = vld [vmem:[%s17 + $0x28] sm:$0xff]
    %v1442 = vld [vmem:[%s17 + $0x30] sm:$0xff]
    %v1443 = vld [vmem:[%s17 + $0x38] sm:$0xff]
    %v1444 = vld [vmem:[%s17 + $0x40] sm:$0xff]
    %v1445 = vld [vmem:[%s17 + $0x48] sm:$0xff]
    %v1446 = vld [vmem:[%s17 + $0x50] sm:$0xff]
    %v1447 = vld [vmem:[%s17 + $0x58] sm:$0xff]
    %v1448 = vld [vmem:[%s17 + $0x60] sm:$0xff]
    %v1449 = vld [vmem:[%s17 + $0x68] sm:$0xff]
    %v1450 = vld [vmem:[%s17 + $0x70] sm:$0xff]
    %v1451 = vld [vmem:[%s17 + $0x78] sm:$0xff]
    %v1452 = vld [vmem:[%s17 + $0x80] sm:$0xff]
    %v1453 = vld [vmem:[%s17 + $0x88] sm:$0xff]
    %v1454 = vld [vmem:[%s17 + $0x90] sm:$0xff]
    %v1455 = vld [vmem:[%s17 + $0x98] sm:$0xff]
    %v1456 = vld [vmem:[%s17 + $0xa0] sm:$0xff]
    %v1457 = vld [vmem:[%s17 + $0xa8] sm:$0xff]
    %v1458 = vld [vmem:[%s17 + $0xb0] sm:$0xff]
    %v1459 = vld [vmem:[%s17 + $0xb8] sm:$0xff]
    %v1460 = vld [vmem:[%s17 + $0xc0] sm:$0xff]
    %v1461 = vld [vmem:[%s17 + $0xc8] sm:$0xff]
    %v1462 = vld [vmem:[%s17 + $0xd0] sm:$0xff]
    %v1463 = vld [vmem:[%s17 + $0xd8] sm:$0xff]
    %v1464 = vld [vmem:[%s17 + $0xe0] sm:$0xff]
    %v1465 = vld [vmem:[%s17 + $0xe8] sm:$0xff]
    %v1466 = vld [vmem:[%s17 + $0xf0] sm:$0xff]
    %v1467 = vld [vmem:[%s17 + $0xf8] sm:$0xff]
    %v1468 = vld [vmem:[%s18] sm:$0xff]
    %v1469 = vld [vmem:[%s18 + $0x8] sm:$0xff]
    %v1472 = vlaneseq
    %v1473 = vshrl.u32 %v1472, 7
    %v1474 = vsub.s32 0, %v1473
    %v1475 = vrot.slane %v1468, %v1474
    %v1476 = vlaneseq
    %v1477 = vshrl.u32 %v1476, 7
    %v1478 = vsub.s32 1, %v1477
    %v1479 = vrot.slane %v1468, %v1478
    %v1480 = vlaneseq
    %v1481 = vshrl.u32 %v1480, 7
    %v1482 = vsub.s32 2, %v1481
    %v1483 = vrot.slane %v1468, %v1482
    %v1484 = vlaneseq
    %v1485 = vshrl.u32 %v1484, 7
    %v1486 = vsub.s32 3, %v1485
    %v1487 = vrot.slane %v1468, %v1486
    %v1488 = vlaneseq
    %v1489 = vshrl.u32 %v1488, 7
    %v1490 = vsub.s32 4, %v1489
    %v1491 = vrot.slane %v1468, %v1490
    %v1492 = vlaneseq
    %v1493 = vshrl.u32 %v1492, 7
    %v1494 = vsub.s32 5, %v1493
    %v1495 = vrot.slane %v1468, %v1494
    %v1496 = vlaneseq
    %v1497 = vshrl.u32 %v1496, 7
    %v1498 = vsub.s32 6, %v1497
    %v1499 = vrot.slane %v1468, %v1498
    %v1500 = vlaneseq
    %v1501 = vshrl.u32 %v1500, 7
    %v1502 = vsub.s32 7, %v1501
    %v1503 = vrot.slane %v1468, %v1502
    %v1504 = vlaneseq
    %v1505 = vshrl.u32 %v1504, 7
    %v1506 = vsub.s32 0, %v1505
    %v1507 = vrot.slane %v1469, %v1506
    %v1508 = vlaneseq
    %v1509 = vshrl.u32 %v1508, 7
    %v1510 = vsub.s32 1, %v1509
    %v1511 = vrot.slane %v1469, %v1510
    %v1512 = vlaneseq
    %v1513 = vshrl.u32 %v1512, 7
    %v1514 = vsub.s32 2, %v1513
    %v1515 = vrot.slane %v1469, %v1514
    %v1516 = vlaneseq
    %v1517 = vshrl.u32 %v1516, 7
    %v1518 = vsub.s32 3, %v1517
    %v1519 = vrot.slane %v1469, %v1518
    %v1520 = vlaneseq
    %v1521 = vshrl.u32 %v1520, 7
    %v1522 = vsub.s32 4, %v1521
    %v1523 = vrot.slane %v1469, %v1522
    %v1524 = vlaneseq
    %v1525 = vshrl.u32 %v1524, 7
    %v1526 = vsub.s32 5, %v1525
    %v1527 = vrot.slane %v1469, %v1526
    %v1528 = vlaneseq
    %v1529 = vshrl.u32 %v1528, 7
    %v1530 = vsub.s32 6, %v1529
    %v1531 = vrot.slane %v1469, %v1530
    %v1532 = vlaneseq
    %v1533 = vshrl.u32 %v1532, 7
    %v1534 = vsub.s32 7, %v1533
    %v1535 = vrot.slane %v1469, %v1534
    %v1584 = vunpack.c.l.b16 %v1436
    %v1585 = vunpack.c.h.b16 %v1436
    %v1586 = vunpack.c.l.b16 %v1437
    %v1587 = vunpack.c.h.b16 %v1437
    %v1588 = vunpack.c.l.b16 %v1438
    %v1589 = vunpack.c.h.b16 %v1438
    %v1590 = vunpack.c.l.b16 %v1439
    %v1591 = vunpack.c.h.b16 %v1439
    %v1592 = vunpack.c.l.b16 %v1440
    %v1593 = vunpack.c.h.b16 %v1440
    %v1594 = vunpack.c.l.b16 %v1441
    %v1595 = vunpack.c.h.b16 %v1441
    %v1596 = vunpack.c.l.b16 %v1442
    %v1597 = vunpack.c.h.b16 %v1442
    %v1598 = vunpack.c.l.b16 %v1443
    %v1599 = vunpack.c.h.b16 %v1443
    %v1600 = vunpack.c.l.b16 %v1444
    %v1601 = vunpack.c.h.b16 %v1444
    %v1602 = vunpack.c.l.b16 %v1445
    %v1603 = vunpack.c.h.b16 %v1445
    %v1604 = vunpack.c.l.b16 %v1446
    %v1605 = vunpack.c.h.b16 %v1446
    %v1606 = vunpack.c.l.b16 %v1447
    %v1607 = vunpack.c.h.b16 %v1447
    %v1608 = vunpack.c.l.b16 %v1448
    %v1609 = vunpack.c.h.b16 %v1448
    %v1610 = vunpack.c.l.b16 %v1449
    %v1611 = vunpack.c.h.b16 %v1449
    %v1612 = vunpack.c.l.b16 %v1450
    %v1613 = vunpack.c.h.b16 %v1450
    %v1614 = vunpack.c.l.b16 %v1451
    %v1615 = vunpack.c.h.b16 %v1451
    %v1616 = vunpack.c.l.b16 %v1452
    %v1617 = vunpack.c.h.b16 %v1452
    %v1618 = vunpack.c.l.b16 %v1453
    %v1619 = vunpack.c.h.b16 %v1453
    %v1620 = vunpack.c.l.b16 %v1454
    %v1621 = vunpack.c.h.b16 %v1454
    %v1622 = vunpack.c.l.b16 %v1455
    %v1623 = vunpack.c.h.b16 %v1455
    %v1624 = vunpack.c.l.b16 %v1456
    %v1625 = vunpack.c.h.b16 %v1456
    %v1626 = vunpack.c.l.b16 %v1457
    %v1627 = vunpack.c.h.b16 %v1457
    %v1628 = vunpack.c.l.b16 %v1458
    %v1629 = vunpack.c.h.b16 %v1458
    %v1630 = vunpack.c.l.b16 %v1459
    %v1631 = vunpack.c.h.b16 %v1459
    %v1632 = vunpack.c.l.b16 %v1460
    %v1633 = vunpack.c.h.b16 %v1460
    %v1634 = vunpack.c.l.b16 %v1461
    %v1635 = vunpack.c.h.b16 %v1461
    %v1636 = vunpack.c.l.b16 %v1462
    %v1637 = vunpack.c.h.b16 %v1462
    %v1638 = vunpack.c.l.b16 %v1463
    %v1639 = vunpack.c.h.b16 %v1463
    %v1640 = vunpack.c.l.b16 %v1464
    %v1641 = vunpack.c.h.b16 %v1464
    %v1642 = vunpack.c.l.b16 %v1465
    %v1643 = vunpack.c.h.b16 %v1465
    %v1644 = vunpack.c.l.b16 %v1466
    %v1645 = vunpack.c.h.b16 %v1466
    %v1646 = vunpack.c.l.b16 %v1467
    %v1647 = vunpack.c.h.b16 %v1467
    %v1648 = vpack.c.b16 %v1600, %v1584
    %v1649 = vpack.c.b16 %v1601, %v1585
    %v1650 = vpack.c.b16 %v1602, %v1586
    %v1651 = vpack.c.b16 %v1603, %v1587
    %v1652 = vpack.c.b16 %v1604, %v1588
    %v1653 = vpack.c.b16 %v1605, %v1589
    %v1654 = vpack.c.b16 %v1606, %v1590
    %v1655 = vpack.c.b16 %v1607, %v1591
    %v1656 = vpack.c.b16 %v1608, %v1592
    %v1657 = vpack.c.b16 %v1609, %v1593
    %v1658 = vpack.c.b16 %v1610, %v1594
    %v1659 = vpack.c.b16 %v1611, %v1595
    %v1660 = vpack.c.b16 %v1612, %v1596
    %v1661 = vpack.c.b16 %v1613, %v1597
    %v1662 = vpack.c.b16 %v1614, %v1598
    %v1663 = vpack.c.b16 %v1615, %v1599
    %v1664 = vpack.c.b16 %v1632, %v1616
    %v1665 = vpack.c.b16 %v1633, %v1617
    %v1666 = vpack.c.b16 %v1634, %v1618
    %v1667 = vpack.c.b16 %v1635, %v1619
    %v1668 = vpack.c.b16 %v1636, %v1620
    %v1669 = vpack.c.b16 %v1637, %v1621
    %v1670 = vpack.c.b16 %v1638, %v1622
    %v1671 = vpack.c.b16 %v1639, %v1623
    %v1672 = vpack.c.b16 %v1640, %v1624
    %v1673 = vpack.c.b16 %v1641, %v1625
    %v1674 = vpack.c.b16 %v1642, %v1626
    %v1675 = vpack.c.b16 %v1643, %v1627
    %v1676 = vpack.c.b16 %v1644, %v1628
    %v1677 = vpack.c.b16 %v1645, %v1629
    %v1678 = vpack.c.b16 %v1646, %v1630
    %v1679 = vpack.c.b16 %v1647, %v1631
    %v1713 = vsel %vm175, %v1435, 0
    %1715 = vmatprep.subr.bf16.mxu0 %v1649
    %1716 = vmatpush1.bf16.msra.mxu0 %v1648
    %1717 = vmatprep.subr.bf16.mxu0 %v1665
    %1718 = vmatpush1.bf16.msra.mxu0 %v1664
    %1719 = vmatprep.subr.bf16.mxu0 0
    %1720 = vmatpush1.bf16.msra.mxu0 0
    %1721 = vmatprep.subr.bf16.mxu0 0
    %1722 = vmatpush1.bf16.msra.mxu0 0
    %1723 = vmatprep.subr.bf16.mxu0 0
    %1724 = vmatpush1.bf16.msra.mxu0 0
    %1725 = vmatprep.subr.bf16.mxu0 0
    %1726 = vmatpush1.bf16.msra.mxu0 0
    %1727 = vmatprep.subr.bf16.mxu0 0
    %1728 = vmatpush1.bf16.msra.mxu0 0
    %1729 = vmatprep.subr.bf16.mxu0 0
    %1730 = vmatpush1.bf16.msra.mxu0 0
    %1731 = vmatprep.subr.bf16.mxu0 0
    %1732 = vmatpush1.bf16.msra.mxu0 0
    %1733 = vmatprep.subr.bf16.mxu0 0
    %1734 = vmatpush1.bf16.msra.mxu0 0
    %1735 = vmatprep.subr.bf16.mxu0 0
    %1736 = vmatpush1.bf16.msra.mxu0 0
    %1737 = vmatprep.subr.bf16.mxu0 0
    %1738 = vmatpush1.bf16.msra.mxu0 0
    %1739 = vmatprep.subr.bf16.mxu0 0
    %1740 = vmatpush1.bf16.msra.mxu0 0
    %1741 = vmatprep.subr.bf16.mxu0 0
    %1742 = vmatpush1.bf16.msra.mxu0 0
    %1743 = vmatprep.subr.bf16.mxu0 0
    %1744 = vmatpush1.bf16.msra.mxu0 0
    %1745 = vmatprep.subr.bf16.mxu0 0
    %1746 = vmatpush1.bf16.msra.mxu0 0
    %1747 = vmatprep.mubr.bf16.mxu0 0
    %1748 = vmatmul.mubr.bf16.gmra.mrb[0].mxu0 %v1713
    %v1749 = vpop.f32.mrb[0].mxu0
    %v1750 = vadd.f32 %v1475, %v1749
    %v1751 = vpop.f32.mrb[0].mxu0
    %v1752 = vadd.f32 %v1479, %v1751
    %v1753 = vpop.f32.mrb[0].mxu0
    %v1754 = vadd.f32 %v1475, %v1753
    %v1755 = vpop.f32.mrb[0].mxu0
    %v1756 = vadd.f32 %v1479, %v1755
    %1757 = vdwg.mxu0
    %1758 = vmatprep.subr.bf16.mxu0 %v1651
    %1759 = vmatpush1.bf16.msra.mxu0 %v1650
    %1760 = vmatprep.subr.bf16.mxu0 %v1667
    %1761 = vmatpush1.bf16.msra.mxu0 %v1666
    %1762 = vmatprep.subr.bf16.mxu0 0
    %1763 = vmatpush1.bf16.msra.mxu0 0
    %1764 = vmatprep.subr.bf16.mxu0 0
    %1765 = vmatpush1.bf16.msra.mxu0 0
    %1766 = vmatprep.subr.bf16.mxu0 0
    %1767 = vmatpush1.bf16.msra.mxu0 0
    %1768 = vmatprep.subr.bf16.mxu0 0
    %1769 = vmatpush1.bf16.msra.mxu0 0
    %1770 = vmatprep.subr.bf16.mxu0 0
    %1771 = vmatpush1.bf16.msra.mxu0 0
    %1772 = vmatprep.subr.bf16.mxu0 0
    %1773 = vmatpush1.bf16.msra.mxu0 0
    %1774 = vmatprep.subr.bf16.mxu0 0
    %1775 = vmatpush1.bf16.msra.mxu0 0
    %1776 = vmatprep.subr.bf16.mxu0 0
    %1777 = vmatpush1.bf16.msra.mxu0 0
    %1778 = vmatprep.subr.bf16.mxu0 0
    %1779 = vmatpush1.bf16.msra.mxu0 0
    %1780 = vmatprep.subr.bf16.mxu0 0
    %1781 = vmatpush1.bf16.msra.mxu0 0
    %1782 = vmatprep.subr.bf16.mxu0 0
    %1783 = vmatpush1.bf16.msra.mxu0 0
    %1784 = vmatprep.subr.bf16.mxu0 0
    %1785 = vmatpush1.bf16.msra.mxu0 0
    %1786 = vmatprep.subr.bf16.mxu0 0
    %1787 = vmatpush1.bf16.msra.mxu0 0
    %1788 = vmatprep.subr.bf16.mxu0 0
    %1789 = vmatpush1.bf16.msra.mxu0 0
    %1790 = vmatprep.mubr.bf16.mxu0 0
    %1791 = vmatmul.mubr.bf16.gmra.mrb[0].mxu0 %v1713
    %v1792 = vpop.f32.mrb[0].mxu0
    %v1793 = vadd.f32 %v1483, %v1792
    %v1794 = vpop.f32.mrb[0].mxu0
    %v1795 = vadd.f32 %v1487, %v1794
    %v1796 = vpop.f32.mrb[0].mxu0
    %v1797 = vadd.f32 %v1483, %v1796
    %v1798 = vpop.f32.mrb[0].mxu0
    %v1799 = vadd.f32 %v1487, %v1798
    %1800 = vdwg.mxu0
    %1801 = vmatprep.subr.bf16.mxu0 %v1653
    %1802 = vmatpush1.bf16.msra.mxu0 %v1652
    %1803 = vmatprep.subr.bf16.mxu0 %v1669
    %1804 = vmatpush1.bf16.msra.mxu0 %v1668
    %1805 = vmatprep.subr.bf16.mxu0 0
    %1806 = vmatpush1.bf16.msra.mxu0 0
    %1807 = vmatprep.subr.bf16.mxu0 0
    %1808 = vmatpush1.bf16.msra.mxu0 0
    %1809 = vmatprep.subr.bf16.mxu0 0
    %1810 = vmatpush1.bf16.msra.mxu0 0
    %1811 = vmatprep.subr.bf16.mxu0 0
    %1812 = vmatpush1.bf16.msra.mxu0 0
    %1813 = vmatprep.subr.bf16.mxu0 0
    %1814 = vmatpush1.bf16.msra.mxu0 0
    %1815 = vmatprep.subr.bf16.mxu0 0
    %1816 = vmatpush1.bf16.msra.mxu0 0
    %1817 = vmatprep.subr.bf16.mxu0 0
    %1818 = vmatpush1.bf16.msra.mxu0 0
    %1819 = vmatprep.subr.bf16.mxu0 0
    %1820 = vmatpush1.bf16.msra.mxu0 0
    %1821 = vmatprep.subr.bf16.mxu0 0
    %1822 = vmatpush1.bf16.msra.mxu0 0
    %1823 = vmatprep.subr.bf16.mxu0 0
    %1824 = vmatpush1.bf16.msra.mxu0 0
    %1825 = vmatprep.subr.bf16.mxu0 0
    %1826 = vmatpush1.bf16.msra.mxu0 0
    %1827 = vmatprep.subr.bf16.mxu0 0
    %1828 = vmatpush1.bf16.msra.mxu0 0
    %1829 = vmatprep.subr.bf16.mxu0 0
    %1830 = vmatpush1.bf16.msra.mxu0 0
    %1831 = vmatprep.subr.bf16.mxu0 0
    %1832 = vmatpush1.bf16.msra.mxu0 0
    %1833 = vmatprep.mubr.bf16.mxu0 0
    %1834 = vmatmul.mubr.bf16.gmra.mrb[0].mxu0 %v1713
    %v1835 = vpop.f32.mrb[0].mxu0
    %v1836 = vadd.f32 %v1491, %v1835
    %v1837 = vpop.f32.mrb[0].mxu0
    %v1838 = vadd.f32 %v1495, %v1837
    %v1839 = vpop.f32.mrb[0].mxu0
    %v1840 = vadd.f32 %v1491, %v1839
    %v1841 = vpop.f32.mrb[0].mxu0
    %v1842 = vadd.f32 %v1495, %v1841
    %1843 = vdwg.mxu0
    %1844 = vmatprep.subr.bf16.mxu0 %v1655
    %1845 = vmatpush1.bf16.msra.mxu0 %v1654
    %1846 = vmatprep.subr.bf16.mxu0 %v1671
    %1847 = vmatpush1.bf16.msra.mxu0 %v1670
    %1848 = vmatprep.subr.bf16.mxu0 0
    %1849 = vmatpush1.bf16.msra.mxu0 0
    %1850 = vmatprep.subr.bf16.mxu0 0
    %1851 = vmatpush1.bf16.msra.mxu0 0
    %1852 = vmatprep.subr.bf16.mxu0 0
    %1853 = vmatpush1.bf16.msra.mxu0 0
    %1854 = vmatprep.subr.bf16.mxu0 0
    %1855 = vmatpush1.bf16.msra.mxu0 0
    %1856 = vmatprep.subr.bf16.mxu0 0
    %1857 = vmatpush1.bf16.msra.mxu0 0
    %1858 = vmatprep.subr.bf16.mxu0 0
    %1859 = vmatpush1.bf16.msra.mxu0 0
    %1860 = vmatprep.subr.bf16.mxu0 0
    %1861 = vmatpush1.bf16.msra.mxu0 0
    %1862 = vmatprep.subr.bf16.mxu0 0
    %1863 = vmatpush1.bf16.msra.mxu0 0
    %1864 = vmatprep.subr.bf16.mxu0 0
    %1865 = vmatpush1.bf16.msra.mxu0 0
    %1866 = vmatprep.subr.bf16.mxu0 0
    %1867 = vmatpush1.bf16.msra.mxu0 0
    %1868 = vmatprep.subr.bf16.mxu0 0
    %1869 = vmatpush1.bf16.msra.mxu0 0
    %1870 = vmatprep.subr.bf16.mxu0 0
    %1871 = vmatpush1.bf16.msra.mxu0 0
    %1872 = vmatprep.subr.bf16.mxu0 0
    %1873 = vmatpush1.bf16.msra.mxu0 0
    %1874 = vmatprep.subr.bf16.mxu0 0
    %1875 = vmatpush1.bf16.msra.mxu0 0
    %1876 = vmatprep.mubr.bf16.mxu0 0
    %1877 = vmatmul.mubr.bf16.gmra.mrb[0].mxu0 %v1713
    %v1878 = vpop.f32.mrb[0].mxu0
    %v1879 = vadd.f32 %v1499, %v1878
    %v1880 = vpop.f32.mrb[0].mxu0
    %v1881 = vadd.f32 %v1503, %v1880
    %v1882 = vpop.f32.mrb[0].mxu0
    %v1883 = vadd.f32 %v1499, %v1882
    %v1884 = vpop.f32.mrb[0].mxu0
    %v1885 = vadd.f32 %v1503, %v1884
    %1886 = vdwg.mxu0
    %1887 = vmatprep.subr.bf16.mxu0 %v1657
    %1888 = vmatpush1.bf16.msra.mxu0 %v1656
    %1889 = vmatprep.subr.bf16.mxu0 %v1673
    %1890 = vmatpush1.bf16.msra.mxu0 %v1672
    %1891 = vmatprep.subr.bf16.mxu0 0
    %1892 = vmatpush1.bf16.msra.mxu0 0
    %1893 = vmatprep.subr.bf16.mxu0 0
    %1894 = vmatpush1.bf16.msra.mxu0 0
    %1895 = vmatprep.subr.bf16.mxu0 0
    %1896 = vmatpush1.bf16.msra.mxu0 0
    %1897 = vmatprep.subr.bf16.mxu0 0
    %1898 = vmatpush1.bf16.msra.mxu0 0
    %1899 = vmatprep.subr.bf16.mxu0 0
    %1900 = vmatpush1.bf16.msra.mxu0 0
    %1901 = vmatprep.subr.bf16.mxu0 0
    %1902 = vmatpush1.bf16.msra.mxu0 0
    %1903 = vmatprep.subr.bf16.mxu0 0
    %1904 = vmatpush1.bf16.msra.mxu0 0
    %1905 = vmatprep.subr.bf16.mxu0 0
    %1906 = vmatpush1.bf16.msra.mxu0 0
    %1907 = vmatprep.subr.bf16.mxu0 0
    %1908 = vmatpush1.bf16.msra.mxu0 0
    %1909 = vmatprep.subr.bf16.mxu0 0
    %1910 = vmatpush1.bf16.msra.mxu0 0
    %1911 = vmatprep.subr.bf16.mxu0 0
    %1912 = vmatpush1.bf16.msra.mxu0 0
    %1913 = vmatprep.subr.bf16.mxu0 0
    %1914 = vmatpush1.bf16.msra.mxu0 0
    %1915 = vmatprep.subr.bf16.mxu0 0
    %1916 = vmatpush1.bf16.msra.mxu0 0
    %1917 = vmatprep.subr.bf16.mxu0 0
    %1918 = vmatpush1.bf16.msra.mxu0 0
    %1919 = vmatprep.mubr.bf16.mxu0 0
    %1920 = vmatmul.mubr.bf16.gmra.mrb[0].mxu0 %v1713
    %v1921 = vpop.f32.mrb[0].mxu0
    %v1922 = vadd.f32 %v1507, %v1921
    %v1923 = vpop.f32.mrb[0].mxu0
    %v1924 = vadd.f32 %v1511, %v1923
    %v1925 = vpop.f32.mrb[0].mxu0
    %v1926 = vadd.f32 %v1507, %v1925
    %v1927 = vpop.f32.mrb[0].mxu0
    %v1928 = vadd.f32 %v1511, %v1927
    %1929 = vdwg.mxu0
    %1930 = vmatprep.subr.bf16.mxu0 %v1659
    %1931 = vmatpush1.bf16.msra.mxu0 %v1658
    %1932 = vmatprep.subr.bf16.mxu0 %v1675
    %1933 = vmatpush1.bf16.msra.mxu0 %v1674
    %1934 = vmatprep.subr.bf16.mxu0 0
    %1935 = vmatpush1.bf16.msra.mxu0 0
    %1936 = vmatprep.subr.bf16.mxu0 0
    %1937 = vmatpush1.bf16.msra.mxu0 0
    %1938 = vmatprep.subr.bf16.mxu0 0
    %1939 = vmatpush1.bf16.msra.mxu0 0
    %1940 = vmatprep.subr.bf16.mxu0 0
    %1941 = vmatpush1.bf16.msra.mxu0 0
    %1942 = vmatprep.subr.bf16.mxu0 0
    %1943 = vmatpush1.bf16.msra.mxu0 0
    %1944 = vmatprep.subr.bf16.mxu0 0
    %1945 = vmatpush1.bf16.msra.mxu0 0
    %1946 = vmatprep.subr.bf16.mxu0 0
    %1947 = vmatpush1.bf16.msra.mxu0 0
    %1948 = vmatprep.subr.bf16.mxu0 0
    %1949 = vmatpush1.bf16.msra.mxu0 0
    %1950 = vmatprep.subr.bf16.mxu0 0
    %1951 = vmatpush1.bf16.msra.mxu0 0
    %1952 = vmatprep.subr.bf16.mxu0 0
    %1953 = vmatpush1.bf16.msra.mxu0 0
    %1954 = vmatprep.subr.bf16.mxu0 0
    %1955 = vmatpush1.bf16.msra.mxu0 0
    %1956 = vmatprep.subr.bf16.mxu0 0
    %1957 = vmatpush1.bf16.msra.mxu0 0
    %1958 = vmatprep.subr.bf16.mxu0 0
    %1959 = vmatpush1.bf16.msra.mxu0 0
    %1960 = vmatprep.subr.bf16.mxu0 0
    %1961 = vmatpush1.bf16.msra.mxu0 0
    %1962 = vmatprep.mubr.bf16.mxu0 0
    %1963 = vmatmul.mubr.bf16.gmra.mrb[0].mxu0 %v1713
    %v1964 = vpop.f32.mrb[0].mxu0
    %v1965 = vadd.f32 %v1515, %v1964
    %v1966 = vpop.f32.mrb[0].mxu0
    %v1967 = vadd.f32 %v1519, %v1966
    %v1968 = vpop.f32.mrb[0].mxu0
    %v1969 = vadd.f32 %v1515, %v1968
    %v1970 = vpop.f32.mrb[0].mxu0
    %v1971 = vadd.f32 %v1519, %v1970
    %1972 = vdwg.mxu0
    %1973 = vmatprep.subr.bf16.mxu0 %v1661
    %1974 = vmatpush1.bf16.msra.mxu0 %v1660
    %1975 = vmatprep.subr.bf16.mxu0 %v1677
    %1976 = vmatpush1.bf16.msra.mxu0 %v1676
    %1977 = vmatprep.subr.bf16.mxu0 0
    %1978 = vmatpush1.bf16.msra.mxu0 0
    %1979 = vmatprep.subr.bf16.mxu0 0
    %1980 = vmatpush1.bf16.msra.mxu0 0
    %1981 = vmatprep.subr.bf16.mxu0 0
    %1982 = vmatpush1.bf16.msra.mxu0 0
    %1983 = vmatprep.subr.bf16.mxu0 0
    %1984 = vmatpush1.bf16.msra.mxu0 0
    %1985 = vmatprep.subr.bf16.mxu0 0
    %1986 = vmatpush1.bf16.msra.mxu0 0
    %1987 = vmatprep.subr.bf16.mxu0 0
    %1988 = vmatpush1.bf16.msra.mxu0 0
    %1989 = vmatprep.subr.bf16.mxu0 0
    %1990 = vmatpush1.bf16.msra.mxu0 0
    %1991 = vmatprep.subr.bf16.mxu0 0
    %1992 = vmatpush1.bf16.msra.mxu0 0
    %1993 = vmatprep.subr.bf16.mxu0 0
    %1994 = vmatpush1.bf16.msra.mxu0 0
    %1995 = vmatprep.subr.bf16.mxu0 0
    %1996 = vmatpush1.bf16.msra.mxu0 0
    %1997 = vmatprep.subr.bf16.mxu0 0
    %1998 = vmatpush1.bf16.msra.mxu0 0
    %1999 = vmatprep.subr.bf16.mxu0 0
    %2000 = vmatpush1.bf16.msra.mxu0 0
    %2001 = vmatprep.subr.bf16.mxu0 0
    %2002 = vmatpush1.bf16.msra.mxu0 0
    %2003 = vmatprep.subr.bf16.mxu0 0
    %2004 = vmatpush1.bf16.msra.mxu0 0
    %2005 = vmatprep.mubr.bf16.mxu0 0
    %2006 = vmatmul.mubr.bf16.gmra.mrb[0].mxu0 %v1713
    %v2007 = vpop.f32.mrb[0].mxu0
    %v2008 = vadd.f32 %v1523, %v2007
    %v2009 = vpop.f32.mrb[0].mxu0
    %v2010 = vadd.f32 %v1527, %v2009
    %v2011 = vpop.f32.mrb[0].mxu0
    %v2012 = vadd.f32 %v1523, %v2011
    %v2013 = vpop.f32.mrb[0].mxu0
    %v2014 = vadd.f32 %v1527, %v2013
    %2015 = vdwg.mxu0
    %2016 = vmatprep.subr.bf16.mxu0 %v1663
    %2017 = vmatpush1.bf16.msra.mxu0 %v1662
    %2018 = vmatprep.subr.bf16.mxu0 %v1679
    %2019 = vmatpush1.bf16.msra.mxu0 %v1678
    %2020 = vmatprep.subr.bf16.mxu0 0
    %2021 = vmatpush1.bf16.msra.mxu0 0
    %2022 = vmatprep.subr.bf16.mxu0 0
    %2023 = vmatpush1.bf16.msra.mxu0 0
    %2024 = vmatprep.subr.bf16.mxu0 0
    %2025 = vmatpush1.bf16.msra.mxu0 0
    %2026 = vmatprep.subr.bf16.mxu0 0
    %2027 = vmatpush1.bf16.msra.mxu0 0
    %2028 = vmatprep.subr.bf16.mxu0 0
    %2029 = vmatpush1.bf16.msra.mxu0 0
    %2030 = vmatprep.subr.bf16.mxu0 0
    %2031 = vmatpush1.bf16.msra.mxu0 0
    %2032 = vmatprep.subr.bf16.mxu0 0
    %2033 = vmatpush1.bf16.msra.mxu0 0
    %2034 = vmatprep.subr.bf16.mxu0 0
    %2035 = vmatpush1.bf16.msra.mxu0 0
    %2036 = vmatprep.subr.bf16.mxu0 0
    %2037 = vmatpush1.bf16.msra.mxu0 0
    %2038 = vmatprep.subr.bf16.mxu0 0
    %2039 = vmatpush1.bf16.msra.mxu0 0
    %2040 = vmatprep.subr.bf16.mxu0 0
    %2041 = vmatpush1.bf16.msra.mxu0 0
    %2042 = vmatprep.subr.bf16.mxu0 0
    %2043 = vmatpush1.bf16.msra.mxu0 0
    %2044 = vmatprep.subr.bf16.mxu0 0
    %2045 = vmatpush1.bf16.msra.mxu0 0
    %2046 = vmatprep.subr.bf16.mxu0 0
    %2047 = vmatpush1.bf16.msra.mxu0 0
    %2048 = vmatprep.mubr.bf16.mxu0 0
    %2049 = vmatmul.mubr.bf16.gmra.mrb[0].mxu0 %v1713
    %v2050 = vpop.f32.mrb[0].mxu0
    %v2051 = vadd.f32 %v1531, %v2050
    %v2052 = vpop.f32.mrb[0].mxu0
    %v2053 = vadd.f32 %v1535, %v2052
    %v2054 = vpop.f32.mrb[0].mxu0
    %v2055 = vadd.f32 %v1531, %v2054
    %v2056 = vpop.f32.mrb[0].mxu0
    %v2057 = vadd.f32 %v1535, %v2056
    %2058 = vdwg.mxu0
    %vm2059 = vcmp.ge.f32.partialorder %v1750, 0.0
    %vm2060 = vcmp.ge.f32.partialorder %v1752, 0.0
    %vm2061 = vcmp.ge.f32.partialorder %v1793, 0.0
    %vm2062 = vcmp.ge.f32.partialorder %v1795, 0.0
    %vm2063 = vcmp.ge.f32.partialorder %v1836, 0.0
    %vm2064 = vcmp.ge.f32.partialorder %v1838, 0.0
    %vm2065 = vcmp.ge.f32.partialorder %v1879, 0.0
    %vm2066 = vcmp.ge.f32.partialorder %v1881, 0.0
    %vm2067 = vcmp.ge.f32.partialorder %v1922, 0.0
    %vm2068 = vcmp.ge.f32.partialorder %v1924, 0.0
    %vm2069 = vcmp.ge.f32.partialorder %v1965, 0.0
    %vm2070 = vcmp.ge.f32.partialorder %v1967, 0.0
    %vm2071 = vcmp.ge.f32.partialorder %v2008, 0.0
    %vm2072 = vcmp.ge.f32.partialorder %v2010, 0.0
    %vm2073 = vcmp.ge.f32.partialorder %v2051, 0.0
    %vm2074 = vcmp.ge.f32.partialorder %v2053, 0.0
    %vm2075 = vcmp.ge.f32.partialorder %v1754, 0.0
    %vm2076 = vcmp.ge.f32.partialorder %v1756, 0.0
    %vm2077 = vcmp.ge.f32.partialorder %v1797, 0.0
    %vm2078 = vcmp.ge.f32.partialorder %v1799, 0.0
    %vm2079 = vcmp.ge.f32.partialorder %v1840, 0.0
    %vm2080 = vcmp.ge.f32.partialorder %v1842, 0.0
    %vm2081 = vcmp.ge.f32.partialorder %v1883, 0.0
    %vm2082 = vcmp.ge.f32.partialorder %v1885, 0.0
    %vm2083 = vcmp.ge.f32.partialorder %v1926, 0.0
    %vm2084 = vcmp.ge.f32.partialorder %v1928, 0.0
    %vm2085 = vcmp.ge.f32.partialorder %v1969, 0.0
    %vm2086 = vcmp.ge.f32.partialorder %v1971, 0.0
    %vm2087 = vcmp.ge.f32.partialorder %v2012, 0.0
    %vm2088 = vcmp.ge.f32.partialorder %v2014, 0.0
    %vm2089 = vcmp.ge.f32.partialorder %v2055, 0.0
    %vm2090 = vcmp.ge.f32.partialorder %v2057, 0.0
    %v2091 = vmul.f32 %v1750, 0.01
    %v2092 = vmul.f32 %v1752, 0.01
    %v2093 = vmul.f32 %v1793, 0.01
    %v2094 = vmul.f32 %v1795, 0.01
    %v2095 = vmul.f32 %v1836, 0.01
    %v2096 = vmul.f32 %v1838, 0.01
    %v2097 = vmul.f32 %v1879, 0.01
    %v2098 = vmul.f32 %v1881, 0.01
    %v2099 = vmul.f32 %v1922, 0.01
    %v2100 = vmul.f32 %v1924, 0.01
    %v2101 = vmul.f32 %v1965, 0.01
    %v2102 = vmul.f32 %v1967, 0.01
    %v2103 = vmul.f32 %v2008, 0.01
    %v2104 = vmul.f32 %v2010, 0.01
    %v2105 = vmul.f32 %v2051, 0.01
    %v2106 = vmul.f32 %v2053, 0.01
    %v2107 = vmul.f32 %v1754, 0.01
    %v2108 = vmul.f32 %v1756, 0.01
    %v2109 = vmul.f32 %v1797, 0.01
    %v2110 = vmul.f32 %v1799, 0.01
    %v2111 = vmul.f32 %v1840, 0.01
    %v2112 = vmul.f32 %v1842, 0.01
    %v2113 = vmul.f32 %v1883, 0.01
    %v2114 = vmul.f32 %v1885, 0.01
    %v2115 = vmul.f32 %v1926, 0.01
    %v2116 = vmul.f32 %v1928, 0.01
    %v2117 = vmul.f32 %v1969, 0.01
    %v2118 = vmul.f32 %v1971, 0.01
    %v2119 = vmul.f32 %v2012, 0.01
    %v2120 = vmul.f32 %v2014, 0.01
    %v2121 = vmul.f32 %v2055, 0.01
    %v2122 = vmul.f32 %v2057, 0.01
    %v2123 = vsel %vm2059, %v1750, %v2091
    %v2124 = vsel %vm2060, %v1752, %v2092
    %v2125 = vsel %vm2061, %v1793, %v2093
    %v2126 = vsel %vm2062, %v1795, %v2094
    %v2127 = vsel %vm2063, %v1836, %v2095
    %v2128 = vsel %vm2064, %v1838, %v2096
    %v2129 = vsel %vm2065, %v1879, %v2097
    %v2130 = vsel %vm2066, %v1881, %v2098
    %v2131 = vsel %vm2067, %v1922, %v2099
    %v2132 = vsel %vm2068, %v1924, %v2100
    %v2133 = vsel %vm2069, %v1965, %v2101
    %v2134 = vsel %vm2070, %v1967, %v2102
    %v2135 = vsel %vm2071, %v2008, %v2103
    %v2136 = vsel %vm2072, %v2010, %v2104
    %v2137 = vsel %vm2073, %v2051, %v2105
    %v2138 = vsel %vm2074, %v2053, %v2106
    %v2139 = vsel %vm2075, %v1754, %v2107
    %v2140 = vsel %vm2076, %v1756, %v2108
    %v2141 = vsel %vm2077, %v1797, %v2109
    %v2142 = vsel %vm2078, %v1799, %v2110
    %v2143 = vsel %vm2079, %v1840, %v2111
    %v2144 = vsel %vm2080, %v1842, %v2112
    %v2145 = vsel %vm2081, %v1883, %v2113
    %v2146 = vsel %vm2082, %v1885, %v2114
    %v2147 = vsel %vm2083, %v1926, %v2115
    %v2148 = vsel %vm2084, %v1928, %v2116
    %v2149 = vsel %vm2085, %v1969, %v2117
    %v2150 = vsel %vm2086, %v1971, %v2118
    %v2151 = vsel %vm2087, %v2012, %v2119
    %v2152 = vsel %vm2088, %v2014, %v2120
    %v2153 = vsel %vm2089, %v2055, %v2121
    %v2154 = vsel %vm2090, %v2057, %v2122
    %v2155 = vpack.c.bf16 %v2139, %v2123
    %v2156 = vpack.c.bf16 %v2140, %v2124
    %v2157 = vpack.c.bf16 %v2141, %v2125
    %v2158 = vpack.c.bf16 %v2142, %v2126
    %v2159 = vpack.c.bf16 %v2143, %v2127
    %v2160 = vpack.c.bf16 %v2144, %v2128
    %v2161 = vpack.c.bf16 %v2145, %v2129
    %v2162 = vpack.c.bf16 %v2146, %v2130
    %v2163 = vpack.c.bf16 %v2147, %v2131
    %v2164 = vpack.c.bf16 %v2148, %v2132
    %v2165 = vpack.c.bf16 %v2149, %v2133
    %v2166 = vpack.c.bf16 %v2150, %v2134
    %v2167 = vpack.c.bf16 %v2151, %v2135
    %v2168 = vpack.c.bf16 %v2152, %v2136
    %v2169 = vpack.c.bf16 %v2153, %v2137
    %v2170 = vpack.c.bf16 %v2154, %v2138
    %v2171 = vld [vmem:[%s19] sm:$0xf]
    %v2172 = vld [vmem:[%s19 + $0x4] sm:$0xf]
    %v2173 = vld [vmem:[%s19 + $0x8] sm:$0xf]
    %v2174 = vld [vmem:[%s19 + $0xc] sm:$0xf]
    %v2175 = vld [vmem:[%s19 + $0x10] sm:$0xf]
    %v2176 = vld [vmem:[%s19 + $0x14] sm:$0xf]
    %v2177 = vld [vmem:[%s19 + $0x18] sm:$0xf]
    %v2178 = vld [vmem:[%s19 + $0x1c] sm:$0xf]
    %v2179 = vld [vmem:[%s19 + $0x20] sm:$0xf]
    %v2180 = vld [vmem:[%s19 + $0x24] sm:$0xf]
    %v2181 = vld [vmem:[%s19 + $0x28] sm:$0xf]
    %v2182 = vld [vmem:[%s19 + $0x2c] sm:$0xf]
    %v2183 = vld [vmem:[%s19 + $0x30] sm:$0xf]
    %v2184 = vld [vmem:[%s19 + $0x34] sm:$0xf]
    %v2185 = vld [vmem:[%s19 + $0x38] sm:$0xf]
    %v2186 = vld [vmem:[%s19 + $0x3c] sm:$0xf]
    %v2187 = vld [vmem:[%s19 + $0x40] sm:$0xf]
    %v2188 = vld [vmem:[%s19 + $0x44] sm:$0xf]
    %v2189 = vld [vmem:[%s19 + $0x48] sm:$0xf]
    %v2190 = vld [vmem:[%s19 + $0x4c] sm:$0xf]
    %v2191 = vld [vmem:[%s19 + $0x50] sm:$0xf]
    %v2192 = vld [vmem:[%s19 + $0x54] sm:$0xf]
    %v2193 = vld [vmem:[%s19 + $0x58] sm:$0xf]
    %v2194 = vld [vmem:[%s19 + $0x5c] sm:$0xf]
    %v2195 = vld [vmem:[%s19 + $0x60] sm:$0xf]
    %v2196 = vld [vmem:[%s19 + $0x64] sm:$0xf]
    %v2197 = vld [vmem:[%s19 + $0x68] sm:$0xf]
    %v2198 = vld [vmem:[%s19 + $0x6c] sm:$0xf]
    %v2199 = vld [vmem:[%s19 + $0x70] sm:$0xf]
    %v2200 = vld [vmem:[%s19 + $0x74] sm:$0xf]
    %v2201 = vld [vmem:[%s19 + $0x78] sm:$0xf]
    %v2202 = vld [vmem:[%s19 + $0x7c] sm:$0xf]
    %v2203 = vld [vmem:[%s19 + $0x80] sm:$0xf]
    %v2204 = vld [vmem:[%s19 + $0x84] sm:$0xf]
    %v2205 = vld [vmem:[%s19 + $0x88] sm:$0xf]
    %v2206 = vld [vmem:[%s19 + $0x8c] sm:$0xf]
    %v2207 = vld [vmem:[%s19 + $0x90] sm:$0xf]
    %v2208 = vld [vmem:[%s19 + $0x94] sm:$0xf]
    %v2209 = vld [vmem:[%s19 + $0x98] sm:$0xf]
    %v2210 = vld [vmem:[%s19 + $0x9c] sm:$0xf]
    %v2211 = vld [vmem:[%s19 + $0xa0] sm:$0xf]
    %v2212 = vld [vmem:[%s19 + $0xa4] sm:$0xf]
    %v2213 = vld [vmem:[%s19 + $0xa8] sm:$0xf]
    %v2214 = vld [vmem:[%s19 + $0xac] sm:$0xf]
    %v2215 = vld [vmem:[%s19 + $0xb0] sm:$0xf]
    %v2216 = vld [vmem:[%s19 + $0xb4] sm:$0xf]
    %v2217 = vld [vmem:[%s19 + $0xb8] sm:$0xf]
    %v2218 = vld [vmem:[%s19 + $0xbc] sm:$0xf]
    %v2219 = vld [vmem:[%s19 + $0xc0] sm:$0xf]
    %v2220 = vld [vmem:[%s19 + $0xc4] sm:$0xf]
    %v2221 = vld [vmem:[%s19 + $0xc8] sm:$0xf]
    %v2222 = vld [vmem:[%s19 + $0xcc] sm:$0xf]
    %v2223 = vld [vmem:[%s19 + $0xd0] sm:$0xf]
    %v2224 = vld [vmem:[%s19 + $0xd4] sm:$0xf]
    %v2225 = vld [vmem:[%s19 + $0xd8] sm:$0xf]
    %v2226 = vld [vmem:[%s19 + $0xdc] sm:$0xf]
    %v2227 = vld [vmem:[%s19 + $0xe0] sm:$0xf]
    %v2228 = vld [vmem:[%s19 + $0xe4] sm:$0xf]
    %v2229 = vld [vmem:[%s19 + $0xe8] sm:$0xf]
    %v2230 = vld [vmem:[%s19 + $0xec] sm:$0xf]
    %v2231 = vld [vmem:[%s19 + $0xf0] sm:$0xf]
    %v2232 = vld [vmem:[%s19 + $0xf4] sm:$0xf]
    %v2233 = vld [vmem:[%s19 + $0xf8] sm:$0xf]
    %v2234 = vld [vmem:[%s19 + $0xfc] sm:$0xf]
    %v2235 = vld [vmem:[%s19 + $0x100] sm:$0xf]
    %v2236 = vld [vmem:[%s19 + $0x104] sm:$0xf]
    %v2237 = vld [vmem:[%s19 + $0x108] sm:$0xf]
    %v2238 = vld [vmem:[%s19 + $0x10c] sm:$0xf]
    %v2239 = vld [vmem:[%s19 + $0x110] sm:$0xf]
    %v2240 = vld [vmem:[%s19 + $0x114] sm:$0xf]
    %v2241 = vld [vmem:[%s19 + $0x118] sm:$0xf]
    %v2242 = vld [vmem:[%s19 + $0x11c] sm:$0xf]
    %v2243 = vld [vmem:[%s19 + $0x120] sm:$0xf]
    %v2244 = vld [vmem:[%s19 + $0x124] sm:$0xf]
    %v2245 = vld [vmem:[%s19 + $0x128] sm:$0xf]
    %v2246 = vld [vmem:[%s19 + $0x12c] sm:$0xf]
    %v2247 = vld [vmem:[%s19 + $0x130] sm:$0xf]
    %v2248 = vld [vmem:[%s19 + $0x134] sm:$0xf]
    %v2249 = vld [vmem:[%s19 + $0x138] sm:$0xf]
    %v2250 = vld [vmem:[%s19 + $0x13c] sm:$0xf]
    %v2251 = vld [vmem:[%s19 + $0x140] sm:$0xf]
    %v2252 = vld [vmem:[%s19 + $0x144] sm:$0xf]
    %v2253 = vld [vmem:[%s19 + $0x148] sm:$0xf]
    %v2254 = vld [vmem:[%s19 + $0x14c] sm:$0xf]
    %v2255 = vld [vmem:[%s19 + $0x150] sm:$0xf]
    %v2256 = vld [vmem:[%s19 + $0x154] sm:$0xf]
    %v2257 = vld [vmem:[%s19 + $0x158] sm:$0xf]
    %v2258 = vld [vmem:[%s19 + $0x15c] sm:$0xf]
    %v2259 = vld [vmem:[%s19 + $0x160] sm:$0xf]
    %v2260 = vld [vmem:[%s19 + $0x164] sm:$0xf]
    %v2261 = vld [vmem:[%s19 + $0x168] sm:$0xf]
    %v2262 = vld [vmem:[%s19 + $0x16c] sm:$0xf]
    %v2263 = vld [vmem:[%s19 + $0x170] sm:$0xf]
    %v2264 = vld [vmem:[%s19 + $0x174] sm:$0xf]
    %v2265 = vld [vmem:[%s19 + $0x178] sm:$0xf]
    %v2266 = vld [vmem:[%s19 + $0x17c] sm:$0xf]
    %v2267 = vld [vmem:[%s19 + $0x180] sm:$0xf]
    %v2268 = vld [vmem:[%s19 + $0x184] sm:$0xf]
    %v2269 = vld [vmem:[%s19 + $0x188] sm:$0xf]
    %v2270 = vld [vmem:[%s19 + $0x18c] sm:$0xf]
    %v2271 = vld [vmem:[%s19 + $0x190] sm:$0xf]
    %v2272 = vld [vmem:[%s19 + $0x194] sm:$0xf]
    %v2273 = vld [vmem:[%s19 + $0x198] sm:$0xf]
    %v2274 = vld [vmem:[%s19 + $0x19c] sm:$0xf]
    %v2275 = vld [vmem:[%s19 + $0x1a0] sm:$0xf]
    %v2276 = vld [vmem:[%s19 + $0x1a4] sm:$0xf]
    %v2277 = vld [vmem:[%s19 + $0x1a8] sm:$0xf]
    %v2278 = vld [vmem:[%s19 + $0x1ac] sm:$0xf]
    %v2279 = vld [vmem:[%s19 + $0x1b0] sm:$0xf]
    %v2280 = vld [vmem:[%s19 + $0x1b4] sm:$0xf]
    %v2281 = vld [vmem:[%s19 + $0x1b8] sm:$0xf]
    %v2282 = vld [vmem:[%s19 + $0x1bc] sm:$0xf]
    %v2283 = vld [vmem:[%s19 + $0x1c0] sm:$0xf]
    %v2284 = vld [vmem:[%s19 + $0x1c4] sm:$0xf]
    %v2285 = vld [vmem:[%s19 + $0x1c8] sm:$0xf]
    %v2286 = vld [vmem:[%s19 + $0x1cc] sm:$0xf]
    %v2287 = vld [vmem:[%s19 + $0x1d0] sm:$0xf]
    %v2288 = vld [vmem:[%s19 + $0x1d4] sm:$0xf]
    %v2289 = vld [vmem:[%s19 + $0x1d8] sm:$0xf]
    %v2290 = vld [vmem:[%s19 + $0x1dc] sm:$0xf]
    %v2291 = vld [vmem:[%s19 + $0x1e0] sm:$0xf]
    %v2292 = vld [vmem:[%s19 + $0x1e4] sm:$0xf]
    %v2293 = vld [vmem:[%s19 + $0x1e8] sm:$0xf]
    %v2294 = vld [vmem:[%s19 + $0x1ec] sm:$0xf]
    %v2295 = vld [vmem:[%s19 + $0x1f0] sm:$0xf]
    %v2296 = vld [vmem:[%s19 + $0x1f4] sm:$0xf]
    %v2297 = vld [vmem:[%s19 + $0x1f8] sm:$0xf]
    %v2298 = vld [vmem:[%s19 + $0x1fc] sm:$0xf]
    %v2299 = vld [vmem:[%s19 + $0x200] sm:$0xf]
    %v2300 = vld [vmem:[%s19 + $0x204] sm:$0xf]
    %v2301 = vld [vmem:[%s19 + $0x208] sm:$0xf]
    %v2302 = vld [vmem:[%s19 + $0x20c] sm:$0xf]
    %v2303 = vld [vmem:[%s19 + $0x210] sm:$0xf]
    %v2304 = vld [vmem:[%s19 + $0x214] sm:$0xf]
    %v2305 = vld [vmem:[%s19 + $0x218] sm:$0xf]
    %v2306 = vld [vmem:[%s19 + $0x21c] sm:$0xf]
    %v2307 = vld [vmem:[%s19 + $0x220] sm:$0xf]
    %v2308 = vld [vmem:[%s19 + $0x224] sm:$0xf]
    %v2309 = vld [vmem:[%s19 + $0x228] sm:$0xf]
    %v2310 = vld [vmem:[%s19 + $0x22c] sm:$0xf]
    %v2311 = vld [vmem:[%s19 + $0x230] sm:$0xf]
    %v2312 = vld [vmem:[%s19 + $0x234] sm:$0xf]
    %v2313 = vld [vmem:[%s19 + $0x238] sm:$0xf]
    %v2314 = vld [vmem:[%s19 + $0x23c] sm:$0xf]
    %v2315 = vld [vmem:[%s19 + $0x240] sm:$0xf]
    %v2316 = vld [vmem:[%s19 + $0x244] sm:$0xf]
    %v2317 = vld [vmem:[%s19 + $0x248] sm:$0xf]
    %v2318 = vld [vmem:[%s19 + $0x24c] sm:$0xf]
    %v2319 = vld [vmem:[%s19 + $0x250] sm:$0xf]
    %v2320 = vld [vmem:[%s19 + $0x254] sm:$0xf]
    %v2321 = vld [vmem:[%s19 + $0x258] sm:$0xf]
    %v2322 = vld [vmem:[%s19 + $0x25c] sm:$0xf]
    %v2323 = vld [vmem:[%s19 + $0x260] sm:$0xf]
    %v2324 = vld [vmem:[%s19 + $0x264] sm:$0xf]
    %v2325 = vld [vmem:[%s19 + $0x268] sm:$0xf]
    %v2326 = vld [vmem:[%s19 + $0x26c] sm:$0xf]
    %v2327 = vld [vmem:[%s19 + $0x270] sm:$0xf]
    %v2328 = vld [vmem:[%s19 + $0x274] sm:$0xf]
    %v2329 = vld [vmem:[%s19 + $0x278] sm:$0xf]
    %v2330 = vld [vmem:[%s19 + $0x27c] sm:$0xf]
    %v2331 = vld [vmem:[%s19 + $0x280] sm:$0xf]
    %v2332 = vld [vmem:[%s19 + $0x284] sm:$0xf]
    %v2333 = vld [vmem:[%s19 + $0x288] sm:$0xf]
    %v2334 = vld [vmem:[%s19 + $0x28c] sm:$0xf]
    %v2335 = vld [vmem:[%s19 + $0x290] sm:$0xf]
    %v2336 = vld [vmem:[%s19 + $0x294] sm:$0xf]
    %v2337 = vld [vmem:[%s19 + $0x298] sm:$0xf]
    %v2338 = vld [vmem:[%s19 + $0x29c] sm:$0xf]
    %v2339 = vld [vmem:[%s19 + $0x2a0] sm:$0xf]
    %v2340 = vld [vmem:[%s19 + $0x2a4] sm:$0xf]
    %v2341 = vld [vmem:[%s19 + $0x2a8] sm:$0xf]
    %v2342 = vld [vmem:[%s19 + $0x2ac] sm:$0xf]
    %v2343 = vld [vmem:[%s19 + $0x2b0] sm:$0xf]
    %v2344 = vld [vmem:[%s19 + $0x2b4] sm:$0xf]
    %v2345 = vld [vmem:[%s19 + $0x2b8] sm:$0xf]
    %v2346 = vld [vmem:[%s19 + $0x2bc] sm:$0xf]
    %v2347 = vld [vmem:[%s19 + $0x2c0] sm:$0xf]
    %v2348 = vld [vmem:[%s19 + $0x2c4] sm:$0xf]
    %v2349 = vld [vmem:[%s19 + $0x2c8] sm:$0xf]
    %v2350 = vld [vmem:[%s19 + $0x2cc] sm:$0xf]
    %v2351 = vld [vmem:[%s19 + $0x2d0] sm:$0xf]
    %v2352 = vld [vmem:[%s19 + $0x2d4] sm:$0xf]
    %v2353 = vld [vmem:[%s19 + $0x2d8] sm:$0xf]
    %v2354 = vld [vmem:[%s19 + $0x2dc] sm:$0xf]
    %v2355 = vld [vmem:[%s19 + $0x2e0] sm:$0xf]
    %v2356 = vld [vmem:[%s19 + $0x2e4] sm:$0xf]
    %v2357 = vld [vmem:[%s19 + $0x2e8] sm:$0xf]
    %v2358 = vld [vmem:[%s19 + $0x2ec] sm:$0xf]
    %v2359 = vld [vmem:[%s19 + $0x2f0] sm:$0xf]
    %v2360 = vld [vmem:[%s19 + $0x2f4] sm:$0xf]
    %v2361 = vld [vmem:[%s19 + $0x2f8] sm:$0xf]
    %v2362 = vld [vmem:[%s19 + $0x2fc] sm:$0xf]
    %v2363 = vld [vmem:[%s19 + $0x300] sm:$0xf]
    %v2364 = vld [vmem:[%s19 + $0x304] sm:$0xf]
    %v2365 = vld [vmem:[%s19 + $0x308] sm:$0xf]
    %v2366 = vld [vmem:[%s19 + $0x30c] sm:$0xf]
    %v2367 = vld [vmem:[%s19 + $0x310] sm:$0xf]
    %v2368 = vld [vmem:[%s19 + $0x314] sm:$0xf]
    %v2369 = vld [vmem:[%s19 + $0x318] sm:$0xf]
    %v2370 = vld [vmem:[%s19 + $0x31c] sm:$0xf]
    %v2371 = vld [vmem:[%s19 + $0x320] sm:$0xf]
    %v2372 = vld [vmem:[%s19 + $0x324] sm:$0xf]
    %v2373 = vld [vmem:[%s19 + $0x328] sm:$0xf]
    %v2374 = vld [vmem:[%s19 + $0x32c] sm:$0xf]
    %v2375 = vld [vmem:[%s19 + $0x330] sm:$0xf]
    %v2376 = vld [vmem:[%s19 + $0x334] sm:$0xf]
    %v2377 = vld [vmem:[%s19 + $0x338] sm:$0xf]
    %v2378 = vld [vmem:[%s19 + $0x33c] sm:$0xf]
    %v2379 = vld [vmem:[%s19 + $0x340] sm:$0xf]
    %v2380 = vld [vmem:[%s19 + $0x344] sm:$0xf]
    %v2381 = vld [vmem:[%s19 + $0x348] sm:$0xf]
    %v2382 = vld [vmem:[%s19 + $0x34c] sm:$0xf]
    %v2383 = vld [vmem:[%s19 + $0x350] sm:$0xf]
    %v2384 = vld [vmem:[%s19 + $0x354] sm:$0xf]
    %v2385 = vld [vmem:[%s19 + $0x358] sm:$0xf]
    %v2386 = vld [vmem:[%s19 + $0x35c] sm:$0xf]
    %v2387 = vld [vmem:[%s19 + $0x360] sm:$0xf]
    %v2388 = vld [vmem:[%s19 + $0x364] sm:$0xf]
    %v2389 = vld [vmem:[%s19 + $0x368] sm:$0xf]
    %v2390 = vld [vmem:[%s19 + $0x36c] sm:$0xf]
    %v2391 = vld [vmem:[%s19 + $0x370] sm:$0xf]
    %v2392 = vld [vmem:[%s19 + $0x374] sm:$0xf]
    %v2393 = vld [vmem:[%s19 + $0x378] sm:$0xf]
    %v2394 = vld [vmem:[%s19 + $0x37c] sm:$0xf]
    %v2395 = vld [vmem:[%s19 + $0x380] sm:$0xf]
    %v2396 = vld [vmem:[%s19 + $0x384] sm:$0xf]
    %v2397 = vld [vmem:[%s19 + $0x388] sm:$0xf]
    %v2398 = vld [vmem:[%s19 + $0x38c] sm:$0xf]
    %v2399 = vld [vmem:[%s19 + $0x390] sm:$0xf]
    %v2400 = vld [vmem:[%s19 + $0x394] sm:$0xf]
    %v2401 = vld [vmem:[%s19 + $0x398] sm:$0xf]
    %v2402 = vld [vmem:[%s19 + $0x39c] sm:$0xf]
    %v2403 = vld [vmem:[%s19 + $0x3a0] sm:$0xf]
    %v2404 = vld [vmem:[%s19 + $0x3a4] sm:$0xf]
    %v2405 = vld [vmem:[%s19 + $0x3a8] sm:$0xf]
    %v2406 = vld [vmem:[%s19 + $0x3ac] sm:$0xf]
    %v2407 = vld [vmem:[%s19 + $0x3b0] sm:$0xf]
    %v2408 = vld [vmem:[%s19 + $0x3b4] sm:$0xf]
    %v2409 = vld [vmem:[%s19 + $0x3b8] sm:$0xf]
    %v2410 = vld [vmem:[%s19 + $0x3bc] sm:$0xf]
    %v2411 = vld [vmem:[%s19 + $0x3c0] sm:$0xf]
    %v2412 = vld [vmem:[%s19 + $0x3c4] sm:$0xf]
    %v2413 = vld [vmem:[%s19 + $0x3c8] sm:$0xf]
    %v2414 = vld [vmem:[%s19 + $0x3cc] sm:$0xf]
    %v2415 = vld [vmem:[%s19 + $0x3d0] sm:$0xf]
    %v2416 = vld [vmem:[%s19 + $0x3d4] sm:$0xf]
    %v2417 = vld [vmem:[%s19 + $0x3d8] sm:$0xf]
    %v2418 = vld [vmem:[%s19 + $0x3dc] sm:$0xf]
    %v2419 = vld [vmem:[%s19 + $0x3e0] sm:$0xf]
    %v2420 = vld [vmem:[%s19 + $0x3e4] sm:$0xf]
    %v2421 = vld [vmem:[%s19 + $0x3e8] sm:$0xf]
    %v2422 = vld [vmem:[%s19 + $0x3ec] sm:$0xf]
    %v2423 = vld [vmem:[%s19 + $0x3f0] sm:$0xf]
    %v2424 = vld [vmem:[%s19 + $0x3f4] sm:$0xf]
    %v2425 = vld [vmem:[%s19 + $0x3f8] sm:$0xf]
    %v2426 = vld [vmem:[%s19 + $0x3fc] sm:$0xf]
    %v2427 = vld [vmem:[%s20] sm:$0x1]
    %v2429 = vlaneseq
    %v2430 = vshrl.u32 %v2429, 7
    %v2431 = vsub.s32 0, %v2430
    %v2432 = vrot.slane %v2427, %v2431
    %v2690 = vunpack.c.l.b16 %v2171
    %v2691 = vunpack.c.l.b16 %v2172
    %v2692 = vunpack.c.l.b16 %v2173
    %v2693 = vunpack.c.l.b16 %v2174
    %v2694 = vunpack.c.l.b16 %v2175
    %v2695 = vunpack.c.l.b16 %v2176
    %v2696 = vunpack.c.l.b16 %v2177
    %v2697 = vunpack.c.l.b16 %v2178
    %v2698 = vunpack.c.l.b16 %v2179
    %v2699 = vunpack.c.l.b16 %v2180
    %v2700 = vunpack.c.l.b16 %v2181
    %v2701 = vunpack.c.l.b16 %v2182
    %v2702 = vunpack.c.l.b16 %v2183
    %v2703 = vunpack.c.l.b16 %v2184
    %v2704 = vunpack.c.l.b16 %v2185
    %v2705 = vunpack.c.l.b16 %v2186
    %v2706 = vunpack.c.l.b16 %v2187
    %v2707 = vunpack.c.l.b16 %v2188
    %v2708 = vunpack.c.l.b16 %v2189
    %v2709 = vunpack.c.l.b16 %v2190
    %v2710 = vunpack.c.l.b16 %v2191
    %v2711 = vunpack.c.l.b16 %v2192
    %v2712 = vunpack.c.l.b16 %v2193
    %v2713 = vunpack.c.l.b16 %v2194
    %v2714 = vunpack.c.l.b16 %v2195
    %v2715 = vunpack.c.l.b16 %v2196
    %v2716 = vunpack.c.l.b16 %v2197
    %v2717 = vunpack.c.l.b16 %v2198
    %v2718 = vunpack.c.l.b16 %v2199
    %v2719 = vunpack.c.l.b16 %v2200
    %v2720 = vunpack.c.l.b16 %v2201
    %v2721 = vunpack.c.l.b16 %v2202
    %v2722 = vunpack.c.l.b16 %v2203
    %v2723 = vunpack.c.l.b16 %v2204
    %v2724 = vunpack.c.l.b16 %v2205
    %v2725 = vunpack.c.l.b16 %v2206
    %v2726 = vunpack.c.l.b16 %v2207
    %v2727 = vunpack.c.l.b16 %v2208
    %v2728 = vunpack.c.l.b16 %v2209
    %v2729 = vunpack.c.l.b16 %v2210
    %v2730 = vunpack.c.l.b16 %v2211
    %v2731 = vunpack.c.l.b16 %v2212
    %v2732 = vunpack.c.l.b16 %v2213
    %v2733 = vunpack.c.l.b16 %v2214
    %v2734 = vunpack.c.l.b16 %v2215
    %v2735 = vunpack.c.l.b16 %v2216
    %v2736 = vunpack.c.l.b16 %v2217
    %v2737 = vunpack.c.l.b16 %v2218
    %v2738 = vunpack.c.l.b16 %v2219
    %v2739 = vunpack.c.l.b16 %v2220
    %v2740 = vunpack.c.l.b16 %v2221
    %v2741 = vunpack.c.l.b16 %v2222
    %v2742 = vunpack.c.l.b16 %v2223
    %v2743 = vunpack.c.l.b16 %v2224
    %v2744 = vunpack.c.l.b16 %v2225
    %v2745 = vunpack.c.l.b16 %v2226
    %v2746 = vunpack.c.l.b16 %v2227
    %v2747 = vunpack.c.l.b16 %v2228
    %v2748 = vunpack.c.l.b16 %v2229
    %v2749 = vunpack.c.l.b16 %v2230
    %v2750 = vunpack.c.l.b16 %v2231
    %v2751 = vunpack.c.l.b16 %v2232
    %v2752 = vunpack.c.l.b16 %v2233
    %v2753 = vunpack.c.l.b16 %v2234
    %v2754 = vunpack.c.l.b16 %v2235
    %v2755 = vunpack.c.l.b16 %v2236
    %v2756 = vunpack.c.l.b16 %v2237
    %v2757 = vunpack.c.l.b16 %v2238
    %v2758 = vunpack.c.l.b16 %v2239
    %v2759 = vunpack.c.l.b16 %v2240
    %v2760 = vunpack.c.l.b16 %v2241
    %v2761 = vunpack.c.l.b16 %v2242
    %v2762 = vunpack.c.l.b16 %v2243
    %v2763 = vunpack.c.l.b16 %v2244
    %v2764 = vunpack.c.l.b16 %v2245
    %v2765 = vunpack.c.l.b16 %v2246
    %v2766 = vunpack.c.l.b16 %v2247
    %v2767 = vunpack.c.l.b16 %v2248
    %v2768 = vunpack.c.l.b16 %v2249
    %v2769 = vunpack.c.l.b16 %v2250
    %v2770 = vunpack.c.l.b16 %v2251
    %v2771 = vunpack.c.l.b16 %v2252
    %v2772 = vunpack.c.l.b16 %v2253
    %v2773 = vunpack.c.l.b16 %v2254
    %v2774 = vunpack.c.l.b16 %v2255
    %v2775 = vunpack.c.l.b16 %v2256
    %v2776 = vunpack.c.l.b16 %v2257
    %v2777 = vunpack.c.l.b16 %v2258
    %v2778 = vunpack.c.l.b16 %v2259
    %v2779 = vunpack.c.l.b16 %v2260
    %v2780 = vunpack.c.l.b16 %v2261
    %v2781 = vunpack.c.l.b16 %v2262
    %v2782 = vunpack.c.l.b16 %v2263
    %v2783 = vunpack.c.l.b16 %v2264
    %v2784 = vunpack.c.l.b16 %v2265
    %v2785 = vunpack.c.l.b16 %v2266
    %v2786 = vunpack.c.l.b16 %v2267
    %v2787 = vunpack.c.l.b16 %v2268
    %v2788 = vunpack.c.l.b16 %v2269
    %v2789 = vunpack.c.l.b16 %v2270
    %v2790 = vunpack.c.l.b16 %v2271
    %v2791 = vunpack.c.l.b16 %v2272
    %v2792 = vunpack.c.l.b16 %v2273
    %v2793 = vunpack.c.l.b16 %v2274
    %v2794 = vunpack.c.l.b16 %v2275
    %v2795 = vunpack.c.l.b16 %v2276
    %v2796 = vunpack.c.l.b16 %v2277
    %v2797 = vunpack.c.l.b16 %v2278
    %v2798 = vunpack.c.l.b16 %v2279
    %v2799 = vunpack.c.l.b16 %v2280
    %v2800 = vunpack.c.l.b16 %v2281
    %v2801 = vunpack.c.l.b16 %v2282
    %v2802 = vunpack.c.l.b16 %v2283
    %v2803 = vunpack.c.l.b16 %v2284
    %v2804 = vunpack.c.l.b16 %v2285
    %v2805 = vunpack.c.l.b16 %v2286
    %v2806 = vunpack.c.l.b16 %v2287
    %v2807 = vunpack.c.l.b16 %v2288
    %v2808 = vunpack.c.l.b16 %v2289
    %v2809 = vunpack.c.l.b16 %v2290
    %v2810 = vunpack.c.l.b16 %v2291
    %v2811 = vunpack.c.l.b16 %v2292
    %v2812 = vunpack.c.l.b16 %v2293
    %v2813 = vunpack.c.l.b16 %v2294
    %v2814 = vunpack.c.l.b16 %v2295
    %v2815 = vunpack.c.l.b16 %v2296
    %v2816 = vunpack.c.l.b16 %v2297
    %v2817 = vunpack.c.l.b16 %v2298
    %v2818 = vunpack.c.l.b16 %v2299
    %v2819 = vunpack.c.l.b16 %v2300
    %v2820 = vunpack.c.l.b16 %v2301
    %v2821 = vunpack.c.l.b16 %v2302
    %v2822 = vunpack.c.l.b16 %v2303
    %v2823 = vunpack.c.l.b16 %v2304
    %v2824 = vunpack.c.l.b16 %v2305
    %v2825 = vunpack.c.l.b16 %v2306
    %v2826 = vunpack.c.l.b16 %v2307
    %v2827 = vunpack.c.l.b16 %v2308
    %v2828 = vunpack.c.l.b16 %v2309
    %v2829 = vunpack.c.l.b16 %v2310
    %v2830 = vunpack.c.l.b16 %v2311
    %v2831 = vunpack.c.l.b16 %v2312
    %v2832 = vunpack.c.l.b16 %v2313
    %v2833 = vunpack.c.l.b16 %v2314
    %v2834 = vunpack.c.l.b16 %v2315
    %v2835 = vunpack.c.l.b16 %v2316
    %v2836 = vunpack.c.l.b16 %v2317
    %v2837 = vunpack.c.l.b16 %v2318
    %v2838 = vunpack.c.l.b16 %v2319
    %v2839 = vunpack.c.l.b16 %v2320
    %v2840 = vunpack.c.l.b16 %v2321
    %v2841 = vunpack.c.l.b16 %v2322
    %v2842 = vunpack.c.l.b16 %v2323
    %v2843 = vunpack.c.l.b16 %v2324
    %v2844 = vunpack.c.l.b16 %v2325
    %v2845 = vunpack.c.l.b16 %v2326
    %v2846 = vunpack.c.l.b16 %v2327
    %v2847 = vunpack.c.l.b16 %v2328
    %v2848 = vunpack.c.l.b16 %v2329
    %v2849 = vunpack.c.l.b16 %v2330
    %v2850 = vunpack.c.l.b16 %v2331
    %v2851 = vunpack.c.l.b16 %v2332
    %v2852 = vunpack.c.l.b16 %v2333
    %v2853 = vunpack.c.l.b16 %v2334
    %v2854 = vunpack.c.l.b16 %v2335
    %v2855 = vunpack.c.l.b16 %v2336
    %v2856 = vunpack.c.l.b16 %v2337
    %v2857 = vunpack.c.l.b16 %v2338
    %v2858 = vunpack.c.l.b16 %v2339
    %v2859 = vunpack.c.l.b16 %v2340
    %v2860 = vunpack.c.l.b16 %v2341
    %v2861 = vunpack.c.l.b16 %v2342
    %v2862 = vunpack.c.l.b16 %v2343
    %v2863 = vunpack.c.l.b16 %v2344
    %v2864 = vunpack.c.l.b16 %v2345
    %v2865 = vunpack.c.l.b16 %v2346
    %v2866 = vunpack.c.l.b16 %v2347
    %v2867 = vunpack.c.l.b16 %v2348
    %v2868 = vunpack.c.l.b16 %v2349
    %v2869 = vunpack.c.l.b16 %v2350
    %v2870 = vunpack.c.l.b16 %v2351
    %v2871 = vunpack.c.l.b16 %v2352
    %v2872 = vunpack.c.l.b16 %v2353
    %v2873 = vunpack.c.l.b16 %v2354
    %v2874 = vunpack.c.l.b16 %v2355
    %v2875 = vunpack.c.l.b16 %v2356
    %v2876 = vunpack.c.l.b16 %v2357
    %v2877 = vunpack.c.l.b16 %v2358
    %v2878 = vunpack.c.l.b16 %v2359
    %v2879 = vunpack.c.l.b16 %v2360
    %v2880 = vunpack.c.l.b16 %v2361
    %v2881 = vunpack.c.l.b16 %v2362
    %v2882 = vunpack.c.l.b16 %v2363
    %v2883 = vunpack.c.l.b16 %v2364
    %v2884 = vunpack.c.l.b16 %v2365
    %v2885 = vunpack.c.l.b16 %v2366
    %v2886 = vunpack.c.l.b16 %v2367
    %v2887 = vunpack.c.l.b16 %v2368
    %v2888 = vunpack.c.l.b16 %v2369
    %v2889 = vunpack.c.l.b16 %v2370
    %v2890 = vunpack.c.l.b16 %v2371
    %v2891 = vunpack.c.l.b16 %v2372
    %v2892 = vunpack.c.l.b16 %v2373
    %v2893 = vunpack.c.l.b16 %v2374
    %v2894 = vunpack.c.l.b16 %v2375
    %v2895 = vunpack.c.l.b16 %v2376
    %v2896 = vunpack.c.l.b16 %v2377
    %v2897 = vunpack.c.l.b16 %v2378
    %v2898 = vunpack.c.l.b16 %v2379
    %v2899 = vunpack.c.l.b16 %v2380
    %v2900 = vunpack.c.l.b16 %v2381
    %v2901 = vunpack.c.l.b16 %v2382
    %v2902 = vunpack.c.l.b16 %v2383
    %v2903 = vunpack.c.l.b16 %v2384
    %v2904 = vunpack.c.l.b16 %v2385
    %v2905 = vunpack.c.l.b16 %v2386
    %v2906 = vunpack.c.l.b16 %v2387
    %v2907 = vunpack.c.l.b16 %v2388
    %v2908 = vunpack.c.l.b16 %v2389
    %v2909 = vunpack.c.l.b16 %v2390
    %v2910 = vunpack.c.l.b16 %v2391
    %v2911 = vunpack.c.l.b16 %v2392
    %v2912 = vunpack.c.l.b16 %v2393
    %v2913 = vunpack.c.l.b16 %v2394
    %v2914 = vunpack.c.l.b16 %v2395
    %v2915 = vunpack.c.l.b16 %v2396
    %v2916 = vunpack.c.l.b16 %v2397
    %v2917 = vunpack.c.l.b16 %v2398
    %v2918 = vunpack.c.l.b16 %v2399
    %v2919 = vunpack.c.l.b16 %v2400
    %v2920 = vunpack.c.l.b16 %v2401
    %v2921 = vunpack.c.l.b16 %v2402
    %v2922 = vunpack.c.l.b16 %v2403
    %v2923 = vunpack.c.l.b16 %v2404
    %v2924 = vunpack.c.l.b16 %v2405
    %v2925 = vunpack.c.l.b16 %v2406
    %v2926 = vunpack.c.l.b16 %v2407
    %v2927 = vunpack.c.l.b16 %v2408
    %v2928 = vunpack.c.l.b16 %v2409
    %v2929 = vunpack.c.l.b16 %v2410
    %v2930 = vunpack.c.l.b16 %v2411
    %v2931 = vunpack.c.l.b16 %v2412
    %v2932 = vunpack.c.l.b16 %v2413
    %v2933 = vunpack.c.l.b16 %v2414
    %v2934 = vunpack.c.l.b16 %v2415
    %v2935 = vunpack.c.l.b16 %v2416
    %v2936 = vunpack.c.l.b16 %v2417
    %v2937 = vunpack.c.l.b16 %v2418
    %v2938 = vunpack.c.l.b16 %v2419
    %v2939 = vunpack.c.l.b16 %v2420
    %v2940 = vunpack.c.l.b16 %v2421
    %v2941 = vunpack.c.l.b16 %v2422
    %v2942 = vunpack.c.l.b16 %v2423
    %v2943 = vunpack.c.l.b16 %v2424
    %v2944 = vunpack.c.l.b16 %v2425
    %v2945 = vunpack.c.l.b16 %v2426
    %v2946 = vpack.c.b16 %v2691, %v2690
    %v2947 = vpack.c.b16 %v2693, %v2692
    %v2948 = vpack.c.b16 %v2695, %v2694
    %v2949 = vpack.c.b16 %v2697, %v2696
    %v2950 = vpack.c.b16 %v2699, %v2698
    %v2951 = vpack.c.b16 %v2701, %v2700
    %v2952 = vpack.c.b16 %v2703, %v2702
    %v2953 = vpack.c.b16 %v2705, %v2704
    %v2954 = vpack.c.b16 %v2707, %v2706
    %v2955 = vpack.c.b16 %v2709, %v2708
    %v2956 = vpack.c.b16 %v2711, %v2710
    %v2957 = vpack.c.b16 %v2713, %v2712
    %v2958 = vpack.c.b16 %v2715, %v2714
    %v2959 = vpack.c.b16 %v2717, %v2716
    %v2960 = vpack.c.b16 %v2719, %v2718
    %v2961 = vpack.c.b16 %v2721, %v2720
    %v2962 = vpack.c.b16 %v2723, %v2722
    %v2963 = vpack.c.b16 %v2725, %v2724
    %v2964 = vpack.c.b16 %v2727, %v2726
    %v2965 = vpack.c.b16 %v2729, %v2728
    %v2966 = vpack.c.b16 %v2731, %v2730
    %v2967 = vpack.c.b16 %v2733, %v2732
    %v2968 = vpack.c.b16 %v2735, %v2734
    %v2969 = vpack.c.b16 %v2737, %v2736
    %v2970 = vpack.c.b16 %v2739, %v2738
    %v2971 = vpack.c.b16 %v2741, %v2740
    %v2972 = vpack.c.b16 %v2743, %v2742
    %v2973 = vpack.c.b16 %v2745, %v2744
    %v2974 = vpack.c.b16 %v2747, %v2746
    %v2975 = vpack.c.b16 %v2749, %v2748
    %v2976 = vpack.c.b16 %v2751, %v2750
    %v2977 = vpack.c.b16 %v2753, %v2752
    %v2978 = vpack.c.b16 %v2755, %v2754
    %v2979 = vpack.c.b16 %v2757, %v2756
    %v2980 = vpack.c.b16 %v2759, %v2758
    %v2981 = vpack.c.b16 %v2761, %v2760
    %v2982 = vpack.c.b16 %v2763, %v2762
    %v2983 = vpack.c.b16 %v2765, %v2764
    %v2984 = vpack.c.b16 %v2767, %v2766
    %v2985 = vpack.c.b16 %v2769, %v2768
    %v2986 = vpack.c.b16 %v2771, %v2770
    %v2987 = vpack.c.b16 %v2773, %v2772
    %v2988 = vpack.c.b16 %v2775, %v2774
    %v2989 = vpack.c.b16 %v2777, %v2776
    %v2990 = vpack.c.b16 %v2779, %v2778
    %v2991 = vpack.c.b16 %v2781, %v2780
    %v2992 = vpack.c.b16 %v2783, %v2782
    %v2993 = vpack.c.b16 %v2785, %v2784
    %v2994 = vpack.c.b16 %v2787, %v2786
    %v2995 = vpack.c.b16 %v2789, %v2788
    %v2996 = vpack.c.b16 %v2791, %v2790
    %v2997 = vpack.c.b16 %v2793, %v2792
    %v2998 = vpack.c.b16 %v2795, %v2794
    %v2999 = vpack.c.b16 %v2797, %v2796
    %v3000 = vpack.c.b16 %v2799, %v2798
    %v3001 = vpack.c.b16 %v2801, %v2800
    %v3002 = vpack.c.b16 %v2803, %v2802
    %v3003 = vpack.c.b16 %v2805, %v2804
    %v3004 = vpack.c.b16 %v2807, %v2806
    %v3005 = vpack.c.b16 %v2809, %v2808
    %v3006 = vpack.c.b16 %v2811, %v2810
    %v3007 = vpack.c.b16 %v2813, %v2812
    %v3008 = vpack.c.b16 %v2815, %v2814
    %v3009 = vpack.c.b16 %v2817, %v2816
    %v3010 = vpack.c.b16 %v2819, %v2818
    %v3011 = vpack.c.b16 %v2821, %v2820
    %v3012 = vpack.c.b16 %v2823, %v2822
    %v3013 = vpack.c.b16 %v2825, %v2824
    %v3014 = vpack.c.b16 %v2827, %v2826
    %v3015 = vpack.c.b16 %v2829, %v2828
    %v3016 = vpack.c.b16 %v2831, %v2830
    %v3017 = vpack.c.b16 %v2833, %v2832
    %v3018 = vpack.c.b16 %v2835, %v2834
    %v3019 = vpack.c.b16 %v2837, %v2836
    %v3020 = vpack.c.b16 %v2839, %v2838
    %v3021 = vpack.c.b16 %v2841, %v2840
    %v3022 = vpack.c.b16 %v2843, %v2842
    %v3023 = vpack.c.b16 %v2845, %v2844
    %v3024 = vpack.c.b16 %v2847, %v2846
    %v3025 = vpack.c.b16 %v2849, %v2848
    %v3026 = vpack.c.b16 %v2851, %v2850
    %v3027 = vpack.c.b16 %v2853, %v2852
    %v3028 = vpack.c.b16 %v2855, %v2854
    %v3029 = vpack.c.b16 %v2857, %v2856
    %v3030 = vpack.c.b16 %v2859, %v2858
    %v3031 = vpack.c.b16 %v2861, %v2860
    %v3032 = vpack.c.b16 %v2863, %v2862
    %v3033 = vpack.c.b16 %v2865, %v2864
    %v3034 = vpack.c.b16 %v2867, %v2866
    %v3035 = vpack.c.b16 %v2869, %v2868
    %v3036 = vpack.c.b16 %v2871, %v2870
    %v3037 = vpack.c.b16 %v2873, %v2872
    %v3038 = vpack.c.b16 %v2875, %v2874
    %v3039 = vpack.c.b16 %v2877, %v2876
    %v3040 = vpack.c.b16 %v2879, %v2878
    %v3041 = vpack.c.b16 %v2881, %v2880
    %v3042 = vpack.c.b16 %v2883, %v2882
    %v3043 = vpack.c.b16 %v2885, %v2884
    %v3044 = vpack.c.b16 %v2887, %v2886
    %v3045 = vpack.c.b16 %v2889, %v2888
    %v3046 = vpack.c.b16 %v2891, %v2890
    %v3047 = vpack.c.b16 %v2893, %v2892
    %v3048 = vpack.c.b16 %v2895, %v2894
    %v3049 = vpack.c.b16 %v2897, %v2896
    %v3050 = vpack.c.b16 %v2899, %v2898
    %v3051 = vpack.c.b16 %v2901, %v2900
    %v3052 = vpack.c.b16 %v2903, %v2902
    %v3053 = vpack.c.b16 %v2905, %v2904
    %v3054 = vpack.c.b16 %v2907, %v2906
    %v3055 = vpack.c.b16 %v2909, %v2908
    %v3056 = vpack.c.b16 %v2911, %v2910
    %v3057 = vpack.c.b16 %v2913, %v2912
    %v3058 = vpack.c.b16 %v2915, %v2914
    %v3059 = vpack.c.b16 %v2917, %v2916
    %v3060 = vpack.c.b16 %v2919, %v2918
    %v3061 = vpack.c.b16 %v2921, %v2920
    %v3062 = vpack.c.b16 %v2923, %v2922
    %v3063 = vpack.c.b16 %v2925, %v2924
    %v3064 = vpack.c.b16 %v2927, %v2926
    %v3065 = vpack.c.b16 %v2929, %v2928
    %v3066 = vpack.c.b16 %v2931, %v2930
    %v3067 = vpack.c.b16 %v2933, %v2932
    %v3068 = vpack.c.b16 %v2935, %v2934
    %v3069 = vpack.c.b16 %v2937, %v2936
    %v3070 = vpack.c.b16 %v2939, %v2938
    %v3071 = vpack.c.b16 %v2941, %v2940
    %v3072 = vpack.c.b16 %v2943, %v2942
    %v3073 = vpack.c.b16 %v2945, %v2944
    %3202 = vmatprep.subr.bf16.mxu0 0
    %3203 = vmatpush1.bf16.msra.mxu0 %v2946
    %3204 = vmatprep.subr.bf16.mxu0 0
    %3205 = vmatpush1.bf16.msra.mxu0 %v2947
    %3206 = vmatprep.subr.bf16.mxu0 0
    %3207 = vmatpush1.bf16.msra.mxu0 %v2948
    %3208 = vmatprep.subr.bf16.mxu0 0
    %3209 = vmatpush1.bf16.msra.mxu0 %v2949
    %3210 = vmatprep.subr.bf16.mxu0 0
    %3211 = vmatpush1.bf16.msra.mxu0 %v2950
    %3212 = vmatprep.subr.bf16.mxu0 0
    %3213 = vmatpush1.bf16.msra.mxu0 %v2951
    %3214 = vmatprep.subr.bf16.mxu0 0
    %3215 = vmatpush1.bf16.msra.mxu0 %v2952
    %3216 = vmatprep.subr.bf16.mxu0 0
    %3217 = vmatpush1.bf16.msra.mxu0 %v2953
    %3218 = vmatprep.subr.bf16.mxu0 0
    %3219 = vmatpush1.bf16.msra.mxu0 %v2954
    %3220 = vmatprep.subr.bf16.mxu0 0
    %3221 = vmatpush1.bf16.msra.mxu0 %v2955
    %3222 = vmatprep.subr.bf16.mxu0 0
    %3223 = vmatpush1.bf16.msra.mxu0 %v2956
    %3224 = vmatprep.subr.bf16.mxu0 0
    %3225 = vmatpush1.bf16.msra.mxu0 %v2957
    %3226 = vmatprep.subr.bf16.mxu0 0
    %3227 = vmatpush1.bf16.msra.mxu0 %v2958
    %3228 = vmatprep.subr.bf16.mxu0 0
    %3229 = vmatpush1.bf16.msra.mxu0 %v2959
    %3230 = vmatprep.subr.bf16.mxu0 0
    %3231 = vmatpush1.bf16.msra.mxu0 %v2960
    %3232 = vmatprep.subr.bf16.mxu0 0
    %3233 = vmatpush1.bf16.msra.mxu0 %v2961
    %3234 = vmatprep.mubr.bf16.mxu0 %v2156
    %3235 = vmatmul.mubr.bf16.gmra.mrb[0].mxu0 %v2155
    %v3236 = vpop.f32.mrb[0].mxu0
    %v3237 = vadd.f32 %v2432, %v3236
    %v3238 = vpop.f32.mrb[0].mxu0
    %v3239 = vpop.f32.mrb[0].mxu0
    %v3240 = vadd.f32 %v2432, %v3239
    %v3241 = vpop.f32.mrb[0].mxu0
    %3242 = vdwg.mxu0
    %3243 = vmatprep.subr.bf16.mxu0 0
    %3244 = vmatpush1.bf16.msra.mxu0 %v2962
    %3245 = vmatprep.subr.bf16.mxu0 0
    %3246 = vmatpush1.bf16.msra.mxu0 %v2963
    %3247 = vmatprep.subr.bf16.mxu0 0
    %3248 = vmatpush1.bf16.msra.mxu0 %v2964
    %3249 = vmatprep.subr.bf16.mxu0 0
    %3250 = vmatpush1.bf16.msra.mxu0 %v2965
    %3251 = vmatprep.subr.bf16.mxu0 0
    %3252 = vmatpush1.bf16.msra.mxu0 %v2966
    %3253 = vmatprep.subr.bf16.mxu0 0
    %3254 = vmatpush1.bf16.msra.mxu0 %v2967
    %3255 = vmatprep.subr.bf16.mxu0 0
    %3256 = vmatpush1.bf16.msra.mxu0 %v2968
    %3257 = vmatprep.subr.bf16.mxu0 0
    %3258 = vmatpush1.bf16.msra.mxu0 %v2969
    %3259 = vmatprep.subr.bf16.mxu0 0
    %3260 = vmatpush1.bf16.msra.mxu0 %v2970
    %3261 = vmatprep.subr.bf16.mxu0 0
    %3262 = vmatpush1.bf16.msra.mxu0 %v2971
    %3263 = vmatprep.subr.bf16.mxu0 0
    %3264 = vmatpush1.bf16.msra.mxu0 %v2972
    %3265 = vmatprep.subr.bf16.mxu0 0
    %3266 = vmatpush1.bf16.msra.mxu0 %v2973
    %3267 = vmatprep.subr.bf16.mxu0 0
    %3268 = vmatpush1.bf16.msra.mxu0 %v2974
    %3269 = vmatprep.subr.bf16.mxu0 0
    %3270 = vmatpush1.bf16.msra.mxu0 %v2975
    %3271 = vmatprep.subr.bf16.mxu0 0
    %3272 = vmatpush1.bf16.msra.mxu0 %v2976
    %3273 = vmatprep.subr.bf16.mxu0 0
    %3274 = vmatpush1.bf16.msra.mxu0 %v2977
    %3275 = vmatprep.mubr.bf16.mxu0 %v2158
    %3276 = vmatmul.mubr.bf16.gmra.mrb[0].mxu0 %v2157
    %v3277 = vpop.f32.mrb[0].mxu0
    %v3278 = vadd.f32 %v3237, %v3277
    %v3279 = vpop.f32.mrb[0].mxu0
    %v3280 = vpop.f32.mrb[0].mxu0
    %v3281 = vadd.f32 %v3240, %v3280
    %v3282 = vpop.f32.mrb[0].mxu0
    %3283 = vdwg.mxu0
    %3284 = vmatprep.subr.bf16.mxu0 0
    %3285 = vmatpush1.bf16.msra.mxu0 %v2978
    %3286 = vmatprep.subr.bf16.mxu0 0
    %3287 = vmatpush1.bf16.msra.mxu0 %v2979
    %3288 = vmatprep.subr.bf16.mxu0 0
    %3289 = vmatpush1.bf16.msra.mxu0 %v2980
    %3290 = vmatprep.subr.bf16.mxu0 0
    %3291 = vmatpush1.bf16.msra.mxu0 %v2981
    %3292 = vmatprep.subr.bf16.mxu0 0
    %3293 = vmatpush1.bf16.msra.mxu0 %v2982
    %3294 = vmatprep.subr.bf16.mxu0 0
    %3295 = vmatpush1.bf16.msra.mxu0 %v2983
    %3296 = vmatprep.subr.bf16.mxu0 0
    %3297 = vmatpush1.bf16.msra.mxu0 %v2984
    %3298 = vmatprep.subr.bf16.mxu0 0
    %3299 = vmatpush1.bf16.msra.mxu0 %v2985
    %3300 = vmatprep.subr.bf16.mxu0 0
    %3301 = vmatpush1.bf16.msra.mxu0 %v2986
    %3302 = vmatprep.subr.bf16.mxu0 0
    %3303 = vmatpush1.bf16.msra.mxu0 %v2987
    %3304 = vmatprep.subr.bf16.mxu0 0
    %3305 = vmatpush1.bf16.msra.mxu0 %v2988
    %3306 = vmatprep.subr.bf16.mxu0 0
    %3307 = vmatpush1.bf16.msra.mxu0 %v2989
    %3308 = vmatprep.subr.bf16.mxu0 0
    %3309 = vmatpush1.bf16.msra.mxu0 %v2990
    %3310 = vmatprep.subr.bf16.mxu0 0
    %3311 = vmatpush1.bf16.msra.mxu0 %v2991
    %3312 = vmatprep.subr.bf16.mxu0 0
    %3313 = vmatpush1.bf16.msra.mxu0 %v2992
    %3314 = vmatprep.subr.bf16.mxu0 0
    %3315 = vmatpush1.bf16.msra.mxu0 %v2993
    %3316 = vmatprep.mubr.bf16.mxu0 %v2160
    %3317 = vmatmul.mubr.bf16.gmra.mrb[0].mxu0 %v2159
    %v3318 = vpop.f32.mrb[0].mxu0
    %v3319 = vadd.f32 %v3278, %v3318
    %v3320 = vpop.f32.mrb[0].mxu0
    %v3321 = vpop.f32.mrb[0].mxu0
    %v3322 = vadd.f32 %v3281, %v3321
    %v3323 = vpop.f32.mrb[0].mxu0
    %3324 = vdwg.mxu0
    %3325 = vmatprep.subr.bf16.mxu0 0
    %3326 = vmatpush1.bf16.msra.mxu0 %v2994
    %3327 = vmatprep.subr.bf16.mxu0 0
    %3328 = vmatpush1.bf16.msra.mxu0 %v2995
    %3329 = vmatprep.subr.bf16.mxu0 0
    %3330 = vmatpush1.bf16.msra.mxu0 %v2996
    %3331 = vmatprep.subr.bf16.mxu0 0
    %3332 = vmatpush1.bf16.msra.mxu0 %v2997
    %3333 = vmatprep.subr.bf16.mxu0 0
    %3334 = vmatpush1.bf16.msra.mxu0 %v2998
    %3335 = vmatprep.subr.bf16.mxu0 0
    %3336 = vmatpush1.bf16.msra.mxu0 %v2999
    %3337 = vmatprep.subr.bf16.mxu0 0
    %3338 = vmatpush1.bf16.msra.mxu0 %v3000
    %3339 = vmatprep.subr.bf16.mxu0 0
    %3340 = vmatpush1.bf16.msra.mxu0 %v3001
    %3341 = vmatprep.subr.bf16.mxu0 0
    %3342 = vmatpush1.bf16.msra.mxu0 %v3002
    %3343 = vmatprep.subr.bf16.mxu0 0
    %3344 = vmatpush1.bf16.msra.mxu0 %v3003
    %3345 = vmatprep.subr.bf16.mxu0 0
    %3346 = vmatpush1.bf16.msra.mxu0 %v3004
    %3347 = vmatprep.subr.bf16.mxu0 0
    %3348 = vmatpush1.bf16.msra.mxu0 %v3005
    %3349 = vmatprep.subr.bf16.mxu0 0
    %3350 = vmatpush1.bf16.msra.mxu0 %v3006
    %3351 = vmatprep.subr.bf16.mxu0 0
    %3352 = vmatpush1.bf16.msra.mxu0 %v3007
    %3353 = vmatprep.subr.bf16.mxu0 0
    %3354 = vmatpush1.bf16.msra.mxu0 %v3008
    %3355 = vmatprep.subr.bf16.mxu0 0
    %3356 = vmatpush1.bf16.msra.mxu0 %v3009
    %3357 = vmatprep.mubr.bf16.mxu0 %v2162
    %3358 = vmatmul.mubr.bf16.gmra.mrb[0].mxu0 %v2161
    %v3359 = vpop.f32.mrb[0].mxu0
    %v3360 = vadd.f32 %v3319, %v3359
    %v3361 = vpop.f32.mrb[0].mxu0
    %v3362 = vpop.f32.mrb[0].mxu0
    %v3363 = vadd.f32 %v3322, %v3362
    %v3364 = vpop.f32.mrb[0].mxu0
    %3365 = vdwg.mxu0
    %3366 = vmatprep.subr.bf16.mxu0 0
    %3367 = vmatpush1.bf16.msra.mxu0 %v3010
    %3368 = vmatprep.subr.bf16.mxu0 0
    %3369 = vmatpush1.bf16.msra.mxu0 %v3011
    %3370 = vmatprep.subr.bf16.mxu0 0
    %3371 = vmatpush1.bf16.msra.mxu0 %v3012
    %3372 = vmatprep.subr.bf16.mxu0 0
    %3373 = vmatpush1.bf16.msra.mxu0 %v3013
    %3374 = vmatprep.subr.bf16.mxu0 0
    %3375 = vmatpush1.bf16.msra.mxu0 %v3014
    %3376 = vmatprep.subr.bf16.mxu0 0
    %3377 = vmatpush1.bf16.msra.mxu0 %v3015
    %3378 = vmatprep.subr.bf16.mxu0 0
    %3379 = vmatpush1.bf16.msra.mxu0 %v3016
    %3380 = vmatprep.subr.bf16.mxu0 0
    %3381 = vmatpush1.bf16.msra.mxu0 %v3017
    %3382 = vmatprep.subr.bf16.mxu0 0
    %3383 = vmatpush1.bf16.msra.mxu0 %v3018
    %3384 = vmatprep.subr.bf16.mxu0 0
    %3385 = vmatpush1.bf16.msra.mxu0 %v3019
    %3386 = vmatprep.subr.bf16.mxu0 0
    %3387 = vmatpush1.bf16.msra.mxu0 %v3020
    %3388 = vmatprep.subr.bf16.mxu0 0
    %3389 = vmatpush1.bf16.msra.mxu0 %v3021
    %3390 = vmatprep.subr.bf16.mxu0 0
    %3391 = vmatpush1.bf16.msra.mxu0 %v3022
    %3392 = vmatprep.subr.bf16.mxu0 0
    %3393 = vmatpush1.bf16.msra.mxu0 %v3023
    %3394 = vmatprep.subr.bf16.mxu0 0
    %3395 = vmatpush1.bf16.msra.mxu0 %v3024
    %3396 = vmatprep.subr.bf16.mxu0 0
    %3397 = vmatpush1.bf16.msra.mxu0 %v3025
    %3398 = vmatprep.mubr.bf16.mxu0 %v2164
    %3399 = vmatmul.mubr.bf16.gmra.mrb[0].mxu0 %v2163
    %v3400 = vpop.f32.mrb[0].mxu0
    %v3401 = vadd.f32 %v3360, %v3400
    %v3402 = vpop.f32.mrb[0].mxu0
    %v3403 = vpop.f32.mrb[0].mxu0
    %v3404 = vadd.f32 %v3363, %v3403
    %v3405 = vpop.f32.mrb[0].mxu0
    %3406 = vdwg.mxu0
    %3407 = vmatprep.subr.bf16.mxu0 0
    %3408 = vmatpush1.bf16.msra.mxu0 %v3026
    %3409 = vmatprep.subr.bf16.mxu0 0
    %3410 = vmatpush1.bf16.msra.mxu0 %v3027
    %3411 = vmatprep.subr.bf16.mxu0 0
    %3412 = vmatpush1.bf16.msra.mxu0 %v3028
    %3413 = vmatprep.subr.bf16.mxu0 0
    %3414 = vmatpush1.bf16.msra.mxu0 %v3029
    %3415 = vmatprep.subr.bf16.mxu0 0
    %3416 = vmatpush1.bf16.msra.mxu0 %v3030
    %3417 = vmatprep.subr.bf16.mxu0 0
    %3418 = vmatpush1.bf16.msra.mxu0 %v3031
    %3419 = vmatprep.subr.bf16.mxu0 0
    %3420 = vmatpush1.bf16.msra.mxu0 %v3032
    %3421 = vmatprep.subr.bf16.mxu0 0
    %3422 = vmatpush1.bf16.msra.mxu0 %v3033
    %3423 = vmatprep.subr.bf16.mxu0 0
    %3424 = vmatpush1.bf16.msra.mxu0 %v3034
    %3425 = vmatprep.subr.bf16.mxu0 0
    %3426 = vmatpush1.bf16.msra.mxu0 %v3035
    %3427 = vmatprep.subr.bf16.mxu0 0
    %3428 = vmatpush1.bf16.msra.mxu0 %v3036
    %3429 = vmatprep.subr.bf16.mxu0 0
    %3430 = vmatpush1.bf16.msra.mxu0 %v3037
    %3431 = vmatprep.subr.bf16.mxu0 0
    %3432 = vmatpush1.bf16.msra.mxu0 %v3038
    %3433 = vmatprep.subr.bf16.mxu0 0
    %3434 = vmatpush1.bf16.msra.mxu0 %v3039
    %3435 = vmatprep.subr.bf16.mxu0 0
    %3436 = vmatpush1.bf16.msra.mxu0 %v3040
    %3437 = vmatprep.subr.bf16.mxu0 0
    %3438 = vmatpush1.bf16.msra.mxu0 %v3041
    %3439 = vmatprep.mubr.bf16.mxu0 %v2166
    %3440 = vmatmul.mubr.bf16.gmra.mrb[0].mxu0 %v2165
    %v3441 = vpop.f32.mrb[0].mxu0
    %v3442 = vadd.f32 %v3401, %v3441
    %v3443 = vpop.f32.mrb[0].mxu0
    %v3444 = vpop.f32.mrb[0].mxu0
    %v3445 = vadd.f32 %v3404, %v3444
    %v3446 = vpop.f32.mrb[0].mxu0
    %3447 = vdwg.mxu0
    %3448 = vmatprep.subr.bf16.mxu0 0
    %3449 = vmatpush1.bf16.msra.mxu0 %v3042
    %3450 = vmatprep.subr.bf16.mxu0 0
    %3451 = vmatpush1.bf16.msra.mxu0 %v3043
    %3452 = vmatprep.subr.bf16.mxu0 0
    %3453 = vmatpush1.bf16.msra.mxu0 %v3044
    %3454 = vmatprep.subr.bf16.mxu0 0
    %3455 = vmatpush1.bf16.msra.mxu0 %v3045
    %3456 = vmatprep.subr.bf16.mxu0 0
    %3457 = vmatpush1.bf16.msra.mxu0 %v3046
    %3458 = vmatprep.subr.bf16.mxu0 0
    %3459 = vmatpush1.bf16.msra.mxu0 %v3047
    %3460 = vmatprep.subr.bf16.mxu0 0
    %3461 = vmatpush1.bf16.msra.mxu0 %v3048
    %3462 = vmatprep.subr.bf16.mxu0 0
    %3463 = vmatpush1.bf16.msra.mxu0 %v3049
    %3464 = vmatprep.subr.bf16.mxu0 0
    %3465 = vmatpush1.bf16.msra.mxu0 %v3050
    %3466 = vmatprep.subr.bf16.mxu0 0
    %3467 = vmatpush1.bf16.msra.mxu0 %v3051
    %3468 = vmatprep.subr.bf16.mxu0 0
    %3469 = vmatpush1.bf16.msra.mxu0 %v3052
    %3470 = vmatprep.subr.bf16.mxu0 0
    %3471 = vmatpush1.bf16.msra.mxu0 %v3053
    %3472 = vmatprep.subr.bf16.mxu0 0
    %3473 = vmatpush1.bf16.msra.mxu0 %v3054
    %3474 = vmatprep.subr.bf16.mxu0 0
    %3475 = vmatpush1.bf16.msra.mxu0 %v3055
    %3476 = vmatprep.subr.bf16.mxu0 0
    %3477 = vmatpush1.bf16.msra.mxu0 %v3056
    %3478 = vmatprep.subr.bf16.mxu0 0
    %3479 = vmatpush1.bf16.msra.mxu0 %v3057
    %3480 = vmatprep.mubr.bf16.mxu0 %v2168
    %3481 = vmatmul.mubr.bf16.gmra.mrb[0].mxu0 %v2167
    %v3482 = vpop.f32.mrb[0].mxu0
    %v3483 = vadd.f32 %v3442, %v3482
    %v3484 = vpop.f32.mrb[0].mxu0
    %v3485 = vpop.f32.mrb[0].mxu0
    %v3486 = vadd.f32 %v3445, %v3485
    %v3487 = vpop.f32.mrb[0].mxu0
    %3488 = vdwg.mxu0
    %3489 = vmatprep.subr.bf16.mxu0 0
    %3490 = vmatpush1.bf16.msra.mxu0 %v3058
    %3491 = vmatprep.subr.bf16.mxu0 0
    %3492 = vmatpush1.bf16.msra.mxu0 %v3059
    %3493 = vmatprep.subr.bf16.mxu0 0
    %3494 = vmatpush1.bf16.msra.mxu0 %v3060
    %3495 = vmatprep.subr.bf16.mxu0 0
    %3496 = vmatpush1.bf16.msra.mxu0 %v3061
    %3497 = vmatprep.subr.bf16.mxu0 0
    %3498 = vmatpush1.bf16.msra.mxu0 %v3062
    %3499 = vmatprep.subr.bf16.mxu0 0
    %3500 = vmatpush1.bf16.msra.mxu0 %v3063
    %3501 = vmatprep.subr.bf16.mxu0 0
    %3502 = vmatpush1.bf16.msra.mxu0 %v3064
    %3503 = vmatprep.subr.bf16.mxu0 0
    %3504 = vmatpush1.bf16.msra.mxu0 %v3065
    %3505 = vmatprep.subr.bf16.mxu0 0
    %3506 = vmatpush1.bf16.msra.mxu0 %v3066
    %3507 = vmatprep.subr.bf16.mxu0 0
    %3508 = vmatpush1.bf16.msra.mxu0 %v3067
    %3509 = vmatprep.subr.bf16.mxu0 0
    %3510 = vmatpush1.bf16.msra.mxu0 %v3068
    %3511 = vmatprep.subr.bf16.mxu0 0
    %3512 = vmatpush1.bf16.msra.mxu0 %v3069
    %3513 = vmatprep.subr.bf16.mxu0 0
    %3514 = vmatpush1.bf16.msra.mxu0 %v3070
    %3515 = vmatprep.subr.bf16.mxu0 0
    %3516 = vmatpush1.bf16.msra.mxu0 %v3071
    %3517 = vmatprep.subr.bf16.mxu0 0
    %3518 = vmatpush1.bf16.msra.mxu0 %v3072
    %3519 = vmatprep.subr.bf16.mxu0 0
    %3520 = vmatpush1.bf16.msra.mxu0 %v3073
    %3521 = vmatprep.mubr.bf16.mxu0 %v2170
    %3522 = vmatmul.mubr.bf16.gmra.mrb[0].mxu0 %v2169
    %v3523 = vpop.f32.mrb[0].mxu0
    %v3524 = vadd.f32 %v3483, %v3523
    %v3525 = vpop.f32.mrb[0].mxu0
    %v3526 = vpop.f32.mrb[0].mxu0
    %v3527 = vadd.f32 %v3486, %v3526
    %v3528 = vpop.f32.mrb[0].mxu0
    %3529 = vdwg.mxu0
    %v3530 = vadd.f32 %v1433, %v3524
    %v3531 = vadd.f32 %v1434, %v3527
    %v3533 = vrot.slane %v3530, 7
    %v3536 = vrot.slane %v3531, 7
    %vm3538 = vcmask 1040384
    %v3539 = vsel %vm3538, %v72, %v3533
    %v3540 = vsel %vm3538, %v3533, %v73
    %v3541 = vsel %vm3538, %v74, %v3536
    %v3542 = vsel %vm3538, %v3536, %v75
    %3543 = vst.msk [vmem:[#allocation2] sm:$0xff] %vm175, %v3539
    %3544 = vst.msk [vmem:[#allocation2 + $0x8] sm:$0xff] %vm175, %v3540
    %3545 = vst.msk [vmem:[#allocation2 + $0x10] sm:$0xff] %vm175, %v3541
    %3546 = vst.msk [vmem:[#allocation2 + $0x18] sm:$0xff] %vm175, %v3542
    // Predicated region
    $region86: #{multimodal_forward.1} parent=1 // pred_check
      _
    $region87: #{multimodal_forward.1} parent=1 // pred_check_branch
      %3548 = sbr.rel (0) target = $region89
    $region88: #{multimodal_forward.1} parent=1 // pred_region
      %s3550 = ssub.s32 512, 512
      %3551 = vsyncadd [#allocation3], %s3550
      %s3552 = sshll.u32 [#allocation2], 4
      %s3553 = int_to_ptr.vmem [resolvable:$true] %s3552
      %3558 = dma.vmem_to_hbm [thread:$0]  %s3553, 512, %s21, [#allocation3], 128, 128, 8
    $region89: #{multimodal_forward.1} parent=1 // pred_fallthru
      _
    // Predicated region
    $region90: #{multimodal_forward.1} parent=1 // pred_check
      _
    $region91: #{multimodal_forward.1} parent=1 // pred_check_branch
      %3560 = sbr.rel (0) target = $region93
    $region92: #{multimodal_forward.1} parent=1 // pred_region
      %3561 = dma.done [#allocation3], 512
    $region93: #{multimodal_forward.1} parent=1 // pred_fallthru
      _
    %3562 = vsyncpa [#allocation3], 1

</llo_original>
